<compile_context>
chip_gen: v7x
topology: tpu7x:2x2x1
jax: 0.10.0
libtpu: 0.0.40
codegen_flags: <defaults>
</compile_context>

<pallas_src>
import numpy as np
import jax
import jax.numpy as jnp
from jax import lax
from jax.experimental import pallas as pl
from jax.experimental.pallas import tpu as pltpu

# ----- config (matches PatchEncoder.__init__ shape logic) -----
DATA_DIM = 3                   # config['data_dim']
INPUT_DIM = DATA_DIM + 1       # self.input_dim
HIDDEN = 32                    # config['encoder']['hidden_dim']
NUM_BLOCKS = 3                 # config['encoder']['num_blocks']
Z_DIM = 16                     # config['z_dim']
Z_PAD = 128                    # lane-dense output width (sliced back to Z_DIM)


# ----------------------------- Pallas kernel -----------------------------
def _patch_encoder_kernel(x_ref, m_ref, icnt_ref,
                          wpos_ref, bpos_ref,
                          w0_ref, b0_ref, w1_ref, b1_ref, ws_ref,
                          wz_ref, bz_ref,
                          pt_out_ref, vox_out_ref):
    f32 = jnp.float32
    bf16 = jnp.bfloat16
    x = x_ref[...]            # [NT, INPUT_DIM]  f32  local coords + field value
    m = m_ref[...]            # [NT, VMAX]       bf16 one-hot voxel membership
    icnt = icnt_ref[...]      # [VMAX, 1]        f32  1/count (0 for padded voxels)

    # contract over the point axis of both operands:  M^T @ feat  (no m.T transpose)
    tdims = (((0,), (0,)), ((), ()))

    def pool(feat):
        fb = feat.astype(bf16)
        vox_sum = lax.dot_general(m, fb, dimension_numbers=tdims,
                                  preferred_element_type=f32)          # [VMAX, C]
        vox_mean = vox_sum * icnt
        per_point = jnp.dot(m, vox_mean.astype(bf16),
                            preferred_element_type=f32)                # [NT, C]
        return per_point, vox_mean

    def resblock_full(h, i):
        # ResnetBlockFC(2H, H) on a materialized [NT, 2H] input (block 0)
        a = jnp.maximum(h, 0.0)
        net = jnp.dot(a, w0_ref[i], preferred_element_type=f32) + b0_ref[i]
        dx = jnp.dot(jnp.maximum(net, 0.0), w1_ref[i],
                     preferred_element_type=f32) + b1_ref[i]
        xs = jnp.dot(h, ws_ref[i], preferred_element_type=f32)
        return xs + dx

    def resblock_pair(u, v, i):
        # Same block, [NT, 2H] input given as its two [NT, H] halves (out, pooled):
        # weight matrices are split along the input dim to avoid a lane concat.
        au = jnp.maximum(u, 0.0)
        av = jnp.maximum(v, 0.0)
        net = (jnp.dot(au, w0_ref[i, :HIDDEN, :], preferred_element_type=f32)
               + jnp.dot(av, w0_ref[i, HIDDEN:, :], preferred_element_type=f32)
               + b0_ref[i])
        dx = jnp.dot(jnp.maximum(net, 0.0), w1_ref[i],
                     preferred_element_type=f32) + b1_ref[i]
        xs = (jnp.dot(u, ws_ref[i, :HIDDEN, :], preferred_element_type=f32)
              + jnp.dot(v, ws_ref[i, HIDDEN:, :], preferred_element_type=f32))
        return xs + dx

    # fc_pos
    out = jnp.dot(x, wpos_ref[...], preferred_element_type=f32) + bpos_ref[...]
    # blocks[0]
    out = resblock_full(out, 0)
    # blocks[1:] with local pooling + channel concat (fused as weight split)
    for i in range(1, NUM_BLOCKS):                 # static unroll
        pooled, _ = pool(out)
        out = resblock_pair(out, pooled, i)
    # fc_z (output lanes pre-padded to Z_PAD=128 -> unmasked full-lane stores)
    out = jnp.dot(out, wz_ref[...], preferred_element_type=f32) + bz_ref[...]
    pt_out_ref[...] = out
    # final pool -> per-voxel features (what the module returns as a SparseTensor)
    _, vox_mean = pool(out)
    vox_out_ref[...] = vox_mean


# ----------------------------- wrapper -----------------------------
@jax.jit
def patch_encoder_pallas(x, m, icnt, params):
    """x:[P,NT,INPUT_DIM] f32, m:[P,NT,VMAX] bf16, icnt:[P,VMAX,1] f32."""
    P, NT, _ = x.shape
    VMAX = m.shape[-1]
    f32 = jnp.float32

    # lane-dense fc_z: pad output dim to 128 (extra lanes are exact zeros)
    wz_pad = jnp.zeros((HIDDEN, Z_PAD), f32).at[:, :Z_DIM].set(params["Wz"])
    bz_pad = jnp.zeros((1, Z_PAD), f32).at[:, :Z_DIM].set(params["bz"])

    args = (x, m, icnt,
            params["Wpos"], params["bpos"],
            params["W0"], params["b0"], params["W1"], params["b1"], params["Ws"],
            wz_pad, bz_pad)

    def full_spec(a):
        nd = a.ndim
        return pl.BlockSpec(a.shape, lambda p, nd=nd: (0,) * nd)

    in_specs = [
        pl.BlockSpec((None, NT, INPUT_DIM), lambda p: (p, 0, 0)),   # x  (per patch)
        pl.BlockSpec((None, NT, VMAX), lambda p: (p, 0, 0)),        # M  (per patch)
        pl.BlockSpec((None, VMAX, 1), lambda p: (p, 0, 0)),         # 1/count
    ] + [full_spec(a) for a in args[3:]]                            # resident weights

    out_specs = (pl.BlockSpec((None, NT, Z_PAD), lambda p: (p, 0, 0)),
                 pl.BlockSpec((None, VMAX, Z_PAD), lambda p: (p, 0, 0)))

    pt, vox = pl.pallas_call(
        _patch_encoder_kernel,
        grid=(P,),
        out_shape=(jax.ShapeDtypeStruct((P, NT, Z_PAD), f32),
                   jax.ShapeDtypeStruct((P, VMAX, Z_PAD), f32)),
        in_specs=in_specs,
        out_specs=out_specs,
        compiler_params=pltpu.CompilerParams(
            dimension_semantics=("parallel",),          # v7x: shard patches on 2 TCs
            vmem_limit_bytes=32 * 1024 * 1024),
    )(*args)
    return pt[..., :Z_DIM], vox[..., :Z_DIM]


# --------------------------- parameter init ---------------------------
def init_params(key):
    def lin(k, fan_in, fan_out):
        kw, kb = jax.random.split(k)
        bound = 1.0 / np.sqrt(fan_in)
        w = jax.random.uniform(kw, (fan_in, fan_out), jnp.float32, -bound, bound)
        b = jax.random.uniform(kb, (1, fan_out), jnp.float32, -bound, bound)
        return w, b

    ks = jax.random.split(key, 2 + 3 * NUM_BLOCKS)
    wpos, bpos = lin(ks[0], INPUT_DIM, 2 * HIDDEN)
    w0s, b0s, b1s, wss = [], [], [], []
    for i in range(NUM_BLOCKS):
        w0, b0 = lin(ks[1 + i], 2 * HIDDEN, HIDDEN)
        _, b1 = lin(ks[1 + NUM_BLOCKS + i], HIDDEN, HIDDEN)        # fc_1.weight zeroed
        ws, _ = lin(ks[1 + 2 * NUM_BLOCKS + i], 2 * HIDDEN, HIDDEN)  # shortcut, no bias
        w0s.append(w0); b0s.append(b0); b1s.append(b1); wss.append(ws)
    wz, bz = lin(ks[-1], HIDDEN, Z_DIM)
    return dict(
        Wpos=wpos, bpos=bpos,
        W0=jnp.stack(w0s),                                        # [nb, 2H, H]
        b0=jnp.stack(b0s),                                        # [nb, 1, H]
        W1=jnp.zeros((NUM_BLOCKS, HIDDEN, HIDDEN), jnp.float32),  # nn.init.zeros_
        b1=jnp.stack(b1s),
        Ws=jnp.stack(wss),
        Wz=wz, bz=bz,
    )


# ------------------- preprocessing glue (host-side numpy) -------------------
def preprocess(implicit_fields):
    """Per-cloud ME-style voxel quantization -> padded batched tensors."""
    clouds = [np.asarray(f, np.float32) for f in implicit_fields]
    P = len(clouds)
    n_pts = [c.shape[0] for c in clouds]
    NT = int(np.ceil(max(n_pts) / 16.0)) * 16                 # bf16 sublane alignment

    invs, n_vox = [], []
    for c in clouds:
        rounded = np.round(c[:, :DATA_DIM])
        _, inv = np.unique(rounded, axis=0, return_inverse=True)
        invs.append(inv)
        n_vox.append(int(inv.max()) + 1 if inv.size else 0)
    VMAX = max(128, int(np.ceil(max(n_vox) / 128.0)) * 128)   # lane-aligned voxel axis

    x = np.zeros((P, NT, INPUT_DIM), np.float32)
    m = np.zeros((P, NT, VMAX), np.float32)
    icnt = np.zeros((P, VMAX, 1), np.float32)
    for p, c in enumerate(clouds):
        n = n_pts[p]
        coords = c[:, :DATA_DIM]
        rounded = np.round(coords)
        x[p, :n, :DATA_DIM] = coords - rounded                # local coords
        x[p, :n, DATA_DIM] = c[:, DATA_DIM]                   # field value
        m[p, np.arange(n), invs[p]] = 1.0                     # padded rows stay zero
        counts = m[p].sum(axis=0)
        icnt[p, :, 0] = np.where(counts > 0, 1.0 / np.maximum(counts, 1.0), 0.0)

    return (jnp.asarray(x), jnp.asarray(m, jnp.bfloat16), jnp.asarray(icnt),
            jnp.asarray(m), n_pts, n_vox)


# ------------------------------ pure-JAX reference ------------------------------
def reference_forward(x, m_f32, icnt, params):
    def one(xp, mp, ip):
        def pool(feat):
            vox_mean = (mp.T @ feat) * ip
            return mp @ vox_mean, vox_mean

        def resblock(h, i):
            net = jnp.maximum(h, 0.0) @ params["W0"][i] + params["b0"][i]
            dx = jnp.maximum(net, 0.0) @ params["W1"][i] + params["b1"][i]
            return h @ params["Ws"][i] + dx

        out = xp @ params["Wpos"] + params["bpos"]
        out = resblock(out, 0)
        for i in range(1, NUM_BLOCKS):
            pooled, _ = pool(out)
            out = resblock(jnp.concatenate([out, pooled], axis=1), i)
        out = out @ params["Wz"] + params["bz"]
        _, vox_mean = pool(out)
        return out, vox_mean

    return jax.vmap(one)(x, m_f32, icnt)


if __name__ == "__main__":
    key = jax.random.PRNGKey(0)
    kp, k1, k2 = jax.random.split(key, 3)
    params = init_params(kp)

    # two point clouds, columns = [x, y, z, field_value]
    def make_cloud(k, n):
        kc, kf = jax.random.split(k)
        coords = jax.random.uniform(kc, (n, DATA_DIM), jnp.float32, -2.4, 2.4)
        field = jax.random.normal(kf, (n, 1), jnp.float32)
        return jnp.concatenate([coords, field], axis=1)

    implicit_fields = [make_cloud(k1, 160), make_cloud(k2, 120)]

    x, m_bf16, icnt, m_f32, n_pts, n_vox = preprocess(implicit_fields)

    pt_out, vox_out = patch_encoder_pallas(x, m_bf16, icnt, params)
    jax.block_until_ready((pt_out, vox_out))

    ref_pt, ref_vox = reference_forward(x, m_f32, icnt, params)
    for p in range(len(implicit_fields)):
        np.testing.assert_allclose(np.asarray(pt_out[p, :n_pts[p]]),
                                   np.asarray(ref_pt[p, :n_pts[p]]),
                                   rtol=2e-2, atol=2e-2)
        np.testing.assert_allclose(np.asarray(vox_out[p, :n_vox[p]]),
                                   np.asarray(ref_vox[p, :n_vox[p]]),
                                   rtol=2e-2, atol=2e-2)
    print("KERNEL_OK")
</pallas_src>

<mosaic_0001>
module attributes {stable_mosaic.version = 11 : i64} {
  func.func @_patch_encoder_kernel(%arg0: i32, %arg1: memref<1x160x4xf32, #tpu.memory_space<vmem>>, %arg2: memref<1x160x128xbf16, #tpu.memory_space<vmem>>, %arg3: memref<1x128x1xf32, #tpu.memory_space<vmem>>, %arg4: memref<4x64xf32, #tpu.memory_space<vmem>>, %arg5: memref<1x64xf32, #tpu.memory_space<vmem>>, %arg6: memref<3x64x32xf32, #tpu.memory_space<vmem>>, %arg7: memref<3x1x32xf32, #tpu.memory_space<vmem>>, %arg8: memref<3x32x32xf32, #tpu.memory_space<vmem>>, %arg9: memref<3x1x32xf32, #tpu.memory_space<vmem>>, %arg10: memref<3x64x32xf32, #tpu.memory_space<vmem>>, %arg11: memref<32x128xf32, #tpu.memory_space<vmem>>, %arg12: memref<1x128xf32, #tpu.memory_space<vmem>>, %arg13: memref<1x160x128xf32, #tpu.memory_space<vmem>>, %arg14: memref<1x128x128xf32, #tpu.memory_space<vmem>>) attributes {dimension_semantics = [#tpu.dimension_semantics<parallel>], iteration_bounds = array<i64: 2>, scalar_prefetch = 0 : i64, scratch_operands = 0 : i64, tpu.core_type = #tpu.core_type<tc>, window_params = [{transform_indices = @transform_0, window_bounds = array<i64: 1, 160, 4>}, {transform_indices = @transform_1, window_bounds = array<i64: 1, 160, 128>}, {transform_indices = @transform_2, window_bounds = array<i64: 1, 128, 1>}, {pipeline_mode = #tpu.pipeline_mode<synchronous>, transform_indices = @transform_3, window_bounds = array<i64: 4, 64>}, {pipeline_mode = #tpu.pipeline_mode<synchronous>, transform_indices = @transform_4, window_bounds = array<i64: 1, 64>}, {pipeline_mode = #tpu.pipeline_mode<synchronous>, transform_indices = @transform_5, window_bounds = array<i64: 3, 64, 32>}, {pipeline_mode = #tpu.pipeline_mode<synchronous>, transform_indices = @transform_6, window_bounds = array<i64: 3, 1, 32>}, {pipeline_mode = #tpu.pipeline_mode<synchronous>, transform_indices = @transform_7, window_bounds = array<i64: 3, 32, 32>}, {pipeline_mode = #tpu.pipeline_mode<synchronous>, transform_indices = @transform_8, window_bounds = array<i64: 3, 1, 32>}, {pipeline_mode = #tpu.pipeline_mode<synchronous>, transform_indices = @transform_9, window_bounds = array<i64: 3, 64, 32>}, {pipeline_mode = #tpu.pipeline_mode<synchronous>, transform_indices = @transform_10, window_bounds = array<i64: 32, 128>}, {pipeline_mode = #tpu.pipeline_mode<synchronous>, transform_indices = @transform_11, window_bounds = array<i64: 1, 128>}, {transform_indices = @transform_12, window_bounds = array<i64: 1, 160, 128>}, {transform_indices = @transform_13, window_bounds = array<i64: 1, 128, 128>}]} {
    %c0 = arith.constant 0 : index
    %c0_0 = arith.constant 0 : index
    %c0_1 = arith.constant 0 : index
    %0 = vector.load %arg1[%c0, %c0_0, %c0_1] : memref<1x160x4xf32, #tpu.memory_space<vmem>>, vector<1x160x4xf32>
    %1 = vector.shape_cast %0 : vector<1x160x4xf32> to vector<160x4xf32>
    %c0_2 = arith.constant 0 : index
    %c0_3 = arith.constant 0 : index
    %c0_4 = arith.constant 0 : index
    %2 = vector.load %arg2[%c0_2, %c0_3, %c0_4] : memref<1x160x128xbf16, #tpu.memory_space<vmem>>, vector<1x160x128xbf16>
    %3 = vector.shape_cast %2 : vector<1x160x128xbf16> to vector<160x128xbf16>
    %c0_5 = arith.constant 0 : index
    %c0_6 = arith.constant 0 : index
    %c0_7 = arith.constant 0 : index
    %4 = vector.load %arg3[%c0_5, %c0_6, %c0_7] : memref<1x128x1xf32, #tpu.memory_space<vmem>>, vector<1x128x1xf32>
    %5 = vector.shape_cast %4 : vector<1x128x1xf32> to vector<128x1xf32>
    %c0_8 = arith.constant 0 : index
    %c0_9 = arith.constant 0 : index
    %6 = vector.load %arg4[%c0_8, %c0_9] : memref<4x64xf32, #tpu.memory_space<vmem>>, vector<4x64xf32>
    %cst = arith.constant dense<0.000000e+00> : vector<160x64xf32>
    %7 = tpu.matmul %1, %6, %cst {dimension_numbers = #tpu.dot_dimension_numbers<[1], [0], [0], [1], [0, 0, 1, 1], [], []>} : vector<160x4xf32>, vector<4x64xf32>, vector<160x64xf32> -> vector<160x64xf32>
    %c0_10 = arith.constant 0 : index
    %c0_11 = arith.constant 0 : index
    %8 = vector.load %arg5[%c0_10, %c0_11] : memref<1x64xf32, #tpu.memory_space<vmem>>, vector<1x64xf32>
    %9 = vector.broadcast %8 : vector<1x64xf32> to vector<160x64xf32>
    %10 = arith.addf %7, %9 : vector<160x64xf32>
    %cst_12 = arith.constant 0.000000e+00 : f32
    %11 = vector.broadcast %cst_12 : f32 to vector<160x64xf32>
    %12 = arith.maximumf %10, %11 : vector<160x64xf32>
    %c0_13 = arith.constant 0 : index
    %c0_14 = arith.constant 0 : index
    %c0_15 = arith.constant 0 : index
    %13 = vector.load %arg6[%c0_13, %c0_14, %c0_15] : memref<3x64x32xf32, #tpu.memory_space<vmem>>, vector<1x64x32xf32>
    %14 = vector.shape_cast %13 : vector<1x64x32xf32> to vector<64x32xf32>
    %cst_16 = arith.constant dense<0.000000e+00> : vector<160x32xf32>
    %15 = tpu.matmul %12, %14, %cst_16 {dimension_numbers = #tpu.dot_dimension_numbers<[1], [0], [0], [1], [0, 0, 1, 1], [], []>} : vector<160x64xf32>, vector<64x32xf32>, vector<160x32xf32> -> vector<160x32xf32>
    %c0_17 = arith.constant 0 : index
    %c0_18 = arith.constant 0 : index
    %c0_19 = arith.constant 0 : index
    %16 = vector.load %arg7[%c0_17, %c0_18, %c0_19] : memref<3x1x32xf32, #tpu.memory_space<vmem>>, vector<1x1x32xf32>
    %17 = vector.shape_cast %16 : vector<1x1x32xf32> to vector<1x32xf32>
    %18 = vector.broadcast %17 : vector<1x32xf32> to vector<160x32xf32>
    %19 = arith.addf %15, %18 : vector<160x32xf32>
    %cst_20 = arith.constant 0.000000e+00 : f32
    %20 = vector.broadcast %cst_20 : f32 to vector<160x32xf32>
    %21 = arith.maximumf %19, %20 : vector<160x32xf32>
    %c0_21 = arith.constant 0 : index
    %c0_22 = arith.constant 0 : index
    %c0_23 = arith.constant 0 : index
    %22 = vector.load %arg8[%c0_21, %c0_22, %c0_23] : memref<3x32x32xf32, #tpu.memory_space<vmem>>, vector<1x32x32xf32>
    %23 = vector.shape_cast %22 : vector<1x32x32xf32> to vector<32x32xf32>
    %cst_24 = arith.constant dense<0.000000e+00> : vector<160x32xf32>
    %24 = tpu.matmul %21, %23, %cst_24 {dimension_numbers = #tpu.dot_dimension_numbers<[1], [0], [0], [1], [0, 0, 1, 1], [], []>} : vector<160x32xf32>, vector<32x32xf32>, vector<160x32xf32> -> vector<160x32xf32>
    %c0_25 = arith.constant 0 : index
    %c0_26 = arith.constant 0 : index
    %c0_27 = arith.constant 0 : index
    %25 = vector.load %arg9[%c0_25, %c0_26, %c0_27] : memref<3x1x32xf32, #tpu.memory_space<vmem>>, vector<1x1x32xf32>
    %26 = vector.shape_cast %25 : vector<1x1x32xf32> to vector<1x32xf32>
    %27 = vector.broadcast %26 : vector<1x32xf32> to vector<160x32xf32>
    %28 = arith.addf %24, %27 : vector<160x32xf32>
    %c0_28 = arith.constant 0 : index
    %c0_29 = arith.constant 0 : index
    %c0_30 = arith.constant 0 : index
    %29 = vector.load %arg10[%c0_28, %c0_29, %c0_30] : memref<3x64x32xf32, #tpu.memory_space<vmem>>, vector<1x64x32xf32>
    %30 = vector.shape_cast %29 : vector<1x64x32xf32> to vector<64x32xf32>
    %cst_31 = arith.constant dense<0.000000e+00> : vector<160x32xf32>
    %31 = tpu.matmul %10, %30, %cst_31 {dimension_numbers = #tpu.dot_dimension_numbers<[1], [0], [0], [1], [0, 0, 1, 1], [], []>} : vector<160x64xf32>, vector<64x32xf32>, vector<160x32xf32> -> vector<160x32xf32>
    %32 = arith.addf %31, %28 : vector<160x32xf32>
    %33 = arith.truncf %32 : vector<160x32xf32> to vector<160x32xbf16>
    %cst_32 = arith.constant dense<0.000000e+00> : vector<128x32xf32>
    %34 = tpu.matmul %3, %33, %cst_32 {dimension_numbers = #tpu.dot_dimension_numbers<[0], [0], [1], [1], [0, 1, 1, 1], [], []>} : vector<160x128xbf16>, vector<160x32xbf16>, vector<128x32xf32> -> vector<128x32xf32>
    %35 = vector.broadcast %5 : vector<128x1xf32> to vector<128x32xf32>
    %36 = arith.mulf %34, %35 : vector<128x32xf32>
    %37 = arith.truncf %36 : vector<128x32xf32> to vector<128x32xbf16>
    %cst_33 = arith.constant dense<0.000000e+00> : vector<160x32xf32>
    %38 = tpu.matmul %3, %37, %cst_33 {dimension_numbers = #tpu.dot_dimension_numbers<[1], [0], [0], [1], [0, 0, 1, 1], [], []>} : vector<160x128xbf16>, vector<128x32xbf16>, vector<160x32xf32> -> vector<160x32xf32>
    %cst_34 = arith.constant 0.000000e+00 : f32
    %39 = vector.broadcast %cst_34 : f32 to vector<160x32xf32>
    %40 = arith.maximumf %32, %39 : vector<160x32xf32>
    %cst_35 = arith.constant 0.000000e+00 : f32
    %41 = vector.broadcast %cst_35 : f32 to vector<160x32xf32>
    %42 = arith.maximumf %38, %41 : vector<160x32xf32>
    %c1 = arith.constant 1 : index
    %c0_36 = arith.constant 0 : index
    %c0_37 = arith.constant 0 : index
    %43 = vector.load %arg6[%c1, %c0_36, %c0_37] : memref<3x64x32xf32, #tpu.memory_space<vmem>>, vector<1x32x32xf32>
    %44 = vector.shape_cast %43 : vector<1x32x32xf32> to vector<32x32xf32>
    %cst_38 = arith.constant dense<0.000000e+00> : vector<160x32xf32>
    %45 = tpu.matmul %40, %44, %cst_38 {dimension_numbers = #tpu.dot_dimension_numbers<[1], [0], [0], [1], [0, 0, 1, 1], [], []>} : vector<160x32xf32>, vector<32x32xf32>, vector<160x32xf32> -> vector<160x32xf32>
    %c1_39 = arith.constant 1 : index
    %c32 = arith.constant 32 : index
    %c0_40 = arith.constant 0 : index
    %46 = vector.load %arg6[%c1_39, %c32, %c0_40] : memref<3x64x32xf32, #tpu.memory_space<vmem>>, vector<1x32x32xf32>
    %47 = vector.shape_cast %46 : vector<1x32x32xf32> to vector<32x32xf32>
    %cst_41 = arith.constant dense<0.000000e+00> : vector<160x32xf32>
    %48 = tpu.matmul %42, %47, %cst_41 {dimension_numbers = #tpu.dot_dimension_numbers<[1], [0], [0], [1], [0, 0, 1, 1], [], []>} : vector<160x32xf32>, vector<32x32xf32>, vector<160x32xf32> -> vector<160x32xf32>
    %49 = arith.addf %45, %48 : vector<160x32xf32>
    %c1_42 = arith.constant 1 : index
    %c0_43 = arith.constant 0 : index
    %c0_44 = arith.constant 0 : index
    %50 = vector.load %arg7[%c1_42, %c0_43, %c0_44] : memref<3x1x32xf32, #tpu.memory_space<vmem>>, vector<1x1x32xf32>
    %51 = vector.shape_cast %50 : vector<1x1x32xf32> to vector<1x32xf32>
    %52 = vector.broadcast %51 : vector<1x32xf32> to vector<160x32xf32>
    %53 = arith.addf %49, %52 : vector<160x32xf32>
    %cst_45 = arith.constant 0.000000e+00 : f32
    %54 = vector.broadcast %cst_45 : f32 to vector<160x32xf32>
    %55 = arith.maximumf %53, %54 : vector<160x32xf32>
    %c1_46 = arith.constant 1 : index
    %c0_47 = arith.constant 0 : index
    %c0_48 = arith.constant 0 : index
    %56 = vector.load %arg8[%c1_46, %c0_47, %c0_48] : memref<3x32x32xf32, #tpu.memory_space<vmem>>, vector<1x32x32xf32>
    %57 = vector.shape_cast %56 : vector<1x32x32xf32> to vector<32x32xf32>
    %cst_49 = arith.constant dense<0.000000e+00> : vector<160x32xf32>
    %58 = tpu.matmul %55, %57, %cst_49 {dimension_numbers = #tpu.dot_dimension_numbers<[1], [0], [0], [1], [0, 0, 1, 1], [], []>} : vector<160x32xf32>, vector<32x32xf32>, vector<160x32xf32> -> vector<160x32xf32>
    %c1_50 = arith.constant 1 : index
    %c0_51 = arith.constant 0 : index
    %c0_52 = arith.constant 0 : index
    %59 = vector.load %arg9[%c1_50, %c0_51, %c0_52] : memref<3x1x32xf32, #tpu.memory_space<vmem>>, vector<1x1x32xf32>
    %60 = vector.shape_cast %59 : vector<1x1x32xf32> to vector<1x32xf32>
    %61 = vector.broadcast %60 : vector<1x32xf32> to vector<160x32xf32>
    %62 = arith.addf %58, %61 : vector<160x32xf32>
    %c1_53 = arith.constant 1 : index
    %c0_54 = arith.constant 0 : index
    %c0_55 = arith.constant 0 : index
    %63 = vector.load %arg10[%c1_53, %c0_54, %c0_55] : memref<3x64x32xf32, #tpu.memory_space<vmem>>, vector<1x32x32xf32>
    %64 = vector.shape_cast %63 : vector<1x32x32xf32> to vector<32x32xf32>
    %cst_56 = arith.constant dense<0.000000e+00> : vector<160x32xf32>
    %65 = tpu.matmul %32, %64, %cst_56 {dimension_numbers = #tpu.dot_dimension_numbers<[1], [0], [0], [1], [0, 0, 1, 1], [], []>} : vector<160x32xf32>, vector<32x32xf32>, vector<160x32xf32> -> vector<160x32xf32>
    %c1_57 = arith.constant 1 : index
    %c32_58 = arith.constant 32 : index
    %c0_59 = arith.constant 0 : index
    %66 = vector.load %arg10[%c1_57, %c32_58, %c0_59] : memref<3x64x32xf32, #tpu.memory_space<vmem>>, vector<1x32x32xf32>
    %67 = vector.shape_cast %66 : vector<1x32x32xf32> to vector<32x32xf32>
    %cst_60 = arith.constant dense<0.000000e+00> : vector<160x32xf32>
    %68 = tpu.matmul %38, %67, %cst_60 {dimension_numbers = #tpu.dot_dimension_numbers<[1], [0], [0], [1], [0, 0, 1, 1], [], []>} : vector<160x32xf32>, vector<32x32xf32>, vector<160x32xf32> -> vector<160x32xf32>
    %69 = arith.addf %65, %68 : vector<160x32xf32>
    %70 = arith.addf %69, %62 : vector<160x32xf32>
    %71 = arith.truncf %70 : vector<160x32xf32> to vector<160x32xbf16>
    %cst_61 = arith.constant dense<0.000000e+00> : vector<128x32xf32>
    %72 = tpu.matmul %3, %71, %cst_61 {dimension_numbers = #tpu.dot_dimension_numbers<[0], [0], [1], [1], [0, 1, 1, 1], [], []>} : vector<160x128xbf16>, vector<160x32xbf16>, vector<128x32xf32> -> vector<128x32xf32>
    %73 = vector.broadcast %5 : vector<128x1xf32> to vector<128x32xf32>
    %74 = arith.mulf %72, %73 : vector<128x32xf32>
    %75 = arith.truncf %74 : vector<128x32xf32> to vector<128x32xbf16>
    %cst_62 = arith.constant dense<0.000000e+00> : vector<160x32xf32>
    %76 = tpu.matmul %3, %75, %cst_62 {dimension_numbers = #tpu.dot_dimension_numbers<[1], [0], [0], [1], [0, 0, 1, 1], [], []>} : vector<160x128xbf16>, vector<128x32xbf16>, vector<160x32xf32> -> vector<160x32xf32>
    %cst_63 = arith.constant 0.000000e+00 : f32
    %77 = vector.broadcast %cst_63 : f32 to vector<160x32xf32>
    %78 = arith.maximumf %70, %77 : vector<160x32xf32>
    %cst_64 = arith.constant 0.000000e+00 : f32
    %79 = vector.broadcast %cst_64 : f32 to vector<160x32xf32>
    %80 = arith.maximumf %76, %79 : vector<160x32xf32>
    %c2 = arith.constant 2 : index
    %c0_65 = arith.constant 0 : index
    %c0_66 = arith.constant 0 : index
    %81 = vector.load %arg6[%c2, %c0_65, %c0_66] : memref<3x64x32xf32, #tpu.memory_space<vmem>>, vector<1x32x32xf32>
    %82 = vector.shape_cast %81 : vector<1x32x32xf32> to vector<32x32xf32>
    %cst_67 = arith.constant dense<0.000000e+00> : vector<160x32xf32>
    %83 = tpu.matmul %78, %82, %cst_67 {dimension_numbers = #tpu.dot_dimension_numbers<[1], [0], [0], [1], [0, 0, 1, 1], [], []>} : vector<160x32xf32>, vector<32x32xf32>, vector<160x32xf32> -> vector<160x32xf32>
    %c2_68 = arith.constant 2 : index
    %c32_69 = arith.constant 32 : index
    %c0_70 = arith.constant 0 : index
    %84 = vector.load %arg6[%c2_68, %c32_69, %c0_70] : memref<3x64x32xf32, #tpu.memory_space<vmem>>, vector<1x32x32xf32>
    %85 = vector.shape_cast %84 : vector<1x32x32xf32> to vector<32x32xf32>
    %cst_71 = arith.constant dense<0.000000e+00> : vector<160x32xf32>
    %86 = tpu.matmul %80, %85, %cst_71 {dimension_numbers = #tpu.dot_dimension_numbers<[1], [0], [0], [1], [0, 0, 1, 1], [], []>} : vector<160x32xf32>, vector<32x32xf32>, vector<160x32xf32> -> vector<160x32xf32>
    %87 = arith.addf %83, %86 : vector<160x32xf32>
    %c2_72 = arith.constant 2 : index
    %c0_73 = arith.constant 0 : index
    %c0_74 = arith.constant 0 : index
    %88 = vector.load %arg7[%c2_72, %c0_73, %c0_74] : memref<3x1x32xf32, #tpu.memory_space<vmem>>, vector<1x1x32xf32>
    %89 = vector.shape_cast %88 : vector<1x1x32xf32> to vector<1x32xf32>
    %90 = vector.broadcast %89 : vector<1x32xf32> to vector<160x32xf32>
    %91 = arith.addf %87, %90 : vector<160x32xf32>
    %cst_75 = arith.constant 0.000000e+00 : f32
    %92 = vector.broadcast %cst_75 : f32 to vector<160x32xf32>
    %93 = arith.maximumf %91, %92 : vector<160x32xf32>
    %c2_76 = arith.constant 2 : index
    %c0_77 = arith.constant 0 : index
    %c0_78 = arith.constant 0 : index
    %94 = vector.load %arg8[%c2_76, %c0_77, %c0_78] : memref<3x32x32xf32, #tpu.memory_space<vmem>>, vector<1x32x32xf32>
    %95 = vector.shape_cast %94 : vector<1x32x32xf32> to vector<32x32xf32>
    %cst_79 = arith.constant dense<0.000000e+00> : vector<160x32xf32>
    %96 = tpu.matmul %93, %95, %cst_79 {dimension_numbers = #tpu.dot_dimension_numbers<[1], [0], [0], [1], [0, 0, 1, 1], [], []>} : vector<160x32xf32>, vector<32x32xf32>, vector<160x32xf32> -> vector<160x32xf32>
    %c2_80 = arith.constant 2 : index
    %c0_81 = arith.constant 0 : index
    %c0_82 = arith.constant 0 : index
    %97 = vector.load %arg9[%c2_80, %c0_81, %c0_82] : memref<3x1x32xf32, #tpu.memory_space<vmem>>, vector<1x1x32xf32>
    %98 = vector.shape_cast %97 : vector<1x1x32xf32> to vector<1x32xf32>
    %99 = vector.broadcast %98 : vector<1x32xf32> to vector<160x32xf32>
    %100 = arith.addf %96, %99 : vector<160x32xf32>
    %c2_83 = arith.constant 2 : index
    %c0_84 = arith.constant 0 : index
    %c0_85 = arith.constant 0 : index
    %101 = vector.load %arg10[%c2_83, %c0_84, %c0_85] : memref<3x64x32xf32, #tpu.memory_space<vmem>>, vector<1x32x32xf32>
    %102 = vector.shape_cast %101 : vector<1x32x32xf32> to vector<32x32xf32>
    %cst_86 = arith.constant dense<0.000000e+00> : vector<160x32xf32>
    %103 = tpu.matmul %70, %102, %cst_86 {dimension_numbers = #tpu.dot_dimension_numbers<[1], [0], [0], [1], [0, 0, 1, 1], [], []>} : vector<160x32xf32>, vector<32x32xf32>, vector<160x32xf32> -> vector<160x32xf32>
    %c2_87 = arith.constant 2 : index
    %c32_88 = arith.constant 32 : index
    %c0_89 = arith.constant 0 : index
    %104 = vector.load %arg10[%c2_87, %c32_88, %c0_89] : memref<3x64x32xf32, #tpu.memory_space<vmem>>, vector<1x32x32xf32>
    %105 = vector.shape_cast %104 : vector<1x32x32xf32> to vector<32x32xf32>
    %cst_90 = arith.constant dense<0.000000e+00> : vector<160x32xf32>
    %106 = tpu.matmul %76, %105, %cst_90 {dimension_numbers = #tpu.dot_dimension_numbers<[1], [0], [0], [1], [0, 0, 1, 1], [], []>} : vector<160x32xf32>, vector<32x32xf32>, vector<160x32xf32> -> vector<160x32xf32>
    %107 = arith.addf %103, %106 : vector<160x32xf32>
    %108 = arith.addf %107, %100 : vector<160x32xf32>
    %c0_91 = arith.constant 0 : index
    %c0_92 = arith.constant 0 : index
    %109 = vector.load %arg11[%c0_91, %c0_92] : memref<32x128xf32, #tpu.memory_space<vmem>>, vector<32x128xf32>
    %cst_93 = arith.constant dense<0.000000e+00> : vector<160x128xf32>
    %110 = tpu.matmul %108, %109, %cst_93 {dimension_numbers = #tpu.dot_dimension_numbers<[1], [0], [0], [1], [0, 0, 1, 1], [], []>} : vector<160x32xf32>, vector<32x128xf32>, vector<160x128xf32> -> vector<160x128xf32>
    %c0_94 = arith.constant 0 : index
    %c0_95 = arith.constant 0 : index
    %111 = vector.load %arg12[%c0_94, %c0_95] : memref<1x128xf32, #tpu.memory_space<vmem>>, vector<1x128xf32>
    %112 = vector.broadcast %111 : vector<1x128xf32> to vector<160x128xf32>
    %113 = arith.addf %110, %112 : vector<160x128xf32>
    %c0_96 = arith.constant 0 : index
    %c0_97 = arith.constant 0 : index
    %c0_98 = arith.constant 0 : index
    %114 = vector.load %arg13[%c0_96, %c0_97, %c0_98] : memref<1x160x128xf32, #tpu.memory_space<vmem>>, vector<1x160x128xf32>
    %115 = vector.shape_cast %114 : vector<1x160x128xf32> to vector<160x128xf32>
    %116 = vector.shape_cast %113 : vector<160x128xf32> to vector<1x160x128xf32>
    tpu.vector_store %arg13[%c0_96, %c0_97, %c0_98], %116 {strides = array<i32>} : memref<1x160x128xf32, #tpu.memory_space<vmem>>, vector<1x160x128xf32>,
    %117 = arith.truncf %113 : vector<160x128xf32> to vector<160x128xbf16>
    %cst_99 = arith.constant dense<0.000000e+00> : vector<128x128xf32>
    %118 = tpu.matmul %3, %117, %cst_99 {dimension_numbers = #tpu.dot_dimension_numbers<[0], [0], [1], [1], [0, 1, 1, 1], [], []>} : vector<160x128xbf16>, vector<160x128xbf16>, vector<128x128xf32> -> vector<128x128xf32>
    %119 = vector.broadcast %5 : vector<128x1xf32> to vector<128x128xf32>
    %120 = arith.mulf %118, %119 : vector<128x128xf32>
    %c0_100 = arith.constant 0 : index
    %c0_101 = arith.constant 0 : index
    %c0_102 = arith.constant 0 : index
    %121 = vector.load %arg14[%c0_100, %c0_101, %c0_102] : memref<1x128x128xf32, #tpu.memory_space<vmem>>, vector<1x128x128xf32>
    %122 = vector.shape_cast %121 : vector<1x128x128xf32> to vector<128x128xf32>
    %123 = vector.shape_cast %120 : vector<128x128xf32> to vector<1x128x128xf32>
    tpu.vector_store %arg14[%c0_100, %c0_101, %c0_102], %123 {strides = array<i32>} : memref<1x128x128xf32, #tpu.memory_space<vmem>>, vector<1x128x128xf32>,
    return
  }
  func.func @transform_0(%arg0: i32) -> (i32, i32, i32) {
    %c0_i32 = arith.constant 0 : i32
    %c0_i32_0 = arith.constant 0 : i32
    %c0_i32_1 = arith.constant 0 : i32
    return %arg0, %c0_i32, %c0_i32_0 : i32, i32, i32
  }
  func.func @transform_1(%arg0: i32) -> (i32, i32, i32) {
    %c0_i32 = arith.constant 0 : i32
    %c0_i32_0 = arith.constant 0 : i32
    %c0_i32_1 = arith.constant 0 : i32
    return %arg0, %c0_i32, %c0_i32_0 : i32, i32, i32
  }
  func.func @transform_2(%arg0: i32) -> (i32, i32, i32) {
    %c0_i32 = arith.constant 0 : i32
    %c0_i32_0 = arith.constant 0 : i32
    %c0_i32_1 = arith.constant 0 : i32
    return %arg0, %c0_i32, %c0_i32_0 : i32, i32, i32
  }
  func.func @transform_3(%arg0: i32) -> (i32, i32) {
    %c0_i32 = arith.constant 0 : i32
    %c0_i32_0 = arith.constant 0 : i32
    %c0_i32_1 = arith.constant 0 : i32
    return %c0_i32, %c0_i32_0 : i32, i32
  }
  func.func @transform_4(%arg0: i32) -> (i32, i32) {
    %c0_i32 = arith.constant 0 : i32
    %c0_i32_0 = arith.constant 0 : i32
    %c0_i32_1 = arith.constant 0 : i32
    return %c0_i32, %c0_i32_0 : i32, i32
  }
  func.func @transform_5(%arg0: i32) -> (i32, i32, i32) {
    %c0_i32 = arith.constant 0 : i32
    %c0_i32_0 = arith.constant 0 : i32
    %c0_i32_1 = arith.constant 0 : i32
    %c0_i32_2 = arith.constant 0 : i32
    return %c0_i32, %c0_i32_0, %c0_i32_1 : i32, i32, i32
  }
  func.func @transform_6(%arg0: i32) -> (i32, i32, i32) {
    %c0_i32 = arith.constant 0 : i32
    %c0_i32_0 = arith.constant 0 : i32
    %c0_i32_1 = arith.constant 0 : i32
    %c0_i32_2 = arith.constant 0 : i32
    return %c0_i32, %c0_i32_0, %c0_i32_1 : i32, i32, i32
  }
  func.func @transform_7(%arg0: i32) -> (i32, i32, i32) {
    %c0_i32 = arith.constant 0 : i32
    %c0_i32_0 = arith.constant 0 : i32
    %c0_i32_1 = arith.constant 0 : i32
    %c0_i32_2 = arith.constant 0 : i32
    return %c0_i32, %c0_i32_0, %c0_i32_1 : i32, i32, i32
  }
  func.func @transform_8(%arg0: i32) -> (i32, i32, i32) {
    %c0_i32 = arith.constant 0 : i32
    %c0_i32_0 = arith.constant 0 : i32
    %c0_i32_1 = arith.constant 0 : i32
    %c0_i32_2 = arith.constant 0 : i32
    return %c0_i32, %c0_i32_0, %c0_i32_1 : i32, i32, i32
  }
  func.func @transform_9(%arg0: i32) -> (i32, i32, i32) {
    %c0_i32 = arith.constant 0 : i32
    %c0_i32_0 = arith.constant 0 : i32
    %c0_i32_1 = arith.constant 0 : i32
    %c0_i32_2 = arith.constant 0 : i32
    return %c0_i32, %c0_i32_0, %c0_i32_1 : i32, i32, i32
  }
  func.func @transform_10(%arg0: i32) -> (i32, i32) {
    %c0_i32 = arith.constant 0 : i32
    %c0_i32_0 = arith.constant 0 : i32
    %c0_i32_1 = arith.constant 0 : i32
    return %c0_i32, %c0_i32_0 : i32, i32
  }
  func.func @transform_11(%arg0: i32) -> (i32, i32) {
    %c0_i32 = arith.constant 0 : i32
    %c0_i32_0 = arith.constant 0 : i32
    %c0_i32_1 = arith.constant 0 : i32
    return %c0_i32, %c0_i32_0 : i32, i32
  }
  func.func @transform_12(%arg0: i32) -> (i32, i32, i32) {
    %c0_i32 = arith.constant 0 : i32
    %c0_i32_0 = arith.constant 0 : i32
    %c0_i32_1 = arith.constant 0 : i32
    return %arg0, %c0_i32, %c0_i32_0 : i32, i32, i32
  }
  func.func @transform_13(%arg0: i32) -> (i32, i32, i32) {
    %c0_i32 = arith.constant 0 : i32
    %c0_i32_0 = arith.constant 0 : i32
    %c0_i32_1 = arith.constant 0 : i32
    return %arg0, %c0_i32, %c0_i32_0 : i32, i32, i32
  }
}

</mosaic_0001>

<llo_original>
// kernel: patch_encoder_pallas.1
$region0: #{patch_encoder_pallas.1}
  #allocation0 [shape = 'u32[]', space=smem, size = 0x4, offset = 0x4, fixed_abs, tag = 'smem constant byte address 0x4 - core index']
  #allocation1 [shape = 'u32[144,128]{1,0:T(1,128)}', space=vmem, size = 0x12000, scoped, tag = 'internal scratch']
  %s0 = inlined_call_operand.vmem [shape: f32[2,160,4], index: 0, kind: input, shape index: {}]
  %s1 = inlined_call_operand.vmem [shape: bf16[2,160,128], index: 1, kind: input, shape index: {}]
  %s2 = inlined_call_operand.vmem [shape: f32[2,128,1], index: 2, kind: input, shape index: {}]
  %s3 = inlined_call_operand.vmem [shape: f32[4,64], index: 3, kind: input, shape index: {}]
  %s4 = inlined_call_operand.vmem [shape: f32[1,64], index: 4, kind: input, shape index: {}]
  %s5 = inlined_call_operand.vmem [shape: f32[3,64,32], index: 5, kind: input, shape index: {}]
  %s6 = inlined_call_operand.vmem [shape: f32[3,1,32], index: 6, kind: input, shape index: {}]
  %s7 = inlined_call_operand.vmem [shape: f32[3,32,32], index: 7, kind: input, shape index: {}]
  %s8 = inlined_call_operand.vmem [shape: f32[3,1,32], index: 8, kind: input, shape index: {}]
  %s9 = inlined_call_operand.vmem [shape: f32[3,64,32], index: 9, kind: input, shape index: {}]
  %s10 = inlined_call_operand.vmem [shape: f32[32,128], index: 10, kind: input, shape index: {}]
  %s11 = inlined_call_operand.vmem [shape: f32[1,128], index: 11, kind: input, shape index: {}]
  %s12 = inlined_call_operand.vmem [shape: f32[2,160,128], index: 12, kind: output, shape index: {0}]
  %s13 = inlined_call_operand.vmem [shape: f32[2,128,128], index: 13, kind: output, shape index: {1}]
  %14 = xla_tuple %s12, %s13
  %s15 = sld [smem:[#allocation0]]
  $region89: #{patch_encoder_pallas.1} parent=0
    _
  %s17 = ssub.s32 1, %s15
  %s18 = scalar_select 0, %s17, %s15
  loop: start=0, step=1, limit=4
  $region2: #{patch_encoder_pallas.1} parent=0 // loop_pre_header
    _
  $region3: #{patch_encoder_pallas.1} parent=0 // loop_header
    %s20 = sphi 0, %s24
    %p21 = scmp.ge.s32.totalorder %s20, 4
    %s30 = sphi 0, %s32
    %s33 = sphi 0, %s30
    %s34 = sphi 0, %s33
    %s50 = sphi 0, %s34
    %s56 = sphi 0, %s58
    %s59 = sphi 0, %s56
    %s60 = sphi 0, %s59
    %s76 = sphi 0, %s60
    %s82 = sphi 0, %s84
    %s85 = sphi 0, %s82
    %s86 = sphi 0, %s85
    %s102 = sphi 0, %s86
    %s106 = sphi 0, %s106
    %s108 = sphi 0, %s106
    %s109 = sphi 0, %s108
    %s123 = sphi 0, %s109
    %s127 = sphi 0, %s127
    %s129 = sphi 0, %s127
    %s130 = sphi 0, %s129
    %s144 = sphi 0, %s130
    %s148 = sphi 0, %s148
    %s150 = sphi 0, %s148
    %s151 = sphi 0, %s150
    %s165 = sphi 0, %s151
    %s169 = sphi 0, %s169
    %s171 = sphi 0, %s169
    %s172 = sphi 0, %s171
    %s186 = sphi 0, %s172
    %s190 = sphi 0, %s190
    %s192 = sphi 0, %s190
    %s193 = sphi 0, %s192
    %s207 = sphi 0, %s193
    %s211 = sphi 0, %s211
    %s213 = sphi 0, %s211
    %s214 = sphi 0, %s213
    %s228 = sphi 0, %s214
    %s232 = sphi 0, %s232
    %s234 = sphi 0, %s232
    %s235 = sphi 0, %s234
    %s249 = sphi 0, %s235
    %s253 = sphi 0, %s253
    %s255 = sphi 0, %s253
    %s256 = sphi 0, %s255
    %s270 = sphi 0, %s256
    %s274 = sphi 0, %s274
    %s276 = sphi 0, %s274
    %s277 = sphi 0, %s276
    %s291 = sphi 0, %s277
    %s297 = sphi 0, %s299
    %s300 = sphi 0, %s297
    %s301 = sphi 0, %s300
    %s317 = sphi 0, %s301
    %s323 = sphi 0, %s325
    %s326 = sphi 0, %s323
    %s327 = sphi 0, %s326
    %s343 = sphi 0, %s327
  $region4: #{patch_encoder_pallas.1} parent=0 // loop_header_branch
    %23 = sbr.rel (%p21) target = $region8
  $region5: #{patch_encoder_pallas.1} parent=0 // loop_body
    %s25 = ssub.s32 %s20, 1
    %s26 = ssub.s32 %s20, 2
    %s27 = sadd.s32 %s20, 1
    %s28 = ssub.s32 %s20, %s27
    %p29 = scmp.eq.s32.totalorder %s28, 0
    %s31 = sadd.s32 %s30, 1
    %s32 = scalar_select %p29, %s30, %s31
    %p35 = pneg %p29
    %p36 = scmp.eq.s32.totalorder %s20, 1
    %p37 = por %p35, %p36
    %p38 = scmp.ne.s32.totalorder %s30, %s33
    %p39 = scmp.eq.s32.totalorder %s20, 0
    %p40 = por %p38, %p39
    %p41 = scmp.ne.s32.totalorder %s30, %s33
    %p42 = scmp.eq.s32.totalorder %s25, 1
    %p43 = por %p41, %p42
    %p44 = scmp.ne.s32.totalorder %s33, %s34
    %p45 = scmp.eq.s32.totalorder %s25, 0
    %p46 = por %p44, %p45
    %p47 = scmp.ne.s32.totalorder %s33, %s34
    %p48 = scmp.eq.s32.totalorder %s26, 1
    %p49 = por %p47, %p48
    %p51 = scmp.ne.s32.totalorder %s34, %s50
    %p52 = scmp.eq.s32.totalorder %s26, 0
    %p53 = por %p51, %p52
    %s54 = ssub.s32 %s20, %s27
    %p55 = scmp.eq.s32.totalorder %s54, 0
    %s57 = sadd.s32 %s56, 1
    %s58 = scalar_select %p55, %s56, %s57
    %p61 = pneg %p55
    %p62 = scmp.eq.s32.totalorder %s20, 1
    %p63 = por %p61, %p62
    %p64 = scmp.ne.s32.totalorder %s56, %s59
    %p65 = scmp.eq.s32.totalorder %s20, 0
    %p66 = por %p64, %p65
    %p67 = scmp.ne.s32.totalorder %s56, %s59
    %p68 = scmp.eq.s32.totalorder %s25, 1
    %p69 = por %p67, %p68
    %p70 = scmp.ne.s32.totalorder %s59, %s60
    %p71 = scmp.eq.s32.totalorder %s25, 0
    %p72 = por %p70, %p71
    %p73 = scmp.ne.s32.totalorder %s59, %s60
    %p74 = scmp.eq.s32.totalorder %s26, 1
    %p75 = por %p73, %p74
    %p77 = scmp.ne.s32.totalorder %s60, %s76
    %p78 = scmp.eq.s32.totalorder %s26, 0
    %p79 = por %p77, %p78
    %s80 = ssub.s32 %s20, %s27
    %p81 = scmp.eq.s32.totalorder %s80, 0
    %s83 = sadd.s32 %s82, 1
    %s84 = scalar_select %p81, %s82, %s83
    %p87 = pneg %p81
    %p88 = scmp.eq.s32.totalorder %s20, 1
    %p89 = por %p87, %p88
    %p90 = scmp.ne.s32.totalorder %s82, %s85
    %p91 = scmp.eq.s32.totalorder %s20, 0
    %p92 = por %p90, %p91
    %p93 = scmp.ne.s32.totalorder %s82, %s85
    %p94 = scmp.eq.s32.totalorder %s25, 1
    %p95 = por %p93, %p94
    %p96 = scmp.ne.s32.totalorder %s85, %s86
    %p97 = scmp.eq.s32.totalorder %s25, 0
    %p98 = por %p96, %p97
    %p99 = scmp.ne.s32.totalorder %s85, %s86
    %p100 = scmp.eq.s32.totalorder %s26, 1
    %p101 = por %p99, %p100
    %p103 = scmp.ne.s32.totalorder %s86, %s102
    %p104 = scmp.eq.s32.totalorder %s26, 0
    %p105 = por %p103, %p104
    %s107 = sadd.s32 %s106, 1
    %p110 = scmp.eq.s32.totalorder %s20, 1
    %p111 = scmp.ne.s32.totalorder %s106, %s108
    %p112 = scmp.eq.s32.totalorder %s20, 0
    %p113 = por %p111, %p112
    %p114 = scmp.ne.s32.totalorder %s106, %s108
    %p115 = scmp.eq.s32.totalorder %s25, 1
    %p116 = por %p114, %p115
    %p117 = scmp.ne.s32.totalorder %s108, %s109
    %p118 = scmp.eq.s32.totalorder %s25, 0
    %p119 = por %p117, %p118
    %p120 = scmp.ne.s32.totalorder %s108, %s109
    %p121 = scmp.eq.s32.totalorder %s26, 1
    %p122 = por %p120, %p121
    %p124 = scmp.ne.s32.totalorder %s109, %s123
    %p125 = scmp.eq.s32.totalorder %s26, 0
    %p126 = por %p124, %p125
    %s128 = sadd.s32 %s127, 1
    %p131 = scmp.eq.s32.totalorder %s20, 1
    %p132 = scmp.ne.s32.totalorder %s127, %s129
    %p133 = scmp.eq.s32.totalorder %s20, 0
    %p134 = por %p132, %p133
    %p135 = scmp.ne.s32.totalorder %s127, %s129
    %p136 = scmp.eq.s32.totalorder %s25, 1
    %p137 = por %p135, %p136
    %p138 = scmp.ne.s32.totalorder %s129, %s130
    %p139 = scmp.eq.s32.totalorder %s25, 0
    %p140 = por %p138, %p139
    %p141 = scmp.ne.s32.totalorder %s129, %s130
    %p142 = scmp.eq.s32.totalorder %s26, 1
    %p143 = por %p141, %p142
    %p145 = scmp.ne.s32.totalorder %s130, %s144
    %p146 = scmp.eq.s32.totalorder %s26, 0
    %p147 = por %p145, %p146
    %s149 = sadd.s32 %s148, 1
    %p152 = scmp.eq.s32.totalorder %s20, 1
    %p153 = scmp.ne.s32.totalorder %s148, %s150
    %p154 = scmp.eq.s32.totalorder %s20, 0
    %p155 = por %p153, %p154
    %p156 = scmp.ne.s32.totalorder %s148, %s150
    %p157 = scmp.eq.s32.totalorder %s25, 1
    %p158 = por %p156, %p157
    %p159 = scmp.ne.s32.totalorder %s150, %s151
    %p160 = scmp.eq.s32.totalorder %s25, 0
    %p161 = por %p159, %p160
    %p162 = scmp.ne.s32.totalorder %s150, %s151
    %p163 = scmp.eq.s32.totalorder %s26, 1
    %p164 = por %p162, %p163
    %p166 = scmp.ne.s32.totalorder %s151, %s165
    %p167 = scmp.eq.s32.totalorder %s26, 0
    %p168 = por %p166, %p167
    %s170 = sadd.s32 %s169, 1
    %p173 = scmp.eq.s32.totalorder %s20, 1
    %p174 = scmp.ne.s32.totalorder %s169, %s171
    %p175 = scmp.eq.s32.totalorder %s20, 0
    %p176 = por %p174, %p175
    %p177 = scmp.ne.s32.totalorder %s169, %s171
    %p178 = scmp.eq.s32.totalorder %s25, 1
    %p179 = por %p177, %p178
    %p180 = scmp.ne.s32.totalorder %s171, %s172
    %p181 = scmp.eq.s32.totalorder %s25, 0
    %p182 = por %p180, %p181
    %p183 = scmp.ne.s32.totalorder %s171, %s172
    %p184 = scmp.eq.s32.totalorder %s26, 1
    %p185 = por %p183, %p184
    %p187 = scmp.ne.s32.totalorder %s172, %s186
    %p188 = scmp.eq.s32.totalorder %s26, 0
    %p189 = por %p187, %p188
    %s191 = sadd.s32 %s190, 1
    %p194 = scmp.eq.s32.totalorder %s20, 1
    %p195 = scmp.ne.s32.totalorder %s190, %s192
    %p196 = scmp.eq.s32.totalorder %s20, 0
    %p197 = por %p195, %p196
    %p198 = scmp.ne.s32.totalorder %s190, %s192
    %p199 = scmp.eq.s32.totalorder %s25, 1
    %p200 = por %p198, %p199
    %p201 = scmp.ne.s32.totalorder %s192, %s193
    %p202 = scmp.eq.s32.totalorder %s25, 0
    %p203 = por %p201, %p202
    %p204 = scmp.ne.s32.totalorder %s192, %s193
    %p205 = scmp.eq.s32.totalorder %s26, 1
    %p206 = por %p204, %p205
    %p208 = scmp.ne.s32.totalorder %s193, %s207
    %p209 = scmp.eq.s32.totalorder %s26, 0
    %p210 = por %p208, %p209
    %s212 = sadd.s32 %s211, 1
    %p215 = scmp.eq.s32.totalorder %s20, 1
    %p216 = scmp.ne.s32.totalorder %s211, %s213
    %p217 = scmp.eq.s32.totalorder %s20, 0
    %p218 = por %p216, %p217
    %p219 = scmp.ne.s32.totalorder %s211, %s213
    %p220 = scmp.eq.s32.totalorder %s25, 1
    %p221 = por %p219, %p220
    %p222 = scmp.ne.s32.totalorder %s213, %s214
    %p223 = scmp.eq.s32.totalorder %s25, 0
    %p224 = por %p222, %p223
    %p225 = scmp.ne.s32.totalorder %s213, %s214
    %p226 = scmp.eq.s32.totalorder %s26, 1
    %p227 = por %p225, %p226
    %p229 = scmp.ne.s32.totalorder %s214, %s228
    %p230 = scmp.eq.s32.totalorder %s26, 0
    %p231 = por %p229, %p230
    %s233 = sadd.s32 %s232, 1
    %p236 = scmp.eq.s32.totalorder %s20, 1
    %p237 = scmp.ne.s32.totalorder %s232, %s234
    %p238 = scmp.eq.s32.totalorder %s20, 0
    %p239 = por %p237, %p238
    %p240 = scmp.ne.s32.totalorder %s232, %s234
    %p241 = scmp.eq.s32.totalorder %s25, 1
    %p242 = por %p240, %p241
    %p243 = scmp.ne.s32.totalorder %s234, %s235
    %p244 = scmp.eq.s32.totalorder %s25, 0
    %p245 = por %p243, %p244
    %p246 = scmp.ne.s32.totalorder %s234, %s235
    %p247 = scmp.eq.s32.totalorder %s26, 1
    %p248 = por %p246, %p247
    %p250 = scmp.ne.s32.totalorder %s235, %s249
    %p251 = scmp.eq.s32.totalorder %s26, 0
    %p252 = por %p250, %p251
    %s254 = sadd.s32 %s253, 1
    %p257 = scmp.eq.s32.totalorder %s20, 1
    %p258 = scmp.ne.s32.totalorder %s253, %s255
    %p259 = scmp.eq.s32.totalorder %s20, 0
    %p260 = por %p258, %p259
    %p261 = scmp.ne.s32.totalorder %s253, %s255
    %p262 = scmp.eq.s32.totalorder %s25, 1
    %p263 = por %p261, %p262
    %p264 = scmp.ne.s32.totalorder %s255, %s256
    %p265 = scmp.eq.s32.totalorder %s25, 0
    %p266 = por %p264, %p265
    %p267 = scmp.ne.s32.totalorder %s255, %s256
    %p268 = scmp.eq.s32.totalorder %s26, 1
    %p269 = por %p267, %p268
    %p271 = scmp.ne.s32.totalorder %s256, %s270
    %p272 = scmp.eq.s32.totalorder %s26, 0
    %p273 = por %p271, %p272
    %s275 = sadd.s32 %s274, 1
    %p278 = scmp.eq.s32.totalorder %s20, 1
    %p279 = scmp.ne.s32.totalorder %s274, %s276
    %p280 = scmp.eq.s32.totalorder %s20, 0
    %p281 = por %p279, %p280
    %p282 = scmp.ne.s32.totalorder %s274, %s276
    %p283 = scmp.eq.s32.totalorder %s25, 1
    %p284 = por %p282, %p283
    %p285 = scmp.ne.s32.totalorder %s276, %s277
    %p286 = scmp.eq.s32.totalorder %s25, 0
    %p287 = por %p285, %p286
    %p288 = scmp.ne.s32.totalorder %s276, %s277
    %p289 = scmp.eq.s32.totalorder %s26, 1
    %p290 = por %p288, %p289
    %p292 = scmp.ne.s32.totalorder %s277, %s291
    %p293 = scmp.eq.s32.totalorder %s26, 0
    %p294 = por %p292, %p293
    %s295 = ssub.s32 %s20, %s27
    %p296 = scmp.eq.s32.totalorder %s295, 0
    %s298 = sadd.s32 %s297, 1
    %s299 = scalar_select %p296, %s297, %s298
    %p302 = pneg %p296
    %p303 = scmp.eq.s32.totalorder %s20, 1
    %p304 = por %p302, %p303
    %p305 = scmp.ne.s32.totalorder %s297, %s300
    %p306 = scmp.eq.s32.totalorder %s20, 0
    %p307 = por %p305, %p306
    %p308 = scmp.ne.s32.totalorder %s297, %s300
    %p309 = scmp.eq.s32.totalorder %s25, 1
    %p310 = por %p308, %p309
    %p311 = scmp.ne.s32.totalorder %s300, %s301
    %p312 = scmp.eq.s32.totalorder %s25, 0
    %p313 = por %p311, %p312
    %p314 = scmp.ne.s32.totalorder %s300, %s301
    %p315 = scmp.eq.s32.totalorder %s26, 1
    %p316 = por %p314, %p315
    %p318 = scmp.ne.s32.totalorder %s301, %s317
    %p319 = scmp.eq.s32.totalorder %s26, 0
    %p320 = por %p318, %p319
    %s321 = ssub.s32 %s20, %s27
    %p322 = scmp.eq.s32.totalorder %s321, 0
    %s324 = sadd.s32 %s323, 1
    %s325 = scalar_select %p322, %s323, %s324
    %p328 = pneg %p322
    %p329 = scmp.eq.s32.totalorder %s20, 1
    %p330 = por %p328, %p329
    %p331 = scmp.ne.s32.totalorder %s323, %s326
    %p332 = scmp.eq.s32.totalorder %s20, 0
    %p333 = por %p331, %p332
    %p334 = scmp.ne.s32.totalorder %s323, %s326
    %p335 = scmp.eq.s32.totalorder %s25, 1
    %p336 = por %p334, %p335
    %p337 = scmp.ne.s32.totalorder %s326, %s327
    %p338 = scmp.eq.s32.totalorder %s25, 0
    %p339 = por %p337, %p338
    %p340 = scmp.ne.s32.totalorder %s326, %s327
    %p341 = scmp.eq.s32.totalorder %s26, 1
    %p342 = por %p340, %p341
    %p344 = scmp.ne.s32.totalorder %s327, %s343
    %p345 = scmp.eq.s32.totalorder %s26, 0
    %p346 = por %p344, %p345
    %p347 = scmp.le.s32.totalorder 1, %s20
    %p348 = scmp.lt.s32.totalorder %s20, 3
    %p349 = pnand %p347, %p348
    %p350 = pneg %p349
    // Predicated region
    $region9: #{patch_encoder_pallas.1} parent=5 // pred_check
      _
    $region10: #{patch_encoder_pallas.1} parent=5 // pred_check_branch
      %352 = sbr.rel (%p349) target = $region12
    $region11: #{patch_encoder_pallas.1} parent=5 // pred_region
      %s353 = ssub.s32 %s20, 1
      // Predicated region
      $region13: #{patch_encoder_pallas.1} parent=11 // pred_check
        %p354 = pneg %p119
      $region14: #{patch_encoder_pallas.1} parent=11 // pred_check_branch
        %356 = sbr.rel (%p354) target = $region16
      $region15: #{patch_encoder_pallas.1} parent=11 // pred_region
        _
      $region16: #{patch_encoder_pallas.1} parent=11 // pred_fallthru
        _
      // Predicated region
      $region17: #{patch_encoder_pallas.1} parent=11 // pred_check
        %p357 = pneg %p140
      $region18: #{patch_encoder_pallas.1} parent=11 // pred_check_branch
        %359 = sbr.rel (%p357) target = $region20
      $region19: #{patch_encoder_pallas.1} parent=11 // pred_region
        _
      $region20: #{patch_encoder_pallas.1} parent=11 // pred_fallthru
        _
      // Predicated region
      $region21: #{patch_encoder_pallas.1} parent=11 // pred_check
        %p360 = pneg %p161
      $region22: #{patch_encoder_pallas.1} parent=11 // pred_check_branch
        %362 = sbr.rel (%p360) target = $region24
      $region23: #{patch_encoder_pallas.1} parent=11 // pred_region
        _
      $region24: #{patch_encoder_pallas.1} parent=11 // pred_fallthru
        _
      // Predicated region
      $region25: #{patch_encoder_pallas.1} parent=11 // pred_check
        %p363 = pneg %p182
      $region26: #{patch_encoder_pallas.1} parent=11 // pred_check_branch
        %365 = sbr.rel (%p363) target = $region28
      $region27: #{patch_encoder_pallas.1} parent=11 // pred_region
        _
      $region28: #{patch_encoder_pallas.1} parent=11 // pred_fallthru
        _
      // Predicated region
      $region29: #{patch_encoder_pallas.1} parent=11 // pred_check
        %p366 = pneg %p203
      $region30: #{patch_encoder_pallas.1} parent=11 // pred_check_branch
        %368 = sbr.rel (%p366) target = $region32
      $region31: #{patch_encoder_pallas.1} parent=11 // pred_region
        _
      $region32: #{patch_encoder_pallas.1} parent=11 // pred_fallthru
        _
      // Predicated region
      $region33: #{patch_encoder_pallas.1} parent=11 // pred_check
        %p369 = pneg %p224
      $region34: #{patch_encoder_pallas.1} parent=11 // pred_check_branch
        %371 = sbr.rel (%p369) target = $region36
      $region35: #{patch_encoder_pallas.1} parent=11 // pred_region
        _
      $region36: #{patch_encoder_pallas.1} parent=11 // pred_fallthru
        _
      // Predicated region
      $region37: #{patch_encoder_pallas.1} parent=11 // pred_check
        %p372 = pneg %p245
      $region38: #{patch_encoder_pallas.1} parent=11 // pred_check_branch
        %374 = sbr.rel (%p372) target = $region40
      $region39: #{patch_encoder_pallas.1} parent=11 // pred_region
        _
      $region40: #{patch_encoder_pallas.1} parent=11 // pred_fallthru
        _
      // Predicated region
      $region41: #{patch_encoder_pallas.1} parent=11 // pred_check
        %p375 = pneg %p266
      $region42: #{patch_encoder_pallas.1} parent=11 // pred_check_branch
        %377 = sbr.rel (%p375) target = $region44
      $region43: #{patch_encoder_pallas.1} parent=11 // pred_region
        _
      $region44: #{patch_encoder_pallas.1} parent=11 // pred_fallthru
        _
      // Predicated region
      $region45: #{patch_encoder_pallas.1} parent=11 // pred_check
        %p378 = pneg %p287
      $region46: #{patch_encoder_pallas.1} parent=11 // pred_check_branch
        %380 = sbr.rel (%p378) target = $region48
      $region47: #{patch_encoder_pallas.1} parent=11 // pred_region
        _
      $region48: #{patch_encoder_pallas.1} parent=11 // pred_fallthru
        _
    $region12: #{patch_encoder_pallas.1} parent=5 // pred_fallthru
      _
    %p381 = scmp.lt.s32.totalorder %s20, 2
    // Predicated region
    $region49: #{patch_encoder_pallas.1} parent=5 // pred_check
      %p382 = pneg %p381
    $region50: #{patch_encoder_pallas.1} parent=5 // pred_check_branch
      %384 = sbr.rel (%p382) target = $region52
    $region51: #{patch_encoder_pallas.1} parent=5 // pred_region
      // Predicated region
      $region53: #{patch_encoder_pallas.1} parent=51 // pred_check
        %p385 = pneg %p40
      $region54: #{patch_encoder_pallas.1} parent=51 // pred_check_branch
        %387 = sbr.rel (%p385) target = $region56
      $region55: #{patch_encoder_pallas.1} parent=51 // pred_region
        %p388 = scmp.lt.s32.totalorder %s20, 1
        %s389 = scalar_select %p388, %s20, 1
        %s390 = smul.addr %s389, 20
        %s391 = smul.addr %s390, 8
        %s392 = scalar_lea.vmem %s0, %s391
      $region56: #{patch_encoder_pallas.1} parent=51 // pred_fallthru
        _
      // Predicated region
      $region57: #{patch_encoder_pallas.1} parent=51 // pred_check
        %p393 = pneg %p66
      $region58: #{patch_encoder_pallas.1} parent=51 // pred_check_branch
        %395 = sbr.rel (%p393) target = $region60
      $region59: #{patch_encoder_pallas.1} parent=51 // pred_region
        %p396 = scmp.lt.s32.totalorder %s20, 1
        %s397 = scalar_select %p396, %s20, 1
        %s398 = smul.addr %s397, 20
        %s399 = smul.addr %s398, 4
        %s400 = scalar_lea.vmem %s1, %s399
      $region60: #{patch_encoder_pallas.1} parent=51 // pred_fallthru
        _
      // Predicated region
      $region61: #{patch_encoder_pallas.1} parent=51 // pred_check
        %p401 = pneg %p92
      $region62: #{patch_encoder_pallas.1} parent=51 // pred_check_branch
        %403 = sbr.rel (%p401) target = $region64
      $region63: #{patch_encoder_pallas.1} parent=51 // pred_region
        %p404 = scmp.lt.s32.totalorder %s20, 1
        %s405 = scalar_select %p404, %s20, 1
        %s406 = smul.addr %s405, 16
        %s407 = smul.addr %s406, 8
        %s408 = scalar_lea.vmem %s2, %s407
      $region64: #{patch_encoder_pallas.1} parent=51 // pred_fallthru
        _
    $region52: #{patch_encoder_pallas.1} parent=5 // pred_fallthru
      _
    %p409 = scmp.le.s32.totalorder 1, %s20
    %p410 = scmp.lt.s32.totalorder %s20, 3
    %p411 = pnand %p409, %p410
    %p412 = pneg %p411
    // Predicated region
    $region65: #{patch_encoder_pallas.1} parent=5 // pred_check
      _
    $region66: #{patch_encoder_pallas.1} parent=5 // pred_check_branch
      %414 = sbr.rel (%p411) target = $region68
    $region67: #{patch_encoder_pallas.1} parent=5 // pred_region
      %s415 = ssub.s32 %s20, 1
      %p416 = scmp.lt.s32.totalorder %s25, 1
      %s417 = scalar_select %p416, %s25, 1
      %s418 = smul.addr %s417, 20
      %s419 = smul.addr %s418, 8
      %s420 = scalar_lea.vmem %s0, %s419
      %p421 = pneg %p46
      %p422 = pneg %p43
      %p423 = scmp.lt.s32.totalorder %s25, 1
      %s424 = scalar_select %p423, %s25, 1
      %s425 = smul.addr %s424, 20
      %s426 = smul.addr %s425, 4
      %s427 = scalar_lea.vmem %s1, %s426
      %p428 = pneg %p72
      %p429 = pneg %p69
      %p430 = scmp.lt.s32.totalorder %s25, 1
      %s431 = scalar_select %p430, %s25, 1
      %s432 = smul.addr %s431, 16
      %s433 = smul.addr %s432, 8
      %s434 = scalar_lea.vmem %s2, %s433
      %p435 = pneg %p98
      %p436 = pneg %p95
      %p437 = pneg %p119
      %p438 = pneg %p116
      %p439 = pneg %p140
      %p440 = pneg %p137
      %p441 = pneg %p161
      %p442 = pneg %p158
      %p443 = pneg %p182
      %p444 = pneg %p179
      %p445 = pneg %p203
      %p446 = pneg %p200
      %p447 = pneg %p224
      %p448 = pneg %p221
      %p449 = pneg %p245
      %p450 = pneg %p242
      %p451 = pneg %p266
      %p452 = pneg %p263
      %p453 = pneg %p287
      %p454 = pneg %p284
      %p455 = pneg %p313
      %p456 = pneg %p310
      %p457 = scmp.lt.s32.totalorder %s25, 1
      %s458 = scalar_select %p457, %s25, 1
      %s459 = smul.addr %s458, 20
      %s460 = smul.addr %s459, 8
      %s461 = scalar_lea.vmem %s12, %s460
      %p462 = pneg %p339
      %p463 = pneg %p336
      %p464 = scmp.lt.s32.totalorder %s25, 1
      %s465 = scalar_select %p464, %s25, 1
      %s466 = smul.addr %s465, 16
      %s467 = smul.addr %s466, 8
      %s468 = scalar_lea.vmem %s13, %s467
      %p469 = scmp.lt.s32.totalorder %s25, 1
      %s470 = scalar_select %p469, %s25, 1
      %s471 = smul.addr %s470, 20
      %s472 = smul.addr %s471, 8
      %s473 = scalar_lea.vmem %s0, %s472
      %p474 = scmp.lt.s32.totalorder %s25, 1
      %s475 = scalar_select %p474, %s25, 1
      %s476 = smul.addr %s475, 20
      %s477 = smul.addr %s476, 4
      %s478 = scalar_lea.vmem %s1, %s477
      %p479 = scmp.lt.s32.totalorder %s25, 1
      %s480 = scalar_select %p479, %s25, 1
      %s481 = smul.addr %s480, 16
      %s482 = smul.addr %s481, 8
      %s483 = scalar_lea.vmem %s2, %s482
      %p484 = scmp.lt.s32.totalorder %s25, 1
      %s485 = scalar_select %p484, %s25, 1
      %s486 = smul.addr %s485, 20
      %s487 = smul.addr %s486, 8
      %s488 = scalar_lea.vmem %s12, %s487
      %p489 = scmp.lt.s32.totalorder %s25, 1
      %s490 = scalar_select %p489, %s25, 1
      %s491 = smul.addr %s490, 16
      %s492 = smul.addr %s491, 8
      %s493 = scalar_lea.vmem %s13, %s492
      %v495 = vld [vmem:[%s473] sm:$0xff]
      %v496 = vld [vmem:[%s473 + $0x8] sm:$0xff]
      %v497 = vld [vmem:[%s473 + $0x10] sm:$0xff]
      %v498 = vld [vmem:[%s473 + $0x18] sm:$0xff]
      %v499 = vld [vmem:[%s473 + $0x20] sm:$0xff]
      %v500 = vld [vmem:[%s473 + $0x28] sm:$0xff]
      %v501 = vld [vmem:[%s473 + $0x30] sm:$0xff]
      %v502 = vld [vmem:[%s473 + $0x38] sm:$0xff]
      %v503 = vld [vmem:[%s473 + $0x40] sm:$0xff]
      %v504 = vld [vmem:[%s473 + $0x48] sm:$0xff]
      %v505 = vld [vmem:[%s473 + $0x50] sm:$0xff]
      %v506 = vld [vmem:[%s473 + $0x58] sm:$0xff]
      %v507 = vld [vmem:[%s473 + $0x60] sm:$0xff]
      %v508 = vld [vmem:[%s473 + $0x68] sm:$0xff]
      %v509 = vld [vmem:[%s473 + $0x70] sm:$0xff]
      %v510 = vld [vmem:[%s473 + $0x78] sm:$0xff]
      %v511 = vld [vmem:[%s473 + $0x80] sm:$0xff]
      %v512 = vld [vmem:[%s473 + $0x88] sm:$0xff]
      %v513 = vld [vmem:[%s473 + $0x90] sm:$0xff]
      %v514 = vld [vmem:[%s473 + $0x98] sm:$0xff]
      %v515 = vld [vmem:[%s478] sm:$0xf]
      %v516 = vld [vmem:[%s478 + $0x4] sm:$0xf]
      %v517 = vld [vmem:[%s478 + $0x8] sm:$0xf]
      %v518 = vld [vmem:[%s478 + $0xc] sm:$0xf]
      %v519 = vld [vmem:[%s478 + $0x10] sm:$0xf]
      %v520 = vld [vmem:[%s478 + $0x14] sm:$0xf]
      %v521 = vld [vmem:[%s478 + $0x18] sm:$0xf]
      %v522 = vld [vmem:[%s478 + $0x1c] sm:$0xf]
      %v523 = vld [vmem:[%s478 + $0x20] sm:$0xf]
      %v524 = vld [vmem:[%s478 + $0x24] sm:$0xf]
      %v525 = vld [vmem:[%s478 + $0x28] sm:$0xf]
      %v526 = vld [vmem:[%s478 + $0x2c] sm:$0xf]
      %v527 = vld [vmem:[%s478 + $0x30] sm:$0xf]
      %v528 = vld [vmem:[%s478 + $0x34] sm:$0xf]
      %v529 = vld [vmem:[%s478 + $0x38] sm:$0xf]
      %v530 = vld [vmem:[%s478 + $0x3c] sm:$0xf]
      %v531 = vld [vmem:[%s478 + $0x40] sm:$0xf]
      %v532 = vld [vmem:[%s478 + $0x44] sm:$0xf]
      %v533 = vld [vmem:[%s478 + $0x48] sm:$0xf]
      %v534 = vld [vmem:[%s478 + $0x4c] sm:$0xf]
      %v535 = vld [vmem:[%s483] sm:$0xff]
      %v536 = vld [vmem:[%s483 + $0x8] sm:$0xff]
      %v537 = vld [vmem:[%s483 + $0x10] sm:$0xff]
      %v538 = vld [vmem:[%s483 + $0x18] sm:$0xff]
      %v539 = vld [vmem:[%s483 + $0x20] sm:$0xff]
      %v540 = vld [vmem:[%s483 + $0x28] sm:$0xff]
      %v541 = vld [vmem:[%s483 + $0x30] sm:$0xff]
      %v542 = vld [vmem:[%s483 + $0x38] sm:$0xff]
      %v543 = vld [vmem:[%s483 + $0x40] sm:$0xff]
      %v544 = vld [vmem:[%s483 + $0x48] sm:$0xff]
      %v545 = vld [vmem:[%s483 + $0x50] sm:$0xff]
      %v546 = vld [vmem:[%s483 + $0x58] sm:$0xff]
      %v547 = vld [vmem:[%s483 + $0x60] sm:$0xff]
      %v548 = vld [vmem:[%s483 + $0x68] sm:$0xff]
      %v549 = vld [vmem:[%s483 + $0x70] sm:$0xff]
      %v550 = vld [vmem:[%s483 + $0x78] sm:$0xff]
      %v551 = vld [vmem:[%s3] sm:$0xf]
      %v552 = vld [vmem:[%s4] sm:$0x1]
      %v554 = vlaneseq
      %v555 = vshrl.u32 %v554, 7
      %v556 = vsub.s32 0, %v555
      %v557 = vrot.slane %v552, %v556
      %vm559 = vcmask 31744
      %v561 = vsel %vm559, %v495, 0
      %v564 = vsel %vm559, %v496, 0
      %v567 = vsel %vm559, %v497, 0
      %v570 = vsel %vm559, %v498, 0
      %v573 = vsel %vm559, %v499, 0
      %v576 = vsel %vm559, %v500, 0
      %v579 = vsel %vm559, %v501, 0
      %v582 = vsel %vm559, %v502, 0
      %v585 = vsel %vm559, %v503, 0
      %v588 = vsel %vm559, %v504, 0
      %v591 = vsel %vm559, %v505, 0
      %v594 = vsel %vm559, %v506, 0
      %v597 = vsel %vm559, %v507, 0
      %v600 = vsel %vm559, %v508, 0
      %v603 = vsel %vm559, %v509, 0
      %v606 = vsel %vm559, %v510, 0
      %v609 = vsel %vm559, %v511, 0
      %v612 = vsel %vm559, %v512, 0
      %v615 = vsel %vm559, %v513, 0
      %v618 = vsel %vm559, %v514, 0
      %vm620 = vcmask 1043456
      %v622 = vsel %vm620, %v551, 0
      %624 = vmatprep.subr.mxu0 0.0
      %625 = vmatpush1.msra.mxu0 %v622
      %626 = vmatprep.subr.mxu0 0.0
      %627 = vmatpush1.msra.mxu0 0.0
      %628 = vmatprep.subr.mxu0 0.0
      %629 = vmatpush1.msra.mxu0 0.0
      %630 = vmatprep.subr.mxu0 0.0
      %631 = vmatpush1.msra.mxu0 0.0
      %632 = vmatprep.subr.mxu0 0.0
      %633 = vmatpush1.msra.mxu0 0.0
      %634 = vmatprep.subr.mxu0 0.0
      %635 = vmatpush1.msra.mxu0 0.0
      %636 = vmatprep.subr.mxu0 0.0
      %637 = vmatpush1.msra.mxu0 0.0
      %638 = vmatprep.subr.mxu0 0.0
      %639 = vmatpush1.msra.mxu0 0.0
      %640 = vmatprep.subr.mxu0 0.0
      %641 = vmatpush1.msra.mxu0 0.0
      %642 = vmatprep.subr.mxu0 0.0
      %643 = vmatpush1.msra.mxu0 0.0
      %644 = vmatprep.subr.mxu0 0.0
      %645 = vmatpush1.msra.mxu0 0.0
      %646 = vmatprep.subr.mxu0 0.0
      %647 = vmatpush1.msra.mxu0 0.0
      %648 = vmatprep.subr.mxu0 0.0
      %649 = vmatpush1.msra.mxu0 0.0
      %650 = vmatprep.subr.mxu0 0.0
      %651 = vmatpush1.msra.mxu0 0.0
      %652 = vmatprep.subr.mxu0 0.0
      %653 = vmatpush1.msra.mxu0 0.0
      %654 = vmatprep.subr.mxu0 0.0
      %655 = vmatpush1.msra.mxu0 0.0
      %656 = vmatprep.subr.mxu0 0.0
      %657 = vmatpush1.msra.mxu0 0.0
      %658 = vmatprep.subr.mxu0 0.0
      %659 = vmatpush1.msra.mxu0 0.0
      %660 = vmatprep.subr.mxu0 0.0
      %661 = vmatpush1.msra.mxu0 0.0
      %662 = vmatprep.subr.mxu0 0.0
      %663 = vmatpush1.msra.mxu0 0.0
      %664 = vmatprep.subr.mxu0 0.0
      %665 = vmatpush1.msra.mxu0 0.0
      %666 = vmatprep.subr.mxu0 0.0
      %667 = vmatpush1.msra.mxu0 0.0
      %668 = vmatprep.subr.mxu0 0.0
      %669 = vmatpush1.msra.mxu0 0.0
      %670 = vmatprep.subr.mxu0 0.0
      %671 = vmatpush1.msra.mxu0 0.0
      %672 = vmatprep.subr.mxu0 0.0
      %673 = vmatpush1.msra.mxu0 0.0
      %674 = vmatprep.subr.mxu0 0.0
      %675 = vmatpush1.msra.mxu0 0.0
      %676 = vmatprep.subr.mxu0 0.0
      %677 = vmatpush1.msra.mxu0 0.0
      %678 = vmatprep.subr.mxu0 0.0
      %679 = vmatpush1.msra.mxu0 0.0
      %680 = vmatprep.subr.mxu0 0.0
      %681 = vmatpush1.msra.mxu0 0.0
      %682 = vmatprep.subr.mxu0 0.0
      %683 = vmatpush1.msra.mxu0 0.0
      %684 = vmatprep.subr.mxu0 0.0
      %685 = vmatpush1.msra.mxu0 0.0
      %686 = vmatprep.subr.mxu0 0.0
      %687 = vmatpush1.msra.mxu0 0.0
      %688 = vmatprep.mubr.f32.mxu0 0.0
      %689 = vmatmul.mubr.f32.gmra.mrb[0].mxu0 %v561
      %v690 = vpop.f32.mrb[0].mxu0
      %v691 = vadd.f32 %v557, %v690
      %v692 = vpop.f32.mrb[0].mxu0
      %693 = vmatprep.mubr.f32.mxu0 0.0
      %694 = vmatmul.mubr.f32.gmra.mrb[0].mxu0 %v564
      %v695 = vpop.f32.mrb[0].mxu0
      %v696 = vadd.f32 %v557, %v695
      %v697 = vpop.f32.mrb[0].mxu0
      %698 = vmatprep.mubr.f32.mxu0 0.0
      %699 = vmatmul.mubr.f32.gmra.mrb[0].mxu0 %v567
      %v700 = vpop.f32.mrb[0].mxu0
      %v701 = vadd.f32 %v557, %v700
      %v702 = vpop.f32.mrb[0].mxu0
      %703 = vmatprep.mubr.f32.mxu0 0.0
      %704 = vmatmul.mubr.f32.gmra.mrb[0].mxu0 %v570
      %v705 = vpop.f32.mrb[0].mxu0
      %v706 = vadd.f32 %v557, %v705
      %v707 = vpop.f32.mrb[0].mxu0
      %708 = vmatprep.mubr.f32.mxu0 0.0
      %709 = vmatmul.mubr.f32.gmra.mrb[0].mxu0 %v573
      %v710 = vpop.f32.mrb[0].mxu0
      %v711 = vadd.f32 %v557, %v710
      %v712 = vpop.f32.mrb[0].mxu0
      %713 = vmatprep.mubr.f32.mxu0 0.0
      %714 = vmatmul.mubr.f32.gmra.mrb[0].mxu0 %v576
      %v715 = vpop.f32.mrb[0].mxu0
      %v716 = vadd.f32 %v557, %v715
      %v717 = vpop.f32.mrb[0].mxu0
      %718 = vmatprep.mubr.f32.mxu0 0.0
      %719 = vmatmul.mubr.f32.gmra.mrb[0].mxu0 %v579
      %v720 = vpop.f32.mrb[0].mxu0
      %v721 = vadd.f32 %v557, %v720
      %v722 = vpop.f32.mrb[0].mxu0
      %723 = vmatprep.mubr.f32.mxu0 0.0
      %724 = vmatmul.mubr.f32.gmra.mrb[0].mxu0 %v582
      %v725 = vpop.f32.mrb[0].mxu0
      %v726 = vadd.f32 %v557, %v725
      %v727 = vpop.f32.mrb[0].mxu0
      %728 = vmatprep.mubr.f32.mxu0 0.0
      %729 = vmatmul.mubr.f32.gmra.mrb[0].mxu0 %v585
      %v730 = vpop.f32.mrb[0].mxu0
      %v731 = vadd.f32 %v557, %v730
      %v732 = vpop.f32.mrb[0].mxu0
      %733 = vmatprep.mubr.f32.mxu0 0.0
      %734 = vmatmul.mubr.f32.gmra.mrb[0].mxu0 %v588
      %v735 = vpop.f32.mrb[0].mxu0
      %v736 = vadd.f32 %v557, %v735
      %v737 = vpop.f32.mrb[0].mxu0
      %738 = vmatprep.mubr.f32.mxu0 0.0
      %739 = vmatmul.mubr.f32.gmra.mrb[0].mxu0 %v591
      %v740 = vpop.f32.mrb[0].mxu0
      %v741 = vadd.f32 %v557, %v740
      %v742 = vpop.f32.mrb[0].mxu0
      %743 = vmatprep.mubr.f32.mxu0 0.0
      %744 = vmatmul.mubr.f32.gmra.mrb[0].mxu0 %v594
      %v745 = vpop.f32.mrb[0].mxu0
      %v746 = vadd.f32 %v557, %v745
      %v747 = vpop.f32.mrb[0].mxu0
      %748 = vmatprep.mubr.f32.mxu0 0.0
      %749 = vmatmul.mubr.f32.gmra.mrb[0].mxu0 %v597
      %v750 = vpop.f32.mrb[0].mxu0
      %v751 = vadd.f32 %v557, %v750
      %v752 = vpop.f32.mrb[0].mxu0
      %753 = vmatprep.mubr.f32.mxu0 0.0
      %754 = vmatmul.mubr.f32.gmra.mrb[0].mxu0 %v600
      %v755 = vpop.f32.mrb[0].mxu0
      %v756 = vadd.f32 %v557, %v755
      %v757 = vpop.f32.mrb[0].mxu0
      %758 = vmatprep.mubr.f32.mxu0 0.0
      %759 = vmatmul.mubr.f32.gmra.mrb[0].mxu0 %v603
      %v760 = vpop.f32.mrb[0].mxu0
      %v761 = vadd.f32 %v557, %v760
      %v762 = vpop.f32.mrb[0].mxu0
      %763 = vmatprep.mubr.f32.mxu0 0.0
      %764 = vmatmul.mubr.f32.gmra.mrb[0].mxu0 %v606
      %v765 = vpop.f32.mrb[0].mxu0
      %v766 = vadd.f32 %v557, %v765
      %v767 = vpop.f32.mrb[0].mxu0
      %768 = vmatprep.mubr.f32.mxu0 0.0
      %769 = vmatmul.mubr.f32.gmra.mrb[0].mxu0 %v609
      %v770 = vpop.f32.mrb[0].mxu0
      %v771 = vadd.f32 %v557, %v770
      %v772 = vpop.f32.mrb[0].mxu0
      %773 = vmatprep.mubr.f32.mxu0 0.0
      %774 = vmatmul.mubr.f32.gmra.mrb[0].mxu0 %v612
      %v775 = vpop.f32.mrb[0].mxu0
      %v776 = vadd.f32 %v557, %v775
      %v777 = vpop.f32.mrb[0].mxu0
      %778 = vmatprep.mubr.f32.mxu0 0.0
      %779 = vmatmul.mubr.f32.gmra.mrb[0].mxu0 %v615
      %v780 = vpop.f32.mrb[0].mxu0
      %v781 = vadd.f32 %v557, %v780
      %v782 = vpop.f32.mrb[0].mxu0
      %783 = vmatprep.mubr.f32.mxu0 0.0
      %784 = vmatmul.mubr.f32.gmra.mrb[0].mxu0 %v618
      %v785 = vpop.f32.mrb[0].mxu0
      %v786 = vadd.f32 %v557, %v785
      %v787 = vpop.f32.mrb[0].mxu0
      %788 = vdwg.mxu0
      %v789 = vmax.f32 %v691, 0.0
      %v790 = vmax.f32 %v696, 0.0
      %v791 = vmax.f32 %v701, 0.0
      %v792 = vmax.f32 %v706, 0.0
      %v793 = vmax.f32 %v711, 0.0
      %v794 = vmax.f32 %v716, 0.0
      %v795 = vmax.f32 %v721, 0.0
      %v796 = vmax.f32 %v726, 0.0
      %v797 = vmax.f32 %v731, 0.0
      %v798 = vmax.f32 %v736, 0.0
      %v799 = vmax.f32 %v741, 0.0
      %v800 = vmax.f32 %v746, 0.0
      %v801 = vmax.f32 %v751, 0.0
      %v802 = vmax.f32 %v756, 0.0
      %v803 = vmax.f32 %v761, 0.0
      %v804 = vmax.f32 %v766, 0.0
      %v805 = vmax.f32 %v771, 0.0
      %v806 = vmax.f32 %v776, 0.0
      %v807 = vmax.f32 %v781, 0.0
      %v808 = vmax.f32 %v786, 0.0
      %v809 = vld [vmem:[%s5] sm:$0xff]
      %v810 = vld [vmem:[%s5 + $0x8] sm:$0xff]
      %v811 = vld [vmem:[%s5 + $0x10] sm:$0xff]
      %v812 = vld [vmem:[%s5 + $0x18] sm:$0xff]
      %v813 = vld [vmem:[%s5 + $0x20] sm:$0xff]
      %v814 = vld [vmem:[%s5 + $0x28] sm:$0xff]
      %v815 = vld [vmem:[%s5 + $0x30] sm:$0xff]
      %v816 = vld [vmem:[%s5 + $0x38] sm:$0xff]
      %v817 = vld [vmem:[%s6] sm:$0x1]
      %v819 = vlaneseq
      %v820 = vshrl.u32 %v819, 7
      %v821 = vsub.s32 0, %v820
      %v822 = vrot.slane %v817, %v821
      %vm824 = vcmask 523264
      %v826 = vsel %vm824, %v789, 0
      %v829 = vsel %vm824, %v790, 0
      %v832 = vsel %vm824, %v791, 0
      %v835 = vsel %vm824, %v792, 0
      %v838 = vsel %vm824, %v793, 0
      %v841 = vsel %vm824, %v794, 0
      %v844 = vsel %vm824, %v795, 0
      %v847 = vsel %vm824, %v796, 0
      %v850 = vsel %vm824, %v797, 0
      %v853 = vsel %vm824, %v798, 0
      %v856 = vsel %vm824, %v799, 0
      %v859 = vsel %vm824, %v800, 0
      %v862 = vsel %vm824, %v801, 0
      %v865 = vsel %vm824, %v802, 0
      %v868 = vsel %vm824, %v803, 0
      %v871 = vsel %vm824, %v804, 0
      %v874 = vsel %vm824, %v805, 0
      %v877 = vsel %vm824, %v806, 0
      %v880 = vsel %vm824, %v807, 0
      %v883 = vsel %vm824, %v808, 0
      %885 = vmatprep.subr.mxu0 0.0
      %886 = vmatpush1.msra.mxu0 %v809
      %887 = vmatprep.subr.mxu0 0.0
      %888 = vmatpush1.msra.mxu0 %v810
      %889 = vmatprep.subr.mxu0 0.0
      %890 = vmatpush1.msra.mxu0 %v811
      %891 = vmatprep.subr.mxu0 0.0
      %892 = vmatpush1.msra.mxu0 %v812
      %893 = vmatprep.subr.mxu0 0.0
      %894 = vmatpush1.msra.mxu0 %v813
      %895 = vmatprep.subr.mxu0 0.0
      %896 = vmatpush1.msra.mxu0 %v814
      %897 = vmatprep.subr.mxu0 0.0
      %898 = vmatpush1.msra.mxu0 %v815
      %899 = vmatprep.subr.mxu0 0.0
      %900 = vmatpush1.msra.mxu0 %v816
      %901 = vmatprep.subr.mxu0 0.0
      %902 = vmatpush1.msra.mxu0 0.0
      %903 = vmatprep.subr.mxu0 0.0
      %904 = vmatpush1.msra.mxu0 0.0
      %905 = vmatprep.subr.mxu0 0.0
      %906 = vmatpush1.msra.mxu0 0.0
      %907 = vmatprep.subr.mxu0 0.0
      %908 = vmatpush1.msra.mxu0 0.0
      %909 = vmatprep.subr.mxu0 0.0
      %910 = vmatpush1.msra.mxu0 0.0
      %911 = vmatprep.subr.mxu0 0.0
      %912 = vmatpush1.msra.mxu0 0.0
      %913 = vmatprep.subr.mxu0 0.0
      %914 = vmatpush1.msra.mxu0 0.0
      %915 = vmatprep.subr.mxu0 0.0
      %916 = vmatpush1.msra.mxu0 0.0
      %917 = vmatprep.subr.mxu0 0.0
      %918 = vmatpush1.msra.mxu0 0.0
      %919 = vmatprep.subr.mxu0 0.0
      %920 = vmatpush1.msra.mxu0 0.0
      %921 = vmatprep.subr.mxu0 0.0
      %922 = vmatpush1.msra.mxu0 0.0
      %923 = vmatprep.subr.mxu0 0.0
      %924 = vmatpush1.msra.mxu0 0.0
      %925 = vmatprep.subr.mxu0 0.0
      %926 = vmatpush1.msra.mxu0 0.0
      %927 = vmatprep.subr.mxu0 0.0
      %928 = vmatpush1.msra.mxu0 0.0
      %929 = vmatprep.subr.mxu0 0.0
      %930 = vmatpush1.msra.mxu0 0.0
      %931 = vmatprep.subr.mxu0 0.0
      %932 = vmatpush1.msra.mxu0 0.0
      %933 = vmatprep.subr.mxu0 0.0
      %934 = vmatpush1.msra.mxu0 0.0
      %935 = vmatprep.subr.mxu0 0.0
      %936 = vmatpush1.msra.mxu0 0.0
      %937 = vmatprep.subr.mxu0 0.0
      %938 = vmatpush1.msra.mxu0 0.0
      %939 = vmatprep.subr.mxu0 0.0
      %940 = vmatpush1.msra.mxu0 0.0
      %941 = vmatprep.subr.mxu0 0.0
      %942 = vmatpush1.msra.mxu0 0.0
      %943 = vmatprep.subr.mxu0 0.0
      %944 = vmatpush1.msra.mxu0 0.0
      %945 = vmatprep.subr.mxu0 0.0
      %946 = vmatpush1.msra.mxu0 0.0
      %947 = vmatprep.subr.mxu0 0.0
      %948 = vmatpush1.msra.mxu0 0.0
      %949 = vmatprep.mubr.f32.mxu0 0.0
      %950 = vmatmul.mubr.f32.gmra.mrb[0].mxu0 %v826
      %v951 = vpop.f32.mrb[0].mxu0
      %v952 = vadd.f32 %v822, %v951
      %v953 = vpop.f32.mrb[0].mxu0
      %954 = vmatprep.mubr.f32.mxu0 0.0
      %955 = vmatmul.mubr.f32.gmra.mrb[0].mxu0 %v829
      %v956 = vpop.f32.mrb[0].mxu0
      %v957 = vadd.f32 %v822, %v956
      %v958 = vpop.f32.mrb[0].mxu0
      %959 = vmatprep.mubr.f32.mxu0 0.0
      %960 = vmatmul.mubr.f32.gmra.mrb[0].mxu0 %v832
      %v961 = vpop.f32.mrb[0].mxu0
      %v962 = vadd.f32 %v822, %v961
      %v963 = vpop.f32.mrb[0].mxu0
      %964 = vmatprep.mubr.f32.mxu0 0.0
      %965 = vmatmul.mubr.f32.gmra.mrb[0].mxu0 %v835
      %v966 = vpop.f32.mrb[0].mxu0
      %v967 = vadd.f32 %v822, %v966
      %v968 = vpop.f32.mrb[0].mxu0
      %969 = vmatprep.mubr.f32.mxu0 0.0
      %970 = vmatmul.mubr.f32.gmra.mrb[0].mxu0 %v838
      %v971 = vpop.f32.mrb[0].mxu0
      %v972 = vadd.f32 %v822, %v971
      %v973 = vpop.f32.mrb[0].mxu0
      %974 = vmatprep.mubr.f32.mxu0 0.0
      %975 = vmatmul.mubr.f32.gmra.mrb[0].mxu0 %v841
      %v976 = vpop.f32.mrb[0].mxu0
      %v977 = vadd.f32 %v822, %v976
      %v978 = vpop.f32.mrb[0].mxu0
      %979 = vmatprep.mubr.f32.mxu0 0.0
      %980 = vmatmul.mubr.f32.gmra.mrb[0].mxu0 %v844
      %v981 = vpop.f32.mrb[0].mxu0
      %v982 = vadd.f32 %v822, %v981
      %v983 = vpop.f32.mrb[0].mxu0
      %984 = vmatprep.mubr.f32.mxu0 0.0
      %985 = vmatmul.mubr.f32.gmra.mrb[0].mxu0 %v847
      %v986 = vpop.f32.mrb[0].mxu0
      %v987 = vadd.f32 %v822, %v986
      %v988 = vpop.f32.mrb[0].mxu0
      %989 = vmatprep.mubr.f32.mxu0 0.0
      %990 = vmatmul.mubr.f32.gmra.mrb[0].mxu0 %v850
      %v991 = vpop.f32.mrb[0].mxu0
      %v992 = vadd.f32 %v822, %v991
      %v993 = vpop.f32.mrb[0].mxu0
      %994 = vmatprep.mubr.f32.mxu0 0.0
      %995 = vmatmul.mubr.f32.gmra.mrb[0].mxu0 %v853
      %v996 = vpop.f32.mrb[0].mxu0
      %v997 = vadd.f32 %v822, %v996
      %v998 = vpop.f32.mrb[0].mxu0
      %999 = vmatprep.mubr.f32.mxu0 0.0
      %1000 = vmatmul.mubr.f32.gmra.mrb[0].mxu0 %v856
      %v1001 = vpop.f32.mrb[0].mxu0
      %v1002 = vadd.f32 %v822, %v1001
      %v1003 = vpop.f32.mrb[0].mxu0
      %1004 = vmatprep.mubr.f32.mxu0 0.0
      %1005 = vmatmul.mubr.f32.gmra.mrb[0].mxu0 %v859
      %v1006 = vpop.f32.mrb[0].mxu0
      %v1007 = vadd.f32 %v822, %v1006
      %v1008 = vpop.f32.mrb[0].mxu0
      %1009 = vmatprep.mubr.f32.mxu0 0.0
      %1010 = vmatmul.mubr.f32.gmra.mrb[0].mxu0 %v862
      %v1011 = vpop.f32.mrb[0].mxu0
      %v1012 = vadd.f32 %v822, %v1011
      %v1013 = vpop.f32.mrb[0].mxu0
      %1014 = vmatprep.mubr.f32.mxu0 0.0
      %1015 = vmatmul.mubr.f32.gmra.mrb[0].mxu0 %v865
      %v1016 = vpop.f32.mrb[0].mxu0
      %v1017 = vadd.f32 %v822, %v1016
      %v1018 = vpop.f32.mrb[0].mxu0
      %1019 = vmatprep.mubr.f32.mxu0 0.0
      %1020 = vmatmul.mubr.f32.gmra.mrb[0].mxu0 %v868
      %v1021 = vpop.f32.mrb[0].mxu0
      %v1022 = vadd.f32 %v822, %v1021
      %v1023 = vpop.f32.mrb[0].mxu0
      %1024 = vmatprep.mubr.f32.mxu0 0.0
      %1025 = vmatmul.mubr.f32.gmra.mrb[0].mxu0 %v871
      %v1026 = vpop.f32.mrb[0].mxu0
      %v1027 = vadd.f32 %v822, %v1026
      %v1028 = vpop.f32.mrb[0].mxu0
      %1029 = vmatprep.mubr.f32.mxu0 0.0
      %1030 = vmatmul.mubr.f32.gmra.mrb[0].mxu0 %v874
      %v1031 = vpop.f32.mrb[0].mxu0
      %v1032 = vadd.f32 %v822, %v1031
      %v1033 = vpop.f32.mrb[0].mxu0
      %1034 = vmatprep.mubr.f32.mxu0 0.0
      %1035 = vmatmul.mubr.f32.gmra.mrb[0].mxu0 %v877
      %v1036 = vpop.f32.mrb[0].mxu0
      %v1037 = vadd.f32 %v822, %v1036
      %v1038 = vpop.f32.mrb[0].mxu0
      %1039 = vmatprep.mubr.f32.mxu0 0.0
      %1040 = vmatmul.mubr.f32.gmra.mrb[0].mxu0 %v880
      %v1041 = vpop.f32.mrb[0].mxu0
      %v1042 = vadd.f32 %v822, %v1041
      %v1043 = vpop.f32.mrb[0].mxu0
      %1044 = vmatprep.mubr.f32.mxu0 0.0
      %1045 = vmatmul.mubr.f32.gmra.mrb[0].mxu0 %v883
      %v1046 = vpop.f32.mrb[0].mxu0
      %v1047 = vadd.f32 %v822, %v1046
      %v1048 = vpop.f32.mrb[0].mxu0
      %1049 = vdwg.mxu0
      %v1050 = vmax.f32 %v952, 0.0
      %v1051 = vmax.f32 %v957, 0.0
      %v1052 = vmax.f32 %v962, 0.0
      %v1053 = vmax.f32 %v967, 0.0
      %v1054 = vmax.f32 %v972, 0.0
      %v1055 = vmax.f32 %v977, 0.0
      %v1056 = vmax.f32 %v982, 0.0
      %v1057 = vmax.f32 %v987, 0.0
      %v1058 = vmax.f32 %v992, 0.0
      %v1059 = vmax.f32 %v997, 0.0
      %v1060 = vmax.f32 %v1002, 0.0
      %v1061 = vmax.f32 %v1007, 0.0
      %v1062 = vmax.f32 %v1012, 0.0
      %v1063 = vmax.f32 %v1017, 0.0
      %v1064 = vmax.f32 %v1022, 0.0
      %v1065 = vmax.f32 %v1027, 0.0
      %v1066 = vmax.f32 %v1032, 0.0
      %v1067 = vmax.f32 %v1037, 0.0
      %v1068 = vmax.f32 %v1042, 0.0
      %v1069 = vmax.f32 %v1047, 0.0
      %v1070 = vld [vmem:[%s7] sm:$0xff]
      %v1071 = vld [vmem:[%s7 + $0x8] sm:$0xff]
      %v1072 = vld [vmem:[%s7 + $0x10] sm:$0xff]
      %v1073 = vld [vmem:[%s7 + $0x18] sm:$0xff]
      %v1074 = vld [vmem:[%s8] sm:$0x1]
      %v1076 = vlaneseq
      %v1077 = vshrl.u32 %v1076, 7
      %v1078 = vsub.s32 0, %v1077
      %v1079 = vrot.slane %v1074, %v1078
      %vm1081 = vcmask 261120
      %v1083 = vsel %vm1081, %v1050, 0
      %v1086 = vsel %vm1081, %v1051, 0
      %v1089 = vsel %vm1081, %v1052, 0
      %v1092 = vsel %vm1081, %v1053, 0
      %v1095 = vsel %vm1081, %v1054, 0
      %v1098 = vsel %vm1081, %v1055, 0
      %v1101 = vsel %vm1081, %v1056, 0
      %v1104 = vsel %vm1081, %v1057, 0
      %v1107 = vsel %vm1081, %v1058, 0
      %v1110 = vsel %vm1081, %v1059, 0
      %v1113 = vsel %vm1081, %v1060, 0
      %v1116 = vsel %vm1081, %v1061, 0
      %v1119 = vsel %vm1081, %v1062, 0
      %v1122 = vsel %vm1081, %v1063, 0
      %v1125 = vsel %vm1081, %v1064, 0
      %v1128 = vsel %vm1081, %v1065, 0
      %v1131 = vsel %vm1081, %v1066, 0
      %v1134 = vsel %vm1081, %v1067, 0
      %v1137 = vsel %vm1081, %v1068, 0
      %v1140 = vsel %vm1081, %v1069, 0
      %1142 = vmatprep.subr.mxu0 0.0
      %1143 = vmatpush1.msra.mxu0 %v1070
      %1144 = vmatprep.subr.mxu0 0.0
      %1145 = vmatpush1.msra.mxu0 %v1071
      %1146 = vmatprep.subr.mxu0 0.0
      %1147 = vmatpush1.msra.mxu0 %v1072
      %1148 = vmatprep.subr.mxu0 0.0
      %1149 = vmatpush1.msra.mxu0 %v1073
      %1150 = vmatprep.subr.mxu0 0.0
      %1151 = vmatpush1.msra.mxu0 0.0
      %1152 = vmatprep.subr.mxu0 0.0
      %1153 = vmatpush1.msra.mxu0 0.0
      %1154 = vmatprep.subr.mxu0 0.0
      %1155 = vmatpush1.msra.mxu0 0.0
      %1156 = vmatprep.subr.mxu0 0.0
      %1157 = vmatpush1.msra.mxu0 0.0
      %1158 = vmatprep.subr.mxu0 0.0
      %1159 = vmatpush1.msra.mxu0 0.0
      %1160 = vmatprep.subr.mxu0 0.0
      %1161 = vmatpush1.msra.mxu0 0.0
      %1162 = vmatprep.subr.mxu0 0.0
      %1163 = vmatpush1.msra.mxu0 0.0
      %1164 = vmatprep.subr.mxu0 0.0
      %1165 = vmatpush1.msra.mxu0 0.0
      %1166 = vmatprep.subr.mxu0 0.0
      %1167 = vmatpush1.msra.mxu0 0.0
      %1168 = vmatprep.subr.mxu0 0.0
      %1169 = vmatpush1.msra.mxu0 0.0
      %1170 = vmatprep.subr.mxu0 0.0
      %1171 = vmatpush1.msra.mxu0 0.0
      %1172 = vmatprep.subr.mxu0 0.0
      %1173 = vmatpush1.msra.mxu0 0.0
      %1174 = vmatprep.subr.mxu0 0.0
      %1175 = vmatpush1.msra.mxu0 0.0
      %1176 = vmatprep.subr.mxu0 0.0
      %1177 = vmatpush1.msra.mxu0 0.0
      %1178 = vmatprep.subr.mxu0 0.0
      %1179 = vmatpush1.msra.mxu0 0.0
      %1180 = vmatprep.subr.mxu0 0.0
      %1181 = vmatpush1.msra.mxu0 0.0
      %1182 = vmatprep.subr.mxu0 0.0
      %1183 = vmatpush1.msra.mxu0 0.0
      %1184 = vmatprep.subr.mxu0 0.0
      %1185 = vmatpush1.msra.mxu0 0.0
      %1186 = vmatprep.subr.mxu0 0.0
      %1187 = vmatpush1.msra.mxu0 0.0
      %1188 = vmatprep.subr.mxu0 0.0
      %1189 = vmatpush1.msra.mxu0 0.0
      %1190 = vmatprep.subr.mxu0 0.0
      %1191 = vmatpush1.msra.mxu0 0.0
      %1192 = vmatprep.subr.mxu0 0.0
      %1193 = vmatpush1.msra.mxu0 0.0
      %1194 = vmatprep.subr.mxu0 0.0
      %1195 = vmatpush1.msra.mxu0 0.0
      %1196 = vmatprep.subr.mxu0 0.0
      %1197 = vmatpush1.msra.mxu0 0.0
      %1198 = vmatprep.subr.mxu0 0.0
      %1199 = vmatpush1.msra.mxu0 0.0
      %1200 = vmatprep.subr.mxu0 0.0
      %1201 = vmatpush1.msra.mxu0 0.0
      %1202 = vmatprep.subr.mxu0 0.0
      %1203 = vmatpush1.msra.mxu0 0.0
      %1204 = vmatprep.subr.mxu0 0.0
      %1205 = vmatpush1.msra.mxu0 0.0
      %1206 = vmatprep.mubr.f32.mxu0 0.0
      %1207 = vmatmul.mubr.f32.gmra.mrb[0].mxu0 %v1083
      %v1208 = vpop.f32.mrb[0].mxu0
      %v1209 = vadd.f32 %v1079, %v1208
      %v1210 = vpop.f32.mrb[0].mxu0
      %1211 = vmatprep.mubr.f32.mxu0 0.0
      %1212 = vmatmul.mubr.f32.gmra.mrb[0].mxu0 %v1086
      %v1213 = vpop.f32.mrb[0].mxu0
      %v1214 = vadd.f32 %v1079, %v1213
      %v1215 = vpop.f32.mrb[0].mxu0
      %1216 = vmatprep.mubr.f32.mxu0 0.0
      %1217 = vmatmul.mubr.f32.gmra.mrb[0].mxu0 %v1089
      %v1218 = vpop.f32.mrb[0].mxu0
      %v1219 = vadd.f32 %v1079, %v1218
      %v1220 = vpop.f32.mrb[0].mxu0
      %1221 = vmatprep.mubr.f32.mxu0 0.0
      %1222 = vmatmul.mubr.f32.gmra.mrb[0].mxu0 %v1092
      %v1223 = vpop.f32.mrb[0].mxu0
      %v1224 = vadd.f32 %v1079, %v1223
      %v1225 = vpop.f32.mrb[0].mxu0
      %1226 = vmatprep.mubr.f32.mxu0 0.0
      %1227 = vmatmul.mubr.f32.gmra.mrb[0].mxu0 %v1095
      %v1228 = vpop.f32.mrb[0].mxu0
      %v1229 = vadd.f32 %v1079, %v1228
      %v1230 = vpop.f32.mrb[0].mxu0
      %1231 = vmatprep.mubr.f32.mxu0 0.0
      %1232 = vmatmul.mubr.f32.gmra.mrb[0].mxu0 %v1098
      %v1233 = vpop.f32.mrb[0].mxu0
      %v1234 = vadd.f32 %v1079, %v1233
      %v1235 = vpop.f32.mrb[0].mxu0
      %1236 = vmatprep.mubr.f32.mxu0 0.0
      %1237 = vmatmul.mubr.f32.gmra.mrb[0].mxu0 %v1101
      %v1238 = vpop.f32.mrb[0].mxu0
      %v1239 = vadd.f32 %v1079, %v1238
      %v1240 = vpop.f32.mrb[0].mxu0
      %1241 = vmatprep.mubr.f32.mxu0 0.0
      %1242 = vmatmul.mubr.f32.gmra.mrb[0].mxu0 %v1104
      %v1243 = vpop.f32.mrb[0].mxu0
      %v1244 = vadd.f32 %v1079, %v1243
      %v1245 = vpop.f32.mrb[0].mxu0
      %1246 = vmatprep.mubr.f32.mxu0 0.0
      %1247 = vmatmul.mubr.f32.gmra.mrb[0].mxu0 %v1107
      %v1248 = vpop.f32.mrb[0].mxu0
      %v1249 = vadd.f32 %v1079, %v1248
      %v1250 = vpop.f32.mrb[0].mxu0
      %1251 = vmatprep.mubr.f32.mxu0 0.0
      %1252 = vmatmul.mubr.f32.gmra.mrb[0].mxu0 %v1110
      %v1253 = vpop.f32.mrb[0].mxu0
      %v1254 = vadd.f32 %v1079, %v1253
      %v1255 = vpop.f32.mrb[0].mxu0
      %1256 = vmatprep.mubr.f32.mxu0 0.0
      %1257 = vmatmul.mubr.f32.gmra.mrb[0].mxu0 %v1113
      %v1258 = vpop.f32.mrb[0].mxu0
      %v1259 = vadd.f32 %v1079, %v1258
      %v1260 = vpop.f32.mrb[0].mxu0
      %1261 = vmatprep.mubr.f32.mxu0 0.0
      %1262 = vmatmul.mubr.f32.gmra.mrb[0].mxu0 %v1116
      %v1263 = vpop.f32.mrb[0].mxu0
      %v1264 = vadd.f32 %v1079, %v1263
      %v1265 = vpop.f32.mrb[0].mxu0
      %1266 = vmatprep.mubr.f32.mxu0 0.0
      %1267 = vmatmul.mubr.f32.gmra.mrb[0].mxu0 %v1119
      %v1268 = vpop.f32.mrb[0].mxu0
      %v1269 = vadd.f32 %v1079, %v1268
      %v1270 = vpop.f32.mrb[0].mxu0
      %1271 = vmatprep.mubr.f32.mxu0 0.0
      %1272 = vmatmul.mubr.f32.gmra.mrb[0].mxu0 %v1122
      %v1273 = vpop.f32.mrb[0].mxu0
      %v1274 = vadd.f32 %v1079, %v1273
      %v1275 = vpop.f32.mrb[0].mxu0
      %1276 = vmatprep.mubr.f32.mxu0 0.0
      %1277 = vmatmul.mubr.f32.gmra.mrb[0].mxu0 %v1125
      %v1278 = vpop.f32.mrb[0].mxu0
      %v1279 = vadd.f32 %v1079, %v1278
      %v1280 = vpop.f32.mrb[0].mxu0
      %1281 = vmatprep.mubr.f32.mxu0 0.0
      %1282 = vmatmul.mubr.f32.gmra.mrb[0].mxu0 %v1128
      %v1283 = vpop.f32.mrb[0].mxu0
      %v1284 = vadd.f32 %v1079, %v1283
      %v1285 = vpop.f32.mrb[0].mxu0
      %1286 = vmatprep.mubr.f32.mxu0 0.0
      %1287 = vmatmul.mubr.f32.gmra.mrb[0].mxu0 %v1131
      %v1288 = vpop.f32.mrb[0].mxu0
      %v1289 = vadd.f32 %v1079, %v1288
      %v1290 = vpop.f32.mrb[0].mxu0
      %1291 = vmatprep.mubr.f32.mxu0 0.0
      %1292 = vmatmul.mubr.f32.gmra.mrb[0].mxu0 %v1134
      %v1293 = vpop.f32.mrb[0].mxu0
      %v1294 = vadd.f32 %v1079, %v1293
      %v1295 = vpop.f32.mrb[0].mxu0
      %1296 = vmatprep.mubr.f32.mxu0 0.0
      %1297 = vmatmul.mubr.f32.gmra.mrb[0].mxu0 %v1137
      %v1298 = vpop.f32.mrb[0].mxu0
      %v1299 = vadd.f32 %v1079, %v1298
      %v1300 = vpop.f32.mrb[0].mxu0
      %1301 = vmatprep.mubr.f32.mxu0 0.0
      %1302 = vmatmul.mubr.f32.gmra.mrb[0].mxu0 %v1140
      %v1303 = vpop.f32.mrb[0].mxu0
      %v1304 = vadd.f32 %v1079, %v1303
      %v1305 = vpop.f32.mrb[0].mxu0
      %1306 = vdwg.mxu0
      %v1307 = vld [vmem:[%s9] sm:$0xff]
      %v1308 = vld [vmem:[%s9 + $0x8] sm:$0xff]
      %v1309 = vld [vmem:[%s9 + $0x10] sm:$0xff]
      %v1310 = vld [vmem:[%s9 + $0x18] sm:$0xff]
      %v1311 = vld [vmem:[%s9 + $0x20] sm:$0xff]
      %v1312 = vld [vmem:[%s9 + $0x28] sm:$0xff]
      %v1313 = vld [vmem:[%s9 + $0x30] sm:$0xff]
      %v1314 = vld [vmem:[%s9 + $0x38] sm:$0xff]
      %v1316 = vsel %vm824, %v691, 0
      %v1319 = vsel %vm824, %v696, 0
      %v1322 = vsel %vm824, %v701, 0
      %v1325 = vsel %vm824, %v706, 0
      %v1328 = vsel %vm824, %v711, 0
      %v1331 = vsel %vm824, %v716, 0
      %v1334 = vsel %vm824, %v721, 0
      %v1337 = vsel %vm824, %v726, 0
      %v1340 = vsel %vm824, %v731, 0
      %v1343 = vsel %vm824, %v736, 0
      %v1346 = vsel %vm824, %v741, 0
      %v1349 = vsel %vm824, %v746, 0
      %v1352 = vsel %vm824, %v751, 0
      %v1355 = vsel %vm824, %v756, 0
      %v1358 = vsel %vm824, %v761, 0
      %v1361 = vsel %vm824, %v766, 0
      %v1364 = vsel %vm824, %v771, 0
      %v1367 = vsel %vm824, %v776, 0
      %v1370 = vsel %vm824, %v781, 0
      %v1373 = vsel %vm824, %v786, 0
      %1375 = vmatprep.subr.mxu0 0.0
      %1376 = vmatpush1.msra.mxu0 %v1307
      %1377 = vmatprep.subr.mxu0 0.0
      %1378 = vmatpush1.msra.mxu0 %v1308
      %1379 = vmatprep.subr.mxu0 0.0
      %1380 = vmatpush1.msra.mxu0 %v1309
      %1381 = vmatprep.subr.mxu0 0.0
      %1382 = vmatpush1.msra.mxu0 %v1310
      %1383 = vmatprep.subr.mxu0 0.0
      %1384 = vmatpush1.msra.mxu0 %v1311
      %1385 = vmatprep.subr.mxu0 0.0
      %1386 = vmatpush1.msra.mxu0 %v1312
      %1387 = vmatprep.subr.mxu0 0.0
      %1388 = vmatpush1.msra.mxu0 %v1313
      %1389 = vmatprep.subr.mxu0 0.0
      %1390 = vmatpush1.msra.mxu0 %v1314
      %1391 = vmatprep.subr.mxu0 0.0
      %1392 = vmatpush1.msra.mxu0 0.0
      %1393 = vmatprep.subr.mxu0 0.0
      %1394 = vmatpush1.msra.mxu0 0.0
      %1395 = vmatprep.subr.mxu0 0.0
      %1396 = vmatpush1.msra.mxu0 0.0
      %1397 = vmatprep.subr.mxu0 0.0
      %1398 = vmatpush1.msra.mxu0 0.0
      %1399 = vmatprep.subr.mxu0 0.0
      %1400 = vmatpush1.msra.mxu0 0.0
      %1401 = vmatprep.subr.mxu0 0.0
      %1402 = vmatpush1.msra.mxu0 0.0
      %1403 = vmatprep.subr.mxu0 0.0
      %1404 = vmatpush1.msra.mxu0 0.0
      %1405 = vmatprep.subr.mxu0 0.0
      %1406 = vmatpush1.msra.mxu0 0.0
      %1407 = vmatprep.subr.mxu0 0.0
      %1408 = vmatpush1.msra.mxu0 0.0
      %1409 = vmatprep.subr.mxu0 0.0
      %1410 = vmatpush1.msra.mxu0 0.0
      %1411 = vmatprep.subr.mxu0 0.0
      %1412 = vmatpush1.msra.mxu0 0.0
      %1413 = vmatprep.subr.mxu0 0.0
      %1414 = vmatpush1.msra.mxu0 0.0
      %1415 = vmatprep.subr.mxu0 0.0
      %1416 = vmatpush1.msra.mxu0 0.0
      %1417 = vmatprep.subr.mxu0 0.0
      %1418 = vmatpush1.msra.mxu0 0.0
      %1419 = vmatprep.subr.mxu0 0.0
      %1420 = vmatpush1.msra.mxu0 0.0
      %1421 = vmatprep.subr.mxu0 0.0
      %1422 = vmatpush1.msra.mxu0 0.0
      %1423 = vmatprep.subr.mxu0 0.0
      %1424 = vmatpush1.msra.mxu0 0.0
      %1425 = vmatprep.subr.mxu0 0.0
      %1426 = vmatpush1.msra.mxu0 0.0
      %1427 = vmatprep.subr.mxu0 0.0
      %1428 = vmatpush1.msra.mxu0 0.0
      %1429 = vmatprep.subr.mxu0 0.0
      %1430 = vmatpush1.msra.mxu0 0.0
      %1431 = vmatprep.subr.mxu0 0.0
      %1432 = vmatpush1.msra.mxu0 0.0
      %1433 = vmatprep.subr.mxu0 0.0
      %1434 = vmatpush1.msra.mxu0 0.0
      %1435 = vmatprep.subr.mxu0 0.0
      %1436 = vmatpush1.msra.mxu0 0.0
      %1437 = vmatprep.subr.mxu0 0.0
      %1438 = vmatpush1.msra.mxu0 0.0
      %1439 = vmatprep.mubr.f32.mxu0 0.0
      %1440 = vmatmul.mubr.f32.gmra.mrb[0].mxu0 %v1316
      %v1441 = vpop.f32.mrb[0].mxu0
      %v1442 = vadd.f32 %v1209, %v1441
      %v1443 = vpop.f32.mrb[0].mxu0
      %1444 = vmatprep.mubr.f32.mxu0 0.0
      %1445 = vmatmul.mubr.f32.gmra.mrb[0].mxu0 %v1319
      %v1446 = vpop.f32.mrb[0].mxu0
      %v1447 = vadd.f32 %v1214, %v1446
      %v1448 = vpop.f32.mrb[0].mxu0
      %1449 = vmatprep.mubr.f32.mxu0 0.0
      %1450 = vmatmul.mubr.f32.gmra.mrb[0].mxu0 %v1322
      %v1451 = vpop.f32.mrb[0].mxu0
      %v1452 = vadd.f32 %v1219, %v1451
      %v1453 = vpop.f32.mrb[0].mxu0
      %1454 = vmatprep.mubr.f32.mxu0 0.0
      %1455 = vmatmul.mubr.f32.gmra.mrb[0].mxu0 %v1325
      %v1456 = vpop.f32.mrb[0].mxu0
      %v1457 = vadd.f32 %v1224, %v1456
      %v1458 = vpop.f32.mrb[0].mxu0
      %1459 = vmatprep.mubr.f32.mxu0 0.0
      %1460 = vmatmul.mubr.f32.gmra.mrb[0].mxu0 %v1328
      %v1461 = vpop.f32.mrb[0].mxu0
      %v1462 = vadd.f32 %v1229, %v1461
      %v1463 = vpop.f32.mrb[0].mxu0
      %1464 = vmatprep.mubr.f32.mxu0 0.0
      %1465 = vmatmul.mubr.f32.gmra.mrb[0].mxu0 %v1331
      %v1466 = vpop.f32.mrb[0].mxu0
      %v1467 = vadd.f32 %v1234, %v1466
      %v1468 = vpop.f32.mrb[0].mxu0
      %1469 = vmatprep.mubr.f32.mxu0 0.0
      %1470 = vmatmul.mubr.f32.gmra.mrb[0].mxu0 %v1334
      %v1471 = vpop.f32.mrb[0].mxu0
      %v1472 = vadd.f32 %v1239, %v1471
      %v1473 = vpop.f32.mrb[0].mxu0
      %1474 = vmatprep.mubr.f32.mxu0 0.0
      %1475 = vmatmul.mubr.f32.gmra.mrb[0].mxu0 %v1337
      %v1476 = vpop.f32.mrb[0].mxu0
      %v1477 = vadd.f32 %v1244, %v1476
      %v1478 = vpop.f32.mrb[0].mxu0
      %1479 = vmatprep.mubr.f32.mxu0 0.0
      %1480 = vmatmul.mubr.f32.gmra.mrb[0].mxu0 %v1340
      %v1481 = vpop.f32.mrb[0].mxu0
      %v1482 = vadd.f32 %v1249, %v1481
      %v1483 = vpop.f32.mrb[0].mxu0
      %1484 = vmatprep.mubr.f32.mxu0 0.0
      %1485 = vmatmul.mubr.f32.gmra.mrb[0].mxu0 %v1343
      %v1486 = vpop.f32.mrb[0].mxu0
      %v1487 = vadd.f32 %v1254, %v1486
      %v1488 = vpop.f32.mrb[0].mxu0
      %1489 = vmatprep.mubr.f32.mxu0 0.0
      %1490 = vmatmul.mubr.f32.gmra.mrb[0].mxu0 %v1346
      %v1491 = vpop.f32.mrb[0].mxu0
      %v1492 = vadd.f32 %v1259, %v1491
      %v1493 = vpop.f32.mrb[0].mxu0
      %1494 = vmatprep.mubr.f32.mxu0 0.0
      %1495 = vmatmul.mubr.f32.gmra.mrb[0].mxu0 %v1349
      %v1496 = vpop.f32.mrb[0].mxu0
      %v1497 = vadd.f32 %v1264, %v1496
      %v1498 = vpop.f32.mrb[0].mxu0
      %1499 = vmatprep.mubr.f32.mxu0 0.0
      %1500 = vmatmul.mubr.f32.gmra.mrb[0].mxu0 %v1352
      %v1501 = vpop.f32.mrb[0].mxu0
      %v1502 = vadd.f32 %v1269, %v1501
      %v1503 = vpop.f32.mrb[0].mxu0
      %1504 = vmatprep.mubr.f32.mxu0 0.0
      %1505 = vmatmul.mubr.f32.gmra.mrb[0].mxu0 %v1355
      %v1506 = vpop.f32.mrb[0].mxu0
      %v1507 = vadd.f32 %v1274, %v1506
      %v1508 = vpop.f32.mrb[0].mxu0
      %1509 = vmatprep.mubr.f32.mxu0 0.0
      %1510 = vmatmul.mubr.f32.gmra.mrb[0].mxu0 %v1358
      %v1511 = vpop.f32.mrb[0].mxu0
      %v1512 = vadd.f32 %v1279, %v1511
      %v1513 = vpop.f32.mrb[0].mxu0
      %1514 = vmatprep.mubr.f32.mxu0 0.0
      %1515 = vmatmul.mubr.f32.gmra.mrb[0].mxu0 %v1361
      %v1516 = vpop.f32.mrb[0].mxu0
      %v1517 = vadd.f32 %v1284, %v1516
      %v1518 = vpop.f32.mrb[0].mxu0
      %1519 = vmatprep.mubr.f32.mxu0 0.0
      %1520 = vmatmul.mubr.f32.gmra.mrb[0].mxu0 %v1364
      %v1521 = vpop.f32.mrb[0].mxu0
      %v1522 = vadd.f32 %v1289, %v1521
      %v1523 = vpop.f32.mrb[0].mxu0
      %1524 = vmatprep.mubr.f32.mxu0 0.0
      %1525 = vmatmul.mubr.f32.gmra.mrb[0].mxu0 %v1367
      %v1526 = vpop.f32.mrb[0].mxu0
      %v1527 = vadd.f32 %v1294, %v1526
      %v1528 = vpop.f32.mrb[0].mxu0
      %1529 = vmatprep.mubr.f32.mxu0 0.0
      %1530 = vmatmul.mubr.f32.gmra.mrb[0].mxu0 %v1370
      %v1531 = vpop.f32.mrb[0].mxu0
      %v1532 = vadd.f32 %v1299, %v1531
      %v1533 = vpop.f32.mrb[0].mxu0
      %1534 = vmatprep.mubr.f32.mxu0 0.0
      %1535 = vmatmul.mubr.f32.gmra.mrb[0].mxu0 %v1373
      %v1536 = vpop.f32.mrb[0].mxu0
      %v1537 = vadd.f32 %v1304, %v1536
      %v1538 = vpop.f32.mrb[0].mxu0
      %1539 = vdwg.mxu0
      %v1540 = vpack.c.bf16 %v1447, %v1442
      %v1541 = vpack.c.bf16 %v1457, %v1452
      %v1542 = vpack.c.bf16 %v1467, %v1462
      %v1543 = vpack.c.bf16 %v1477, %v1472
      %v1544 = vpack.c.bf16 %v1487, %v1482
      %v1545 = vpack.c.bf16 %v1497, %v1492
      %v1546 = vpack.c.bf16 %v1507, %v1502
      %v1547 = vpack.c.bf16 %v1517, %v1512
      %v1548 = vpack.c.bf16 %v1527, %v1522
      %v1549 = vpack.c.bf16 %v1537, %v1532
      %v1570 = vunpack.c.l.b16 %v515
      %v1571 = vunpack.c.l.b16 %v516
      %v1572 = vunpack.c.l.b16 %v517
      %v1573 = vunpack.c.l.b16 %v518
      %v1574 = vunpack.c.l.b16 %v519
      %v1575 = vunpack.c.l.b16 %v520
      %v1576 = vunpack.c.l.b16 %v521
      %v1577 = vunpack.c.l.b16 %v522
      %v1578 = vunpack.c.l.b16 %v523
      %v1579 = vunpack.c.l.b16 %v524
      %v1580 = vunpack.c.l.b16 %v525
      %v1581 = vunpack.c.l.b16 %v526
      %v1582 = vunpack.c.l.b16 %v527
      %v1583 = vunpack.c.l.b16 %v528
      %v1584 = vunpack.c.l.b16 %v529
      %v1585 = vunpack.c.l.b16 %v530
      %v1586 = vunpack.c.l.b16 %v531
      %v1587 = vunpack.c.l.b16 %v532
      %v1588 = vunpack.c.l.b16 %v533
      %v1589 = vunpack.c.l.b16 %v534
      %v1590 = vpack.c.b16 %v1571, %v1570
      %v1591 = vpack.c.b16 %v1573, %v1572
      %v1592 = vpack.c.b16 %v1575, %v1574
      %v1593 = vpack.c.b16 %v1577, %v1576
      %v1594 = vpack.c.b16 %v1579, %v1578
      %v1595 = vpack.c.b16 %v1581, %v1580
      %v1596 = vpack.c.b16 %v1583, %v1582
      %v1597 = vpack.c.b16 %v1585, %v1584
      %v1598 = vpack.c.b16 %v1587, %v1586
      %v1599 = vpack.c.b16 %v1589, %v1588
      %1610 = vxpose.xlu0.c.b16.start [1/8] %v1590, 128
      %1611 = vxpose.xlu0.c.b16.cont [2/8] %v1591, 128
      %1612 = vxpose.xlu0.c.b16.cont [3/8] %v1592, 128
      %1613 = vxpose.xlu0.c.b16.cont [4/8] %v1593, 128
      %1614 = vxpose.xlu0.c.b16.cont [5/8] %v1594, 128
      %1615 = vxpose.xlu0.c.b16.cont [6/8] %v1595, 128
      %1616 = vxpose.xlu0.c.b16.cont [7/8] %v1596, 128
      %1617 = vxpose.xlu0.c.b16.end [8/8] %v1597, 128
      %v1618 = vpop.trf.xlu0
      %v1619 = vpop.trf.xlu0
      %v1620 = vpop.trf.xlu0
      %v1621 = vpop.trf.xlu0
      %v1622 = vpop.trf.xlu0
      %v1623 = vpop.trf.xlu0
      %v1624 = vpop.trf.xlu0
      %v1625 = vpop.trf.xlu0
      %1626 = vxpose.xlu0.c.b16.start [1/8] %v1598, 128
      %1627 = vxpose.xlu0.c.b16.cont [2/8] %v1599, 128
      %1628 = vxpose.xlu0.c.b16.cont [3/8] 0, 128
      %1629 = vxpose.xlu0.c.b16.cont [4/8] 0, 128
      %1630 = vxpose.xlu0.c.b16.cont [5/8] 0, 128
      %1631 = vxpose.xlu0.c.b16.cont [6/8] 0, 128
      %1632 = vxpose.xlu0.c.b16.cont [7/8] 0, 128
      %1633 = vxpose.xlu0.c.b16.end [8/8] 0, 128
      %v1634 = vpop.trf.xlu0
      %v1635 = vpop.trf.xlu0
      %v1636 = vpop.trf.xlu0
      %v1637 = vpop.trf.xlu0
      %v1638 = vpop.trf.xlu0
      %v1639 = vpop.trf.xlu0
      %v1640 = vpop.trf.xlu0
      %v1641 = vpop.trf.xlu0
      %v1643 = vsel %vm1081, %v1634, 0
      %v1646 = vsel %vm1081, %v1635, 0
      %v1649 = vsel %vm1081, %v1636, 0
      %v1652 = vsel %vm1081, %v1637, 0
      %v1655 = vsel %vm1081, %v1638, 0
      %v1658 = vsel %vm1081, %v1639, 0
      %v1661 = vsel %vm1081, %v1640, 0
      %v1664 = vsel %vm1081, %v1641, 0
      %1666 = vmatprep.subr.bf16.mxu0 0
      %1667 = vmatpush1.bf16.msra.mxu0 %v1540
      %1668 = vmatprep.subr.bf16.mxu0 0
      %1669 = vmatpush1.bf16.msra.mxu0 %v1541
      %1670 = vmatprep.subr.bf16.mxu0 0
      %1671 = vmatpush1.bf16.msra.mxu0 %v1542
      %1672 = vmatprep.subr.bf16.mxu0 0
      %1673 = vmatpush1.bf16.msra.mxu0 %v1543
      %1674 = vmatprep.subr.bf16.mxu0 0
      %1675 = vmatpush1.bf16.msra.mxu0 %v1544
      %1676 = vmatprep.subr.bf16.mxu0 0
      %1677 = vmatpush1.bf16.msra.mxu0 %v1545
      %1678 = vmatprep.subr.bf16.mxu0 0
      %1679 = vmatpush1.bf16.msra.mxu0 %v1546
      %1680 = vmatprep.subr.bf16.mxu0 0
      %1681 = vmatpush1.bf16.msra.mxu0 %v1547
      %1682 = vmatprep.subr.bf16.mxu0 0
      %1683 = vmatpush1.bf16.msra.mxu0 %v1548
      %1684 = vmatprep.subr.bf16.mxu0 0
      %1685 = vmatpush1.bf16.msra.mxu0 %v1549
      %1686 = vmatprep.subr.bf16.mxu0 0
      %1687 = vmatpush1.bf16.msra.mxu0 0
      %1688 = vmatprep.subr.bf16.mxu0 0
      %1689 = vmatpush1.bf16.msra.mxu0 0
      %1690 = vmatprep.subr.bf16.mxu0 0
      %1691 = vmatpush1.bf16.msra.mxu0 0
      %1692 = vmatprep.subr.bf16.mxu0 0
      %1693 = vmatpush1.bf16.msra.mxu0 0
      %1694 = vmatprep.subr.bf16.mxu0 0
      %1695 = vmatpush1.bf16.msra.mxu0 0
      %1696 = vmatprep.subr.bf16.mxu0 0
      %1697 = vmatpush1.bf16.msra.mxu0 0
      %1698 = vmatprep.mubr.bf16.mxu0 %v1643
      %1699 = vmatmul.mubr.bf16.gmra.mrb[0].mxu0 %v1618
      %v1700 = vpop.f32.mrb[0].mxu0
      %v1701 = vadd.f32 0.0, %v1700
      %v1702 = vpop.f32.mrb[0].mxu0
      %v1703 = vpop.f32.mrb[0].mxu0
      %v1704 = vadd.f32 0.0, %v1703
      %v1705 = vpop.f32.mrb[0].mxu0
      %1706 = vmatprep.mubr.bf16.mxu0 %v1646
      %1707 = vmatmul.mubr.bf16.gmra.mrb[0].mxu0 %v1619
      %v1708 = vpop.f32.mrb[0].mxu0
      %v1709 = vadd.f32 0.0, %v1708
      %v1710 = vpop.f32.mrb[0].mxu0
      %v1711 = vpop.f32.mrb[0].mxu0
      %v1712 = vadd.f32 0.0, %v1711
      %v1713 = vpop.f32.mrb[0].mxu0
      %1714 = vmatprep.mubr.bf16.mxu0 %v1649
      %1715 = vmatmul.mubr.bf16.gmra.mrb[0].mxu0 %v1620
      %v1716 = vpop.f32.mrb[0].mxu0
      %v1717 = vadd.f32 0.0, %v1716
      %v1718 = vpop.f32.mrb[0].mxu0
      %v1719 = vpop.f32.mrb[0].mxu0
      %v1720 = vadd.f32 0.0, %v1719
      %v1721 = vpop.f32.mrb[0].mxu0
      %1722 = vmatprep.mubr.bf16.mxu0 %v1652
      %1723 = vmatmul.mubr.bf16.gmra.mrb[0].mxu0 %v1621
      %v1724 = vpop.f32.mrb[0].mxu0
      %v1725 = vadd.f32 0.0, %v1724
      %v1726 = vpop.f32.mrb[0].mxu0
      %v1727 = vpop.f32.mrb[0].mxu0
      %v1728 = vadd.f32 0.0, %v1727
      %v1729 = vpop.f32.mrb[0].mxu0
      %1730 = vmatprep.mubr.bf16.mxu0 %v1655
      %1731 = vmatmul.mubr.bf16.gmra.mrb[0].mxu0 %v1622
      %v1732 = vpop.f32.mrb[0].mxu0
      %v1733 = vadd.f32 0.0, %v1732
      %v1734 = vpop.f32.mrb[0].mxu0
      %v1735 = vpop.f32.mrb[0].mxu0
      %v1736 = vadd.f32 0.0, %v1735
      %v1737 = vpop.f32.mrb[0].mxu0
      %1738 = vmatprep.mubr.bf16.mxu0 %v1658
      %1739 = vmatmul.mubr.bf16.gmra.mrb[0].mxu0 %v1623
      %v1740 = vpop.f32.mrb[0].mxu0
      %v1741 = vadd.f32 0.0, %v1740
      %v1742 = vpop.f32.mrb[0].mxu0
      %v1743 = vpop.f32.mrb[0].mxu0
      %v1744 = vadd.f32 0.0, %v1743
      %v1745 = vpop.f32.mrb[0].mxu0
      %1746 = vmatprep.mubr.bf16.mxu0 %v1661
      %1747 = vmatmul.mubr.bf16.gmra.mrb[0].mxu0 %v1624
      %v1748 = vpop.f32.mrb[0].mxu0
      %v1749 = vadd.f32 0.0, %v1748
      %v1750 = vpop.f32.mrb[0].mxu0
      %v1751 = vpop.f32.mrb[0].mxu0
      %v1752 = vadd.f32 0.0, %v1751
      %v1753 = vpop.f32.mrb[0].mxu0
      %1754 = vmatprep.mubr.bf16.mxu0 %v1664
      %1755 = vmatmul.mubr.bf16.gmra.mrb[0].mxu0 %v1625
      %v1756 = vpop.f32.mrb[0].mxu0
      %v1757 = vadd.f32 0.0, %v1756
      %v1758 = vpop.f32.mrb[0].mxu0
      %v1759 = vpop.f32.mrb[0].mxu0
      %v1760 = vadd.f32 0.0, %v1759
      %v1761 = vpop.f32.mrb[0].mxu0
      %1762 = vdwg.mxu0
      %1764 = vset.pattern.permute.xlu0 0
      %1765 = vperm.xlu0 %1764, %v535
      %v1766 = vpop.permute.xlu0 %1765
      %1769 = vset.pattern.permute.xlu0 0
      %1770 = vperm.xlu0 %1769, %v536
      %v1771 = vpop.permute.xlu0 %1770
      %1774 = vset.pattern.permute.xlu0 0
      %1775 = vperm.xlu0 %1774, %v537
      %v1776 = vpop.permute.xlu0 %1775
      %1779 = vset.pattern.permute.xlu0 0
      %1780 = vperm.xlu0 %1779, %v538
      %v1781 = vpop.permute.xlu0 %1780
      %1784 = vset.pattern.permute.xlu0 0
      %1785 = vperm.xlu0 %1784, %v539
      %v1786 = vpop.permute.xlu0 %1785
      %1789 = vset.pattern.permute.xlu0 0
      %1790 = vperm.xlu0 %1789, %v540
      %v1791 = vpop.permute.xlu0 %1790
      %1794 = vset.pattern.permute.xlu0 0
      %1795 = vperm.xlu0 %1794, %v541
      %v1796 = vpop.permute.xlu0 %1795
      %1799 = vset.pattern.permute.xlu0 0
      %1800 = vperm.xlu0 %1799, %v542
      %v1801 = vpop.permute.xlu0 %1800
      %1804 = vset.pattern.permute.xlu0 0
      %1805 = vperm.xlu0 %1804, %v543
      %v1806 = vpop.permute.xlu0 %1805
      %1809 = vset.pattern.permute.xlu0 0
      %1810 = vperm.xlu0 %1809, %v544
      %v1811 = vpop.permute.xlu0 %1810
      %1814 = vset.pattern.permute.xlu0 0
      %1815 = vperm.xlu0 %1814, %v545
      %v1816 = vpop.permute.xlu0 %1815
      %1819 = vset.pattern.permute.xlu0 0
      %1820 = vperm.xlu0 %1819, %v546
      %v1821 = vpop.permute.xlu0 %1820
      %1824 = vset.pattern.permute.xlu0 0
      %1825 = vperm.xlu0 %1824, %v547
      %v1826 = vpop.permute.xlu0 %1825
      %1829 = vset.pattern.permute.xlu0 0
      %1830 = vperm.xlu0 %1829, %v548
      %v1831 = vpop.permute.xlu0 %1830
      %1834 = vset.pattern.permute.xlu0 0
      %1835 = vperm.xlu0 %1834, %v549
      %v1836 = vpop.permute.xlu0 %1835
      %1839 = vset.pattern.permute.xlu0 0
      %1840 = vperm.xlu0 %1839, %v550
      %v1841 = vpop.permute.xlu0 %1840
      %v1843 = vmul.f32 %v1701, %v1766
      %v1844 = vmul.f32 %v1704, %v1771
      %v1845 = vmul.f32 %v1709, %v1776
      %v1846 = vmul.f32 %v1712, %v1781
      %v1847 = vmul.f32 %v1717, %v1786
      %v1848 = vmul.f32 %v1720, %v1791
      %v1849 = vmul.f32 %v1725, %v1796
      %v1850 = vmul.f32 %v1728, %v1801
      %v1851 = vmul.f32 %v1733, %v1806
      %v1852 = vmul.f32 %v1736, %v1811
      %v1853 = vmul.f32 %v1741, %v1816
      %v1854 = vmul.f32 %v1744, %v1821
      %v1855 = vmul.f32 %v1749, %v1826
      %v1856 = vmul.f32 %v1752, %v1831
      %v1857 = vmul.f32 %v1757, %v1836
      %v1858 = vmul.f32 %v1760, %v1841
      %v1859 = vpack.c.bf16 %v1844, %v1843
      %v1860 = vpack.c.bf16 %v1846, %v1845
      %v1861 = vpack.c.bf16 %v1848, %v1847
      %v1862 = vpack.c.bf16 %v1850, %v1849
      %v1863 = vpack.c.bf16 %v1852, %v1851
      %v1864 = vpack.c.bf16 %v1854, %v1853
      %v1865 = vpack.c.bf16 %v1856, %v1855
      %v1866 = vpack.c.bf16 %v1858, %v1857
      %1867 = vmatprep.subr.bf16.mxu0 0
      %1868 = vmatpush1.bf16.msra.mxu0 %v1859
      %1869 = vmatprep.subr.bf16.mxu0 0
      %1870 = vmatpush1.bf16.msra.mxu0 %v1860
      %1871 = vmatprep.subr.bf16.mxu0 0
      %1872 = vmatpush1.bf16.msra.mxu0 %v1861
      %1873 = vmatprep.subr.bf16.mxu0 0
      %1874 = vmatpush1.bf16.msra.mxu0 %v1862
      %1875 = vmatprep.subr.bf16.mxu0 0
      %1876 = vmatpush1.bf16.msra.mxu0 %v1863
      %1877 = vmatprep.subr.bf16.mxu0 0
      %1878 = vmatpush1.bf16.msra.mxu0 %v1864
      %1879 = vmatprep.subr.bf16.mxu0 0
      %1880 = vmatpush1.bf16.msra.mxu0 %v1865
      %1881 = vmatprep.subr.bf16.mxu0 0
      %1882 = vmatpush1.bf16.msra.mxu0 %v1866
      %1883 = vmatprep.subr.bf16.mxu0 0
      %1884 = vmatpush1.bf16.msra.mxu0 0
      %1885 = vmatprep.subr.bf16.mxu0 0
      %1886 = vmatpush1.bf16.msra.mxu0 0
      %1887 = vmatprep.subr.bf16.mxu0 0
      %1888 = vmatpush1.bf16.msra.mxu0 0
      %1889 = vmatprep.subr.bf16.mxu0 0
      %1890 = vmatpush1.bf16.msra.mxu0 0
      %1891 = vmatprep.subr.bf16.mxu0 0
      %1892 = vmatpush1.bf16.msra.mxu0 0
      %1893 = vmatprep.subr.bf16.mxu0 0
      %1894 = vmatpush1.bf16.msra.mxu0 0
      %1895 = vmatprep.subr.bf16.mxu0 0
      %1896 = vmatpush1.bf16.msra.mxu0 0
      %1897 = vmatprep.subr.bf16.mxu0 0
      %1898 = vmatpush1.bf16.msra.mxu0 0
      %1899 = vmatprep.mubr.bf16.mxu0 0
      %1900 = vmatmul.mubr.bf16.gmra.mrb[0].mxu0 %v1590
      %v1901 = vpop.f32.mrb[0].mxu0
      %v1902 = vadd.f32 0.0, %v1901
      %v1903 = vpop.f32.mrb[0].mxu0
      %v1904 = vpop.f32.mrb[0].mxu0
      %v1905 = vadd.f32 0.0, %v1904
      %v1906 = vpop.f32.mrb[0].mxu0
      %1907 = vmatprep.mubr.bf16.mxu0 0
      %1908 = vmatmul.mubr.bf16.gmra.mrb[0].mxu0 %v1591
      %v1909 = vpop.f32.mrb[0].mxu0
      %v1910 = vadd.f32 0.0, %v1909
      %v1911 = vpop.f32.mrb[0].mxu0
      %v1912 = vpop.f32.mrb[0].mxu0
      %v1913 = vadd.f32 0.0, %v1912
      %v1914 = vpop.f32.mrb[0].mxu0
      %1915 = vmatprep.mubr.bf16.mxu0 0
      %1916 = vmatmul.mubr.bf16.gmra.mrb[0].mxu0 %v1592
      %v1917 = vpop.f32.mrb[0].mxu0
      %v1918 = vadd.f32 0.0, %v1917
      %v1919 = vpop.f32.mrb[0].mxu0
      %v1920 = vpop.f32.mrb[0].mxu0
      %v1921 = vadd.f32 0.0, %v1920
      %v1922 = vpop.f32.mrb[0].mxu0
      %1923 = vmatprep.mubr.bf16.mxu0 0
      %1924 = vmatmul.mubr.bf16.gmra.mrb[0].mxu0 %v1593
      %v1925 = vpop.f32.mrb[0].mxu0
      %v1926 = vadd.f32 0.0, %v1925
      %v1927 = vpop.f32.mrb[0].mxu0
      %v1928 = vpop.f32.mrb[0].mxu0
      %v1929 = vadd.f32 0.0, %v1928
      %v1930 = vpop.f32.mrb[0].mxu0
      %1931 = vmatprep.mubr.bf16.mxu0 0
      %1932 = vmatmul.mubr.bf16.gmra.mrb[0].mxu0 %v1594
      %v1933 = vpop.f32.mrb[0].mxu0
      %v1934 = vadd.f32 0.0, %v1933
      %v1935 = vpop.f32.mrb[0].mxu0
      %v1936 = vpop.f32.mrb[0].mxu0
      %v1937 = vadd.f32 0.0, %v1936
      %v1938 = vpop.f32.mrb[0].mxu0
      %1939 = vmatprep.mubr.bf16.mxu0 0
      %1940 = vmatmul.mubr.bf16.gmra.mrb[0].mxu0 %v1595
      %v1941 = vpop.f32.mrb[0].mxu0
      %v1942 = vadd.f32 0.0, %v1941
      %v1943 = vpop.f32.mrb[0].mxu0
      %v1944 = vpop.f32.mrb[0].mxu0
      %v1945 = vadd.f32 0.0, %v1944
      %v1946 = vpop.f32.mrb[0].mxu0
      %1947 = vmatprep.mubr.bf16.mxu0 0
      %1948 = vmatmul.mubr.bf16.gmra.mrb[0].mxu0 %v1596
      %v1949 = vpop.f32.mrb[0].mxu0
      %v1950 = vadd.f32 0.0, %v1949
      %v1951 = vpop.f32.mrb[0].mxu0
      %v1952 = vpop.f32.mrb[0].mxu0
      %v1953 = vadd.f32 0.0, %v1952
      %v1954 = vpop.f32.mrb[0].mxu0
      %1955 = vmatprep.mubr.bf16.mxu0 0
      %1956 = vmatmul.mubr.bf16.gmra.mrb[0].mxu0 %v1597
      %v1957 = vpop.f32.mrb[0].mxu0
      %v1958 = vadd.f32 0.0, %v1957
      %v1959 = vpop.f32.mrb[0].mxu0
      %v1960 = vpop.f32.mrb[0].mxu0
      %v1961 = vadd.f32 0.0, %v1960
      %v1962 = vpop.f32.mrb[0].mxu0
      %1963 = vmatprep.mubr.bf16.mxu0 0
      %1964 = vmatmul.mubr.bf16.gmra.mrb[0].mxu0 %v1598
      %v1965 = vpop.f32.mrb[0].mxu0
      %v1966 = vadd.f32 0.0, %v1965
      %v1967 = vpop.f32.mrb[0].mxu0
      %v1968 = vpop.f32.mrb[0].mxu0
      %v1969 = vadd.f32 0.0, %v1968
      %v1970 = vpop.f32.mrb[0].mxu0
      %1971 = vmatprep.mubr.bf16.mxu0 0
      %1972 = vmatmul.mubr.bf16.gmra.mrb[0].mxu0 %v1599
      %v1973 = vpop.f32.mrb[0].mxu0
      %v1974 = vadd.f32 0.0, %v1973
      %v1975 = vpop.f32.mrb[0].mxu0
      %v1976 = vpop.f32.mrb[0].mxu0
      %v1977 = vadd.f32 0.0, %v1976
      %v1978 = vpop.f32.mrb[0].mxu0
      %1979 = vdwg.mxu0
      %v1980 = vmax.f32 %v1442, 0.0
      %v1981 = vmax.f32 %v1447, 0.0
      %v1982 = vmax.f32 %v1452, 0.0
      %v1983 = vmax.f32 %v1457, 0.0
      %v1984 = vmax.f32 %v1462, 0.0
      %v1985 = vmax.f32 %v1467, 0.0
      %v1986 = vmax.f32 %v1472, 0.0
      %v1987 = vmax.f32 %v1477, 0.0
      %v1988 = vmax.f32 %v1482, 0.0
      %v1989 = vmax.f32 %v1487, 0.0
      %v1990 = vmax.f32 %v1492, 0.0
      %v1991 = vmax.f32 %v1497, 0.0
      %v1992 = vmax.f32 %v1502, 0.0
      %v1993 = vmax.f32 %v1507, 0.0
      %v1994 = vmax.f32 %v1512, 0.0
      %v1995 = vmax.f32 %v1517, 0.0
      %v1996 = vmax.f32 %v1522, 0.0
      %v1997 = vmax.f32 %v1527, 0.0
      %v1998 = vmax.f32 %v1532, 0.0
      %v1999 = vmax.f32 %v1537, 0.0
      %v2000 = vmax.f32 %v1902, 0.0
      %v2001 = vmax.f32 %v1905, 0.0
      %v2002 = vmax.f32 %v1910, 0.0
      %v2003 = vmax.f32 %v1913, 0.0
      %v2004 = vmax.f32 %v1918, 0.0
      %v2005 = vmax.f32 %v1921, 0.0
      %v2006 = vmax.f32 %v1926, 0.0
      %v2007 = vmax.f32 %v1929, 0.0
      %v2008 = vmax.f32 %v1934, 0.0
      %v2009 = vmax.f32 %v1937, 0.0
      %v2010 = vmax.f32 %v1942, 0.0
      %v2011 = vmax.f32 %v1945, 0.0
      %v2012 = vmax.f32 %v1950, 0.0
      %v2013 = vmax.f32 %v1953, 0.0
      %v2014 = vmax.f32 %v1958, 0.0
      %v2015 = vmax.f32 %v1961, 0.0
      %v2016 = vmax.f32 %v1966, 0.0
      %v2017 = vmax.f32 %v1969, 0.0
      %v2018 = vmax.f32 %v1974, 0.0
      %v2019 = vmax.f32 %v1977, 0.0
      %s2020 = scalar_lea.vmem %s5, 64
      %v2021 = vld [vmem:[%s2020] sm:$0xff]
      %v2022 = vld [vmem:[%s2020 + $0x8] sm:$0xff]
      %v2023 = vld [vmem:[%s2020 + $0x10] sm:$0xff]
      %v2024 = vld [vmem:[%s2020 + $0x18] sm:$0xff]
      %v2025 = vld [vmem:[%s2020 + $0x20] sm:$0xff]
      %v2026 = vld [vmem:[%s2020 + $0x28] sm:$0xff]
      %v2027 = vld [vmem:[%s2020 + $0x30] sm:$0xff]
      %v2028 = vld [vmem:[%s2020 + $0x38] sm:$0xff]
      %v2030 = vsel %vm1081, %v2000, 0
      %v2033 = vsel %vm1081, %v2001, 0
      %v2036 = vsel %vm1081, %v2002, 0
      %v2039 = vsel %vm1081, %v2003, 0
      %v2042 = vsel %vm1081, %v2004, 0
      %v2045 = vsel %vm1081, %v2005, 0
      %v2048 = vsel %vm1081, %v2006, 0
      %v2051 = vsel %vm1081, %v2007, 0
      %v2054 = vsel %vm1081, %v2008, 0
      %v2057 = vsel %vm1081, %v2009, 0
      %v2060 = vsel %vm1081, %v2010, 0
      %v2063 = vsel %vm1081, %v2011, 0
      %v2066 = vsel %vm1081, %v2012, 0
      %v2069 = vsel %vm1081, %v2013, 0
      %v2072 = vsel %vm1081, %v2014, 0
      %v2075 = vsel %vm1081, %v2015, 0
      %v2078 = vsel %vm1081, %v2016, 0
      %v2081 = vsel %vm1081, %v2017, 0
      %v2084 = vsel %vm1081, %v2018, 0
      %v2087 = vsel %vm1081, %v2019, 0
      %2089 = vmatprep.subr.mxu0 0.0
      %2090 = vmatpush1.msra.mxu0 %v2025
      %2091 = vmatprep.subr.mxu0 0.0
      %2092 = vmatpush1.msra.mxu0 %v2026
      %2093 = vmatprep.subr.mxu0 0.0
      %2094 = vmatpush1.msra.mxu0 %v2027
      %2095 = vmatprep.subr.mxu0 0.0
      %2096 = vmatpush1.msra.mxu0 %v2028
      %2097 = vmatprep.subr.mxu0 0.0
      %2098 = vmatpush1.msra.mxu0 0.0
      %2099 = vmatprep.subr.mxu0 0.0
      %2100 = vmatpush1.msra.mxu0 0.0
      %2101 = vmatprep.subr.mxu0 0.0
      %2102 = vmatpush1.msra.mxu0 0.0
      %2103 = vmatprep.subr.mxu0 0.0
      %2104 = vmatpush1.msra.mxu0 0.0
      %2105 = vmatprep.subr.mxu0 0.0
      %2106 = vmatpush1.msra.mxu0 0.0
      %2107 = vmatprep.subr.mxu0 0.0
      %2108 = vmatpush1.msra.mxu0 0.0
      %2109 = vmatprep.subr.mxu0 0.0
      %2110 = vmatpush1.msra.mxu0 0.0
      %2111 = vmatprep.subr.mxu0 0.0
      %2112 = vmatpush1.msra.mxu0 0.0
      %2113 = vmatprep.subr.mxu0 0.0
      %2114 = vmatpush1.msra.mxu0 0.0
      %2115 = vmatprep.subr.mxu0 0.0
      %2116 = vmatpush1.msra.mxu0 0.0
      %2117 = vmatprep.subr.mxu0 0.0
      %2118 = vmatpush1.msra.mxu0 0.0
      %2119 = vmatprep.subr.mxu0 0.0
      %2120 = vmatpush1.msra.mxu0 0.0
      %2121 = vmatprep.subr.mxu0 0.0
      %2122 = vmatpush1.msra.mxu0 0.0
      %2123 = vmatprep.subr.mxu0 0.0
      %2124 = vmatpush1.msra.mxu0 0.0
      %2125 = vmatprep.subr.mxu0 0.0
      %2126 = vmatpush1.msra.mxu0 0.0
      %2127 = vmatprep.subr.mxu0 0.0
      %2128 = vmatpush1.msra.mxu0 0.0
      %2129 = vmatprep.subr.mxu0 0.0
      %2130 = vmatpush1.msra.mxu0 0.0
      %2131 = vmatprep.subr.mxu0 0.0
      %2132 = vmatpush1.msra.mxu0 0.0
      %2133 = vmatprep.subr.mxu0 0.0
      %2134 = vmatpush1.msra.mxu0 0.0
      %2135 = vmatprep.subr.mxu0 0.0
      %2136 = vmatpush1.msra.mxu0 0.0
      %2137 = vmatprep.subr.mxu0 0.0
      %2138 = vmatpush1.msra.mxu0 0.0
      %2139 = vmatprep.subr.mxu0 0.0
      %2140 = vmatpush1.msra.mxu0 0.0
      %2141 = vmatprep.subr.mxu0 0.0
      %2142 = vmatpush1.msra.mxu0 0.0
      %2143 = vmatprep.subr.mxu0 0.0
      %2144 = vmatpush1.msra.mxu0 0.0
      %2145 = vmatprep.subr.mxu0 0.0
      %2146 = vmatpush1.msra.mxu0 0.0
      %2147 = vmatprep.subr.mxu0 0.0
      %2148 = vmatpush1.msra.mxu0 0.0
      %2149 = vmatprep.subr.mxu0 0.0
      %2150 = vmatpush1.msra.mxu0 0.0
      %2151 = vmatprep.subr.mxu0 0.0
      %2152 = vmatpush1.msra.mxu0 0.0
      %2153 = vmatprep.mubr.f32.mxu0 0.0
      %2154 = vmatmul.mubr.f32.gmra.mrb[0].mxu0 %v2030
      %v2155 = vpop.f32.mrb[0].mxu0
      %v2156 = vadd.f32 0.0, %v2155
      %v2157 = vpop.f32.mrb[0].mxu0
      %2158 = vmatprep.mubr.f32.mxu0 0.0
      %2159 = vmatmul.mubr.f32.gmra.mrb[0].mxu0 %v2033
      %v2160 = vpop.f32.mrb[0].mxu0
      %v2161 = vadd.f32 0.0, %v2160
      %v2162 = vpop.f32.mrb[0].mxu0
      %2163 = vmatprep.mubr.f32.mxu0 0.0
      %2164 = vmatmul.mubr.f32.gmra.mrb[0].mxu0 %v2036
      %v2165 = vpop.f32.mrb[0].mxu0
      %v2166 = vadd.f32 0.0, %v2165
      %v2167 = vpop.f32.mrb[0].mxu0
      %2168 = vmatprep.mubr.f32.mxu0 0.0
      %2169 = vmatmul.mubr.f32.gmra.mrb[0].mxu0 %v2039
      %v2170 = vpop.f32.mrb[0].mxu0
      %v2171 = vadd.f32 0.0, %v2170
      %v2172 = vpop.f32.mrb[0].mxu0
      %2173 = vmatprep.mubr.f32.mxu0 0.0
      %2174 = vmatmul.mubr.f32.gmra.mrb[0].mxu0 %v2042
      %v2175 = vpop.f32.mrb[0].mxu0
      %v2176 = vadd.f32 0.0, %v2175
      %v2177 = vpop.f32.mrb[0].mxu0
      %2178 = vmatprep.mubr.f32.mxu0 0.0
      %2179 = vmatmul.mubr.f32.gmra.mrb[0].mxu0 %v2045
      %v2180 = vpop.f32.mrb[0].mxu0
      %v2181 = vadd.f32 0.0, %v2180
      %v2182 = vpop.f32.mrb[0].mxu0
      %2183 = vmatprep.mubr.f32.mxu0 0.0
      %2184 = vmatmul.mubr.f32.gmra.mrb[0].mxu0 %v2048
      %v2185 = vpop.f32.mrb[0].mxu0
      %v2186 = vadd.f32 0.0, %v2185
      %v2187 = vpop.f32.mrb[0].mxu0
      %2188 = vmatprep.mubr.f32.mxu0 0.0
      %2189 = vmatmul.mubr.f32.gmra.mrb[0].mxu0 %v2051
      %v2190 = vpop.f32.mrb[0].mxu0
      %v2191 = vadd.f32 0.0, %v2190
      %v2192 = vpop.f32.mrb[0].mxu0
      %2193 = vmatprep.mubr.f32.mxu0 0.0
      %2194 = vmatmul.mubr.f32.gmra.mrb[0].mxu0 %v2054
      %v2195 = vpop.f32.mrb[0].mxu0
      %v2196 = vadd.f32 0.0, %v2195
      %v2197 = vpop.f32.mrb[0].mxu0
      %2198 = vmatprep.mubr.f32.mxu0 0.0
      %2199 = vmatmul.mubr.f32.gmra.mrb[0].mxu0 %v2057
      %v2200 = vpop.f32.mrb[0].mxu0
      %v2201 = vadd.f32 0.0, %v2200
      %v2202 = vpop.f32.mrb[0].mxu0
      %2203 = vmatprep.mubr.f32.mxu0 0.0
      %2204 = vmatmul.mubr.f32.gmra.mrb[0].mxu0 %v2060
      %v2205 = vpop.f32.mrb[0].mxu0
      %v2206 = vadd.f32 0.0, %v2205
      %v2207 = vpop.f32.mrb[0].mxu0
      %2208 = vmatprep.mubr.f32.mxu0 0.0
      %2209 = vmatmul.mubr.f32.gmra.mrb[0].mxu0 %v2063
      %v2210 = vpop.f32.mrb[0].mxu0
      %v2211 = vadd.f32 0.0, %v2210
      %v2212 = vpop.f32.mrb[0].mxu0
      %2213 = vmatprep.mubr.f32.mxu0 0.0
      %2214 = vmatmul.mubr.f32.gmra.mrb[0].mxu0 %v2066
      %v2215 = vpop.f32.mrb[0].mxu0
      %v2216 = vadd.f32 0.0, %v2215
      %v2217 = vpop.f32.mrb[0].mxu0
      %2218 = vmatprep.mubr.f32.mxu0 0.0
      %2219 = vmatmul.mubr.f32.gmra.mrb[0].mxu0 %v2069
      %v2220 = vpop.f32.mrb[0].mxu0
      %v2221 = vadd.f32 0.0, %v2220
      %v2222 = vpop.f32.mrb[0].mxu0
      %2223 = vmatprep.mubr.f32.mxu0 0.0
      %2224 = vmatmul.mubr.f32.gmra.mrb[0].mxu0 %v2072
      %v2225 = vpop.f32.mrb[0].mxu0
      %v2226 = vadd.f32 0.0, %v2225
      %v2227 = vpop.f32.mrb[0].mxu0
      %2228 = vmatprep.mubr.f32.mxu0 0.0
      %2229 = vmatmul.mubr.f32.gmra.mrb[0].mxu0 %v2075
      %v2230 = vpop.f32.mrb[0].mxu0
      %v2231 = vadd.f32 0.0, %v2230
      %v2232 = vpop.f32.mrb[0].mxu0
      %2233 = vmatprep.mubr.f32.mxu0 0.0
      %2234 = vmatmul.mubr.f32.gmra.mrb[0].mxu0 %v2078
      %v2235 = vpop.f32.mrb[0].mxu0
      %v2236 = vadd.f32 0.0, %v2235
      %v2237 = vpop.f32.mrb[0].mxu0
      %2238 = vmatprep.mubr.f32.mxu0 0.0
      %2239 = vmatmul.mubr.f32.gmra.mrb[0].mxu0 %v2081
      %v2240 = vpop.f32.mrb[0].mxu0
      %v2241 = vadd.f32 0.0, %v2240
      %v2242 = vpop.f32.mrb[0].mxu0
      %2243 = vmatprep.mubr.f32.mxu0 0.0
      %2244 = vmatmul.mubr.f32.gmra.mrb[0].mxu0 %v2084
      %v2245 = vpop.f32.mrb[0].mxu0
      %v2246 = vadd.f32 0.0, %v2245
      %v2247 = vpop.f32.mrb[0].mxu0
      %2248 = vmatprep.mubr.f32.mxu0 0.0
      %2249 = vmatmul.mubr.f32.gmra.mrb[0].mxu0 %v2087
      %v2250 = vpop.f32.mrb[0].mxu0
      %v2251 = vadd.f32 0.0, %v2250
      %v2252 = vpop.f32.mrb[0].mxu0
      %2253 = vdwg.mxu0
      %v2255 = vsel %vm1081, %v1980, 0
      %v2258 = vsel %vm1081, %v1981, 0
      %v2261 = vsel %vm1081, %v1982, 0
      %v2264 = vsel %vm1081, %v1983, 0
      %v2267 = vsel %vm1081, %v1984, 0
      %v2270 = vsel %vm1081, %v1985, 0
      %v2273 = vsel %vm1081, %v1986, 0
      %v2276 = vsel %vm1081, %v1987, 0
      %v2279 = vsel %vm1081, %v1988, 0
      %v2282 = vsel %vm1081, %v1989, 0
      %v2285 = vsel %vm1081, %v1990, 0
      %v2288 = vsel %vm1081, %v1991, 0
      %v2291 = vsel %vm1081, %v1992, 0
      %v2294 = vsel %vm1081, %v1993, 0
      %v2297 = vsel %vm1081, %v1994, 0
      %v2300 = vsel %vm1081, %v1995, 0
      %v2303 = vsel %vm1081, %v1996, 0
      %v2306 = vsel %vm1081, %v1997, 0
      %v2309 = vsel %vm1081, %v1998, 0
      %v2312 = vsel %vm1081, %v1999, 0
      %2314 = vmatprep.subr.mxu0 0.0
      %2315 = vmatpush1.msra.mxu0 %v2021
      %2316 = vmatprep.subr.mxu0 0.0
      %2317 = vmatpush1.msra.mxu0 %v2022
      %2318 = vmatprep.subr.mxu0 0.0
      %2319 = vmatpush1.msra.mxu0 %v2023
      %2320 = vmatprep.subr.mxu0 0.0
      %2321 = vmatpush1.msra.mxu0 %v2024
      %2322 = vmatprep.subr.mxu0 0.0
      %2323 = vmatpush1.msra.mxu0 0.0
      %2324 = vmatprep.subr.mxu0 0.0
      %2325 = vmatpush1.msra.mxu0 0.0
      %2326 = vmatprep.subr.mxu0 0.0
      %2327 = vmatpush1.msra.mxu0 0.0
      %2328 = vmatprep.subr.mxu0 0.0
      %2329 = vmatpush1.msra.mxu0 0.0
      %2330 = vmatprep.subr.mxu0 0.0
      %2331 = vmatpush1.msra.mxu0 0.0
      %2332 = vmatprep.subr.mxu0 0.0
      %2333 = vmatpush1.msra.mxu0 0.0
      %2334 = vmatprep.subr.mxu0 0.0
      %2335 = vmatpush1.msra.mxu0 0.0
      %2336 = vmatprep.subr.mxu0 0.0
      %2337 = vmatpush1.msra.mxu0 0.0
      %2338 = vmatprep.subr.mxu0 0.0
      %2339 = vmatpush1.msra.mxu0 0.0
      %2340 = vmatprep.subr.mxu0 0.0
      %2341 = vmatpush1.msra.mxu0 0.0
      %2342 = vmatprep.subr.mxu0 0.0
      %2343 = vmatpush1.msra.mxu0 0.0
      %2344 = vmatprep.subr.mxu0 0.0
      %2345 = vmatpush1.msra.mxu0 0.0
      %2346 = vmatprep.subr.mxu0 0.0
      %2347 = vmatpush1.msra.mxu0 0.0
      %2348 = vmatprep.subr.mxu0 0.0
      %2349 = vmatpush1.msra.mxu0 0.0
      %2350 = vmatprep.subr.mxu0 0.0
      %2351 = vmatpush1.msra.mxu0 0.0
      %2352 = vmatprep.subr.mxu0 0.0
      %2353 = vmatpush1.msra.mxu0 0.0
      %2354 = vmatprep.subr.mxu0 0.0
      %2355 = vmatpush1.msra.mxu0 0.0
      %2356 = vmatprep.subr.mxu0 0.0
      %2357 = vmatpush1.msra.mxu0 0.0
      %2358 = vmatprep.subr.mxu0 0.0
      %2359 = vmatpush1.msra.mxu0 0.0
      %2360 = vmatprep.subr.mxu0 0.0
      %2361 = vmatpush1.msra.mxu0 0.0
      %2362 = vmatprep.subr.mxu0 0.0
      %2363 = vmatpush1.msra.mxu0 0.0
      %2364 = vmatprep.subr.mxu0 0.0
      %2365 = vmatpush1.msra.mxu0 0.0
      %2366 = vmatprep.subr.mxu0 0.0
      %2367 = vmatpush1.msra.mxu0 0.0
      %2368 = vmatprep.subr.mxu0 0.0
      %2369 = vmatpush1.msra.mxu0 0.0
      %2370 = vmatprep.subr.mxu0 0.0
      %2371 = vmatpush1.msra.mxu0 0.0
      %2372 = vmatprep.subr.mxu0 0.0
      %2373 = vmatpush1.msra.mxu0 0.0
      %2374 = vmatprep.subr.mxu0 0.0
      %2375 = vmatpush1.msra.mxu0 0.0
      %2376 = vmatprep.subr.mxu0 0.0
      %2377 = vmatpush1.msra.mxu0 0.0
      %2378 = vmatprep.mubr.f32.mxu0 0.0
      %2379 = vmatmul.mubr.f32.gmra.mrb[0].mxu0 %v2255
      %v2380 = vpop.f32.mrb[0].mxu0
      %v2381 = vadd.f32 %v2156, %v2380
      %v2382 = vpop.f32.mrb[0].mxu0
      %2383 = vmatprep.mubr.f32.mxu0 0.0
      %2384 = vmatmul.mubr.f32.gmra.mrb[0].mxu0 %v2258
      %v2385 = vpop.f32.mrb[0].mxu0
      %v2386 = vadd.f32 %v2161, %v2385
      %v2387 = vpop.f32.mrb[0].mxu0
      %2388 = vmatprep.mubr.f32.mxu0 0.0
      %2389 = vmatmul.mubr.f32.gmra.mrb[0].mxu0 %v2261
      %v2390 = vpop.f32.mrb[0].mxu0
      %v2391 = vadd.f32 %v2166, %v2390
      %v2392 = vpop.f32.mrb[0].mxu0
      %2393 = vmatprep.mubr.f32.mxu0 0.0
      %2394 = vmatmul.mubr.f32.gmra.mrb[0].mxu0 %v2264
      %v2395 = vpop.f32.mrb[0].mxu0
      %v2396 = vadd.f32 %v2171, %v2395
      %v2397 = vpop.f32.mrb[0].mxu0
      %2398 = vmatprep.mubr.f32.mxu0 0.0
      %2399 = vmatmul.mubr.f32.gmra.mrb[0].mxu0 %v2267
      %v2400 = vpop.f32.mrb[0].mxu0
      %v2401 = vadd.f32 %v2176, %v2400
      %v2402 = vpop.f32.mrb[0].mxu0
      %2403 = vmatprep.mubr.f32.mxu0 0.0
      %2404 = vmatmul.mubr.f32.gmra.mrb[0].mxu0 %v2270
      %v2405 = vpop.f32.mrb[0].mxu0
      %v2406 = vadd.f32 %v2181, %v2405
      %v2407 = vpop.f32.mrb[0].mxu0
      %2408 = vmatprep.mubr.f32.mxu0 0.0
      %2409 = vmatmul.mubr.f32.gmra.mrb[0].mxu0 %v2273
      %v2410 = vpop.f32.mrb[0].mxu0
      %v2411 = vadd.f32 %v2186, %v2410
      %v2412 = vpop.f32.mrb[0].mxu0
      %2413 = vmatprep.mubr.f32.mxu0 0.0
      %2414 = vmatmul.mubr.f32.gmra.mrb[0].mxu0 %v2276
      %v2415 = vpop.f32.mrb[0].mxu0
      %v2416 = vadd.f32 %v2191, %v2415
      %v2417 = vpop.f32.mrb[0].mxu0
      %2418 = vmatprep.mubr.f32.mxu0 0.0
      %2419 = vmatmul.mubr.f32.gmra.mrb[0].mxu0 %v2279
      %v2420 = vpop.f32.mrb[0].mxu0
      %v2421 = vadd.f32 %v2196, %v2420
      %v2422 = vpop.f32.mrb[0].mxu0
      %2423 = vmatprep.mubr.f32.mxu0 0.0
      %2424 = vmatmul.mubr.f32.gmra.mrb[0].mxu0 %v2282
      %v2425 = vpop.f32.mrb[0].mxu0
      %v2426 = vadd.f32 %v2201, %v2425
      %v2427 = vpop.f32.mrb[0].mxu0
      %2428 = vmatprep.mubr.f32.mxu0 0.0
      %2429 = vmatmul.mubr.f32.gmra.mrb[0].mxu0 %v2285
      %v2430 = vpop.f32.mrb[0].mxu0
      %v2431 = vadd.f32 %v2206, %v2430
      %v2432 = vpop.f32.mrb[0].mxu0
      %2433 = vmatprep.mubr.f32.mxu0 0.0
      %2434 = vmatmul.mubr.f32.gmra.mrb[0].mxu0 %v2288
      %v2435 = vpop.f32.mrb[0].mxu0
      %v2436 = vadd.f32 %v2211, %v2435
      %v2437 = vpop.f32.mrb[0].mxu0
      %2438 = vmatprep.mubr.f32.mxu0 0.0
      %2439 = vmatmul.mubr.f32.gmra.mrb[0].mxu0 %v2291
      %v2440 = vpop.f32.mrb[0].mxu0
      %v2441 = vadd.f32 %v2216, %v2440
      %v2442 = vpop.f32.mrb[0].mxu0
      %2443 = vmatprep.mubr.f32.mxu0 0.0
      %2444 = vmatmul.mubr.f32.gmra.mrb[0].mxu0 %v2294
      %v2445 = vpop.f32.mrb[0].mxu0
      %v2446 = vadd.f32 %v2221, %v2445
      %v2447 = vpop.f32.mrb[0].mxu0
      %2448 = vmatprep.mubr.f32.mxu0 0.0
      %2449 = vmatmul.mubr.f32.gmra.mrb[0].mxu0 %v2297
      %v2450 = vpop.f32.mrb[0].mxu0
      %v2451 = vadd.f32 %v2226, %v2450
      %v2452 = vpop.f32.mrb[0].mxu0
      %2453 = vmatprep.mubr.f32.mxu0 0.0
      %2454 = vmatmul.mubr.f32.gmra.mrb[0].mxu0 %v2300
      %v2455 = vpop.f32.mrb[0].mxu0
      %v2456 = vadd.f32 %v2231, %v2455
      %v2457 = vpop.f32.mrb[0].mxu0
      %2458 = vmatprep.mubr.f32.mxu0 0.0
      %2459 = vmatmul.mubr.f32.gmra.mrb[0].mxu0 %v2303
      %v2460 = vpop.f32.mrb[0].mxu0
      %v2461 = vadd.f32 %v2236, %v2460
      %v2462 = vpop.f32.mrb[0].mxu0
      %2463 = vmatprep.mubr.f32.mxu0 0.0
      %2464 = vmatmul.mubr.f32.gmra.mrb[0].mxu0 %v2306
      %v2465 = vpop.f32.mrb[0].mxu0
      %v2466 = vadd.f32 %v2241, %v2465
      %v2467 = vpop.f32.mrb[0].mxu0
      %2468 = vmatprep.mubr.f32.mxu0 0.0
      %2469 = vmatmul.mubr.f32.gmra.mrb[0].mxu0 %v2309
      %v2470 = vpop.f32.mrb[0].mxu0
      %v2471 = vadd.f32 %v2246, %v2470
      %v2472 = vpop.f32.mrb[0].mxu0
      %2473 = vmatprep.mubr.f32.mxu0 0.0
      %2474 = vmatmul.mubr.f32.gmra.mrb[0].mxu0 %v2312
      %v2475 = vpop.f32.mrb[0].mxu0
      %v2476 = vadd.f32 %v2251, %v2475
      %v2477 = vpop.f32.mrb[0].mxu0
      %2478 = vdwg.mxu0
      %s2479 = scalar_lea.vmem %s6, 1
      %v2480 = vld [vmem:[%s2479] sm:$0x1]
      %v2482 = vlaneseq
      %v2483 = vshrl.u32 %v2482, 7
      %v2484 = vsub.s32 0, %v2483
      %v2485 = vrot.slane %v2480, %v2484
      %v2487 = vadd.f32 %v2381, %v2485
      %v2488 = vadd.f32 %v2386, %v2485
      %v2489 = vadd.f32 %v2391, %v2485
      %v2490 = vadd.f32 %v2396, %v2485
      %v2491 = vadd.f32 %v2401, %v2485
      %v2492 = vadd.f32 %v2406, %v2485
      %v2493 = vadd.f32 %v2411, %v2485
      %v2494 = vadd.f32 %v2416, %v2485
      %v2495 = vadd.f32 %v2421, %v2485
      %v2496 = vadd.f32 %v2426, %v2485
      %v2497 = vadd.f32 %v2431, %v2485
      %v2498 = vadd.f32 %v2436, %v2485
      %v2499 = vadd.f32 %v2441, %v2485
      %v2500 = vadd.f32 %v2446, %v2485
      %v2501 = vadd.f32 %v2451, %v2485
      %v2502 = vadd.f32 %v2456, %v2485
      %v2503 = vadd.f32 %v2461, %v2485
      %v2504 = vadd.f32 %v2466, %v2485
      %v2505 = vadd.f32 %v2471, %v2485
      %v2506 = vadd.f32 %v2476, %v2485
      %v2507 = vmax.f32 %v2487, 0.0
      %v2508 = vmax.f32 %v2488, 0.0
      %v2509 = vmax.f32 %v2489, 0.0
      %v2510 = vmax.f32 %v2490, 0.0
      %v2511 = vmax.f32 %v2491, 0.0
      %v2512 = vmax.f32 %v2492, 0.0
      %v2513 = vmax.f32 %v2493, 0.0
      %v2514 = vmax.f32 %v2494, 0.0
      %v2515 = vmax.f32 %v2495, 0.0
      %v2516 = vmax.f32 %v2496, 0.0
      %v2517 = vmax.f32 %v2497, 0.0
      %v2518 = vmax.f32 %v2498, 0.0
      %v2519 = vmax.f32 %v2499, 0.0
      %v2520 = vmax.f32 %v2500, 0.0
      %v2521 = vmax.f32 %v2501, 0.0
      %v2522 = vmax.f32 %v2502, 0.0
      %v2523 = vmax.f32 %v2503, 0.0
      %v2524 = vmax.f32 %v2504, 0.0
      %v2525 = vmax.f32 %v2505, 0.0
      %v2526 = vmax.f32 %v2506, 0.0
      %s2527 = scalar_lea.vmem %s7, 32
      %v2528 = vld [vmem:[%s2527] sm:$0xff]
      %v2529 = vld [vmem:[%s2527 + $0x8] sm:$0xff]
      %v2530 = vld [vmem:[%s2527 + $0x10] sm:$0xff]
      %v2531 = vld [vmem:[%s2527 + $0x18] sm:$0xff]
      %s2532 = scalar_lea.vmem %s8, 1
      %v2533 = vld [vmem:[%s2532] sm:$0x1]
      %v2535 = vlaneseq
      %v2536 = vshrl.u32 %v2535, 7
      %v2537 = vsub.s32 0, %v2536
      %v2538 = vrot.slane %v2533, %v2537
      %v2541 = vsel %vm1081, %v2507, 0
      %v2544 = vsel %vm1081, %v2508, 0
      %v2547 = vsel %vm1081, %v2509, 0
      %v2550 = vsel %vm1081, %v2510, 0
      %v2553 = vsel %vm1081, %v2511, 0
      %v2556 = vsel %vm1081, %v2512, 0
      %v2559 = vsel %vm1081, %v2513, 0
      %v2562 = vsel %vm1081, %v2514, 0
      %v2565 = vsel %vm1081, %v2515, 0
      %v2568 = vsel %vm1081, %v2516, 0
      %v2571 = vsel %vm1081, %v2517, 0
      %v2574 = vsel %vm1081, %v2518, 0
      %v2577 = vsel %vm1081, %v2519, 0
      %v2580 = vsel %vm1081, %v2520, 0
      %v2583 = vsel %vm1081, %v2521, 0
      %v2586 = vsel %vm1081, %v2522, 0
      %v2589 = vsel %vm1081, %v2523, 0
      %v2592 = vsel %vm1081, %v2524, 0
      %v2595 = vsel %vm1081, %v2525, 0
      %v2598 = vsel %vm1081, %v2526, 0
      %2600 = vmatprep.subr.mxu0 0.0
      %2601 = vmatpush1.msra.mxu0 %v2528
      %2602 = vmatprep.subr.mxu0 0.0
      %2603 = vmatpush1.msra.mxu0 %v2529
      %2604 = vmatprep.subr.mxu0 0.0
      %2605 = vmatpush1.msra.mxu0 %v2530
      %2606 = vmatprep.subr.mxu0 0.0
      %2607 = vmatpush1.msra.mxu0 %v2531
      %2608 = vmatprep.subr.mxu0 0.0
      %2609 = vmatpush1.msra.mxu0 0.0
      %2610 = vmatprep.subr.mxu0 0.0
      %2611 = vmatpush1.msra.mxu0 0.0
      %2612 = vmatprep.subr.mxu0 0.0
      %2613 = vmatpush1.msra.mxu0 0.0
      %2614 = vmatprep.subr.mxu0 0.0
      %2615 = vmatpush1.msra.mxu0 0.0
      %2616 = vmatprep.subr.mxu0 0.0
      %2617 = vmatpush1.msra.mxu0 0.0
      %2618 = vmatprep.subr.mxu0 0.0
      %2619 = vmatpush1.msra.mxu0 0.0
      %2620 = vmatprep.subr.mxu0 0.0
      %2621 = vmatpush1.msra.mxu0 0.0
      %2622 = vmatprep.subr.mxu0 0.0
      %2623 = vmatpush1.msra.mxu0 0.0
      %2624 = vmatprep.subr.mxu0 0.0
      %2625 = vmatpush1.msra.mxu0 0.0
      %2626 = vmatprep.subr.mxu0 0.0
      %2627 = vmatpush1.msra.mxu0 0.0
      %2628 = vmatprep.subr.mxu0 0.0
      %2629 = vmatpush1.msra.mxu0 0.0
      %2630 = vmatprep.subr.mxu0 0.0
      %2631 = vmatpush1.msra.mxu0 0.0
      %2632 = vmatprep.subr.mxu0 0.0
      %2633 = vmatpush1.msra.mxu0 0.0
      %2634 = vmatprep.subr.mxu0 0.0
      %2635 = vmatpush1.msra.mxu0 0.0
      %2636 = vmatprep.subr.mxu0 0.0
      %2637 = vmatpush1.msra.mxu0 0.0
      %2638 = vmatprep.subr.mxu0 0.0
      %2639 = vmatpush1.msra.mxu0 0.0
      %2640 = vmatprep.subr.mxu0 0.0
      %2641 = vmatpush1.msra.mxu0 0.0
      %2642 = vmatprep.subr.mxu0 0.0
      %2643 = vmatpush1.msra.mxu0 0.0
      %2644 = vmatprep.subr.mxu0 0.0
      %2645 = vmatpush1.msra.mxu0 0.0
      %2646 = vmatprep.subr.mxu0 0.0
      %2647 = vmatpush1.msra.mxu0 0.0
      %2648 = vmatprep.subr.mxu0 0.0
      %2649 = vmatpush1.msra.mxu0 0.0
      %2650 = vmatprep.subr.mxu0 0.0
      %2651 = vmatpush1.msra.mxu0 0.0
      %2652 = vmatprep.subr.mxu0 0.0
      %2653 = vmatpush1.msra.mxu0 0.0
      %2654 = vmatprep.subr.mxu0 0.0
      %2655 = vmatpush1.msra.mxu0 0.0
      %2656 = vmatprep.subr.mxu0 0.0
      %2657 = vmatpush1.msra.mxu0 0.0
      %2658 = vmatprep.subr.mxu0 0.0
      %2659 = vmatpush1.msra.mxu0 0.0
      %2660 = vmatprep.subr.mxu0 0.0
      %2661 = vmatpush1.msra.mxu0 0.0
      %2662 = vmatprep.subr.mxu0 0.0
      %2663 = vmatpush1.msra.mxu0 0.0
      %2664 = vmatprep.mubr.f32.mxu0 0.0
      %2665 = vmatmul.mubr.f32.gmra.mrb[0].mxu0 %v2541
      %v2666 = vpop.f32.mrb[0].mxu0
      %v2667 = vadd.f32 %v2538, %v2666
      %v2668 = vpop.f32.mrb[0].mxu0
      %2669 = vmatprep.mubr.f32.mxu0 0.0
      %2670 = vmatmul.mubr.f32.gmra.mrb[0].mxu0 %v2544
      %v2671 = vpop.f32.mrb[0].mxu0
      %v2672 = vadd.f32 %v2538, %v2671
      %v2673 = vpop.f32.mrb[0].mxu0
      %2674 = vmatprep.mubr.f32.mxu0 0.0
      %2675 = vmatmul.mubr.f32.gmra.mrb[0].mxu0 %v2547
      %v2676 = vpop.f32.mrb[0].mxu0
      %v2677 = vadd.f32 %v2538, %v2676
      %v2678 = vpop.f32.mrb[0].mxu0
      %2679 = vmatprep.mubr.f32.mxu0 0.0
      %2680 = vmatmul.mubr.f32.gmra.mrb[0].mxu0 %v2550
      %v2681 = vpop.f32.mrb[0].mxu0
      %v2682 = vadd.f32 %v2538, %v2681
      %v2683 = vpop.f32.mrb[0].mxu0
      %2684 = vmatprep.mubr.f32.mxu0 0.0
      %2685 = vmatmul.mubr.f32.gmra.mrb[0].mxu0 %v2553
      %v2686 = vpop.f32.mrb[0].mxu0
      %v2687 = vadd.f32 %v2538, %v2686
      %v2688 = vpop.f32.mrb[0].mxu0
      %2689 = vmatprep.mubr.f32.mxu0 0.0
      %2690 = vmatmul.mubr.f32.gmra.mrb[0].mxu0 %v2556
      %v2691 = vpop.f32.mrb[0].mxu0
      %v2692 = vadd.f32 %v2538, %v2691
      %v2693 = vpop.f32.mrb[0].mxu0
      %2694 = vmatprep.mubr.f32.mxu0 0.0
      %2695 = vmatmul.mubr.f32.gmra.mrb[0].mxu0 %v2559
      %v2696 = vpop.f32.mrb[0].mxu0
      %v2697 = vadd.f32 %v2538, %v2696
      %v2698 = vpop.f32.mrb[0].mxu0
      %2699 = vmatprep.mubr.f32.mxu0 0.0
      %2700 = vmatmul.mubr.f32.gmra.mrb[0].mxu0 %v2562
      %v2701 = vpop.f32.mrb[0].mxu0
      %v2702 = vadd.f32 %v2538, %v2701
      %v2703 = vpop.f32.mrb[0].mxu0
      %2704 = vmatprep.mubr.f32.mxu0 0.0
      %2705 = vmatmul.mubr.f32.gmra.mrb[0].mxu0 %v2565
      %v2706 = vpop.f32.mrb[0].mxu0
      %v2707 = vadd.f32 %v2538, %v2706
      %v2708 = vpop.f32.mrb[0].mxu0
      %2709 = vmatprep.mubr.f32.mxu0 0.0
      %2710 = vmatmul.mubr.f32.gmra.mrb[0].mxu0 %v2568
      %v2711 = vpop.f32.mrb[0].mxu0
      %v2712 = vadd.f32 %v2538, %v2711
      %v2713 = vpop.f32.mrb[0].mxu0
      %2714 = vmatprep.mubr.f32.mxu0 0.0
      %2715 = vmatmul.mubr.f32.gmra.mrb[0].mxu0 %v2571
      %v2716 = vpop.f32.mrb[0].mxu0
      %v2717 = vadd.f32 %v2538, %v2716
      %v2718 = vpop.f32.mrb[0].mxu0
      %2719 = vmatprep.mubr.f32.mxu0 0.0
      %2720 = vmatmul.mubr.f32.gmra.mrb[0].mxu0 %v2574
      %v2721 = vpop.f32.mrb[0].mxu0
      %v2722 = vadd.f32 %v2538, %v2721
      %v2723 = vpop.f32.mrb[0].mxu0
      %2724 = vmatprep.mubr.f32.mxu0 0.0
      %2725 = vmatmul.mubr.f32.gmra.mrb[0].mxu0 %v2577
      %v2726 = vpop.f32.mrb[0].mxu0
      %v2727 = vadd.f32 %v2538, %v2726
      %v2728 = vpop.f32.mrb[0].mxu0
      %2729 = vmatprep.mubr.f32.mxu0 0.0
      %2730 = vmatmul.mubr.f32.gmra.mrb[0].mxu0 %v2580
      %v2731 = vpop.f32.mrb[0].mxu0
      %v2732 = vadd.f32 %v2538, %v2731
      %v2733 = vpop.f32.mrb[0].mxu0
      %2734 = vmatprep.mubr.f32.mxu0 0.0
      %2735 = vmatmul.mubr.f32.gmra.mrb[0].mxu0 %v2583
      %v2736 = vpop.f32.mrb[0].mxu0
      %v2737 = vadd.f32 %v2538, %v2736
      %v2738 = vpop.f32.mrb[0].mxu0
      %2739 = vmatprep.mubr.f32.mxu0 0.0
      %2740 = vmatmul.mubr.f32.gmra.mrb[0].mxu0 %v2586
      %v2741 = vpop.f32.mrb[0].mxu0
      %v2742 = vadd.f32 %v2538, %v2741
      %v2743 = vpop.f32.mrb[0].mxu0
      %2744 = vmatprep.mubr.f32.mxu0 0.0
      %2745 = vmatmul.mubr.f32.gmra.mrb[0].mxu0 %v2589
      %v2746 = vpop.f32.mrb[0].mxu0
      %v2747 = vadd.f32 %v2538, %v2746
      %v2748 = vpop.f32.mrb[0].mxu0
      %2749 = vmatprep.mubr.f32.mxu0 0.0
      %2750 = vmatmul.mubr.f32.gmra.mrb[0].mxu0 %v2592
      %v2751 = vpop.f32.mrb[0].mxu0
      %v2752 = vadd.f32 %v2538, %v2751
      %v2753 = vpop.f32.mrb[0].mxu0
      %2754 = vmatprep.mubr.f32.mxu0 0.0
      %2755 = vmatmul.mubr.f32.gmra.mrb[0].mxu0 %v2595
      %v2756 = vpop.f32.mrb[0].mxu0
      %v2757 = vadd.f32 %v2538, %v2756
      %v2758 = vpop.f32.mrb[0].mxu0
      %2759 = vmatprep.mubr.f32.mxu0 0.0
      %2760 = vmatmul.mubr.f32.gmra.mrb[0].mxu0 %v2598
      %v2761 = vpop.f32.mrb[0].mxu0
      %v2762 = vadd.f32 %v2538, %v2761
      %v2763 = vpop.f32.mrb[0].mxu0
      %2764 = vdwg.mxu0
      %s2765 = scalar_lea.vmem %s9, 64
      %v2766 = vld [vmem:[%s2765] sm:$0xff]
      %v2767 = vld [vmem:[%s2765 + $0x8] sm:$0xff]
      %v2768 = vld [vmem:[%s2765 + $0x10] sm:$0xff]
      %v2769 = vld [vmem:[%s2765 + $0x18] sm:$0xff]
      %v2770 = vld [vmem:[%s2765 + $0x20] sm:$0xff]
      %v2771 = vld [vmem:[%s2765 + $0x28] sm:$0xff]
      %v2772 = vld [vmem:[%s2765 + $0x30] sm:$0xff]
      %v2773 = vld [vmem:[%s2765 + $0x38] sm:$0xff]
      %v2775 = vsel %vm1081, %v1902, 0
      %v2778 = vsel %vm1081, %v1905, 0
      %v2781 = vsel %vm1081, %v1910, 0
      %v2784 = vsel %vm1081, %v1913, 0
      %v2787 = vsel %vm1081, %v1918, 0
      %v2790 = vsel %vm1081, %v1921, 0
      %v2793 = vsel %vm1081, %v1926, 0
      %v2796 = vsel %vm1081, %v1929, 0
      %v2799 = vsel %vm1081, %v1934, 0
      %v2802 = vsel %vm1081, %v1937, 0
      %v2805 = vsel %vm1081, %v1942, 0
      %v2808 = vsel %vm1081, %v1945, 0
      %v2811 = vsel %vm1081, %v1950, 0
      %v2814 = vsel %vm1081, %v1953, 0
      %v2817 = vsel %vm1081, %v1958, 0
      %v2820 = vsel %vm1081, %v1961, 0
      %v2823 = vsel %vm1081, %v1966, 0
      %v2826 = vsel %vm1081, %v1969, 0
      %v2829 = vsel %vm1081, %v1974, 0
      %v2832 = vsel %vm1081, %v1977, 0
      %2834 = vmatprep.subr.mxu0 0.0
      %2835 = vmatpush1.msra.mxu0 %v2770
      %2836 = vmatprep.subr.mxu0 0.0
      %2837 = vmatpush1.msra.mxu0 %v2771
      %2838 = vmatprep.subr.mxu0 0.0
      %2839 = vmatpush1.msra.mxu0 %v2772
      %2840 = vmatprep.subr.mxu0 0.0
      %2841 = vmatpush1.msra.mxu0 %v2773
      %2842 = vmatprep.subr.mxu0 0.0
      %2843 = vmatpush1.msra.mxu0 0.0
      %2844 = vmatprep.subr.mxu0 0.0
      %2845 = vmatpush1.msra.mxu0 0.0
      %2846 = vmatprep.subr.mxu0 0.0
      %2847 = vmatpush1.msra.mxu0 0.0
      %2848 = vmatprep.subr.mxu0 0.0
      %2849 = vmatpush1.msra.mxu0 0.0
      %2850 = vmatprep.subr.mxu0 0.0
      %2851 = vmatpush1.msra.mxu0 0.0
      %2852 = vmatprep.subr.mxu0 0.0
      %2853 = vmatpush1.msra.mxu0 0.0
      %2854 = vmatprep.subr.mxu0 0.0
      %2855 = vmatpush1.msra.mxu0 0.0
      %2856 = vmatprep.subr.mxu0 0.0
      %2857 = vmatpush1.msra.mxu0 0.0
      %2858 = vmatprep.subr.mxu0 0.0
      %2859 = vmatpush1.msra.mxu0 0.0
      %2860 = vmatprep.subr.mxu0 0.0
      %2861 = vmatpush1.msra.mxu0 0.0
      %2862 = vmatprep.subr.mxu0 0.0
      %2863 = vmatpush1.msra.mxu0 0.0
      %2864 = vmatprep.subr.mxu0 0.0
      %2865 = vmatpush1.msra.mxu0 0.0
      %2866 = vmatprep.subr.mxu0 0.0
      %2867 = vmatpush1.msra.mxu0 0.0
      %2868 = vmatprep.subr.mxu0 0.0
      %2869 = vmatpush1.msra.mxu0 0.0
      %2870 = vmatprep.subr.mxu0 0.0
      %2871 = vmatpush1.msra.mxu0 0.0
      %2872 = vmatprep.subr.mxu0 0.0
      %2873 = vmatpush1.msra.mxu0 0.0
      %2874 = vmatprep.subr.mxu0 0.0
      %2875 = vmatpush1.msra.mxu0 0.0
      %2876 = vmatprep.subr.mxu0 0.0
      %2877 = vmatpush1.msra.mxu0 0.0
      %2878 = vmatprep.subr.mxu0 0.0
      %2879 = vmatpush1.msra.mxu0 0.0
      %2880 = vmatprep.subr.mxu0 0.0
      %2881 = vmatpush1.msra.mxu0 0.0
      %2882 = vmatprep.subr.mxu0 0.0
      %2883 = vmatpush1.msra.mxu0 0.0
      %2884 = vmatprep.subr.mxu0 0.0
      %2885 = vmatpush1.msra.mxu0 0.0
      %2886 = vmatprep.subr.mxu0 0.0
      %2887 = vmatpush1.msra.mxu0 0.0
      %2888 = vmatprep.subr.mxu0 0.0
      %2889 = vmatpush1.msra.mxu0 0.0
      %2890 = vmatprep.subr.mxu0 0.0
      %2891 = vmatpush1.msra.mxu0 0.0
      %2892 = vmatprep.subr.mxu0 0.0
      %2893 = vmatpush1.msra.mxu0 0.0
      %2894 = vmatprep.subr.mxu0 0.0
      %2895 = vmatpush1.msra.mxu0 0.0
      %2896 = vmatprep.subr.mxu0 0.0
      %2897 = vmatpush1.msra.mxu0 0.0
      %2898 = vmatprep.mubr.f32.mxu0 0.0
      %2899 = vmatmul.mubr.f32.gmra.mrb[0].mxu0 %v2775
      %v2900 = vpop.f32.mrb[0].mxu0
      %v2901 = vadd.f32 0.0, %v2900
      %v2902 = vpop.f32.mrb[0].mxu0
      %2903 = vmatprep.mubr.f32.mxu0 0.0
      %2904 = vmatmul.mubr.f32.gmra.mrb[0].mxu0 %v2778
      %v2905 = vpop.f32.mrb[0].mxu0
      %v2906 = vadd.f32 0.0, %v2905
      %v2907 = vpop.f32.mrb[0].mxu0
      %2908 = vmatprep.mubr.f32.mxu0 0.0
      %2909 = vmatmul.mubr.f32.gmra.mrb[0].mxu0 %v2781
      %v2910 = vpop.f32.mrb[0].mxu0
      %v2911 = vadd.f32 0.0, %v2910
      %v2912 = vpop.f32.mrb[0].mxu0
      %2913 = vmatprep.mubr.f32.mxu0 0.0
      %2914 = vmatmul.mubr.f32.gmra.mrb[0].mxu0 %v2784
      %v2915 = vpop.f32.mrb[0].mxu0
      %v2916 = vadd.f32 0.0, %v2915
      %v2917 = vpop.f32.mrb[0].mxu0
      %2918 = vmatprep.mubr.f32.mxu0 0.0
      %2919 = vmatmul.mubr.f32.gmra.mrb[0].mxu0 %v2787
      %v2920 = vpop.f32.mrb[0].mxu0
      %v2921 = vadd.f32 0.0, %v2920
      %v2922 = vpop.f32.mrb[0].mxu0
      %2923 = vmatprep.mubr.f32.mxu0 0.0
      %2924 = vmatmul.mubr.f32.gmra.mrb[0].mxu0 %v2790
      %v2925 = vpop.f32.mrb[0].mxu0
      %v2926 = vadd.f32 0.0, %v2925
      %v2927 = vpop.f32.mrb[0].mxu0
      %2928 = vmatprep.mubr.f32.mxu0 0.0
      %2929 = vmatmul.mubr.f32.gmra.mrb[0].mxu0 %v2793
      %v2930 = vpop.f32.mrb[0].mxu0
      %v2931 = vadd.f32 0.0, %v2930
      %v2932 = vpop.f32.mrb[0].mxu0
      %2933 = vmatprep.mubr.f32.mxu0 0.0
      %2934 = vmatmul.mubr.f32.gmra.mrb[0].mxu0 %v2796
      %v2935 = vpop.f32.mrb[0].mxu0
      %v2936 = vadd.f32 0.0, %v2935
      %v2937 = vpop.f32.mrb[0].mxu0
      %2938 = vmatprep.mubr.f32.mxu0 0.0
      %2939 = vmatmul.mubr.f32.gmra.mrb[0].mxu0 %v2799
      %v2940 = vpop.f32.mrb[0].mxu0
      %v2941 = vadd.f32 0.0, %v2940
      %v2942 = vpop.f32.mrb[0].mxu0
      %2943 = vmatprep.mubr.f32.mxu0 0.0
      %2944 = vmatmul.mubr.f32.gmra.mrb[0].mxu0 %v2802
      %v2945 = vpop.f32.mrb[0].mxu0
      %v2946 = vadd.f32 0.0, %v2945
      %v2947 = vpop.f32.mrb[0].mxu0
      %2948 = vmatprep.mubr.f32.mxu0 0.0
      %2949 = vmatmul.mubr.f32.gmra.mrb[0].mxu0 %v2805
      %v2950 = vpop.f32.mrb[0].mxu0
      %v2951 = vadd.f32 0.0, %v2950
      %v2952 = vpop.f32.mrb[0].mxu0
      %2953 = vmatprep.mubr.f32.mxu0 0.0
      %2954 = vmatmul.mubr.f32.gmra.mrb[0].mxu0 %v2808
      %v2955 = vpop.f32.mrb[0].mxu0
      %v2956 = vadd.f32 0.0, %v2955
      %v2957 = vpop.f32.mrb[0].mxu0
      %2958 = vmatprep.mubr.f32.mxu0 0.0
      %2959 = vmatmul.mubr.f32.gmra.mrb[0].mxu0 %v2811
      %v2960 = vpop.f32.mrb[0].mxu0
      %v2961 = vadd.f32 0.0, %v2960
      %v2962 = vpop.f32.mrb[0].mxu0
      %2963 = vmatprep.mubr.f32.mxu0 0.0
      %2964 = vmatmul.mubr.f32.gmra.mrb[0].mxu0 %v2814
      %v2965 = vpop.f32.mrb[0].mxu0
      %v2966 = vadd.f32 0.0, %v2965
      %v2967 = vpop.f32.mrb[0].mxu0
      %2968 = vmatprep.mubr.f32.mxu0 0.0
      %2969 = vmatmul.mubr.f32.gmra.mrb[0].mxu0 %v2817
      %v2970 = vpop.f32.mrb[0].mxu0
      %v2971 = vadd.f32 0.0, %v2970
      %v2972 = vpop.f32.mrb[0].mxu0
      %2973 = vmatprep.mubr.f32.mxu0 0.0
      %2974 = vmatmul.mubr.f32.gmra.mrb[0].mxu0 %v2820
      %v2975 = vpop.f32.mrb[0].mxu0
      %v2976 = vadd.f32 0.0, %v2975
      %v2977 = vpop.f32.mrb[0].mxu0
      %2978 = vmatprep.mubr.f32.mxu0 0.0
      %2979 = vmatmul.mubr.f32.gmra.mrb[0].mxu0 %v2823
      %v2980 = vpop.f32.mrb[0].mxu0
      %v2981 = vadd.f32 0.0, %v2980
      %v2982 = vpop.f32.mrb[0].mxu0
      %2983 = vmatprep.mubr.f32.mxu0 0.0
      %2984 = vmatmul.mubr.f32.gmra.mrb[0].mxu0 %v2826
      %v2985 = vpop.f32.mrb[0].mxu0
      %v2986 = vadd.f32 0.0, %v2985
      %v2987 = vpop.f32.mrb[0].mxu0
      %2988 = vmatprep.mubr.f32.mxu0 0.0
      %2989 = vmatmul.mubr.f32.gmra.mrb[0].mxu0 %v2829
      %v2990 = vpop.f32.mrb[0].mxu0
      %v2991 = vadd.f32 0.0, %v2990
      %v2992 = vpop.f32.mrb[0].mxu0
      %2993 = vmatprep.mubr.f32.mxu0 0.0
      %2994 = vmatmul.mubr.f32.gmra.mrb[0].mxu0 %v2832
      %v2995 = vpop.f32.mrb[0].mxu0
      %v2996 = vadd.f32 0.0, %v2995
      %v2997 = vpop.f32.mrb[0].mxu0
      %2998 = vdwg.mxu0
      %v3000 = vsel %vm1081, %v1442, 0
      %v3003 = vsel %vm1081, %v1447, 0
      %v3006 = vsel %vm1081, %v1452, 0
      %v3009 = vsel %vm1081, %v1457, 0
      %v3012 = vsel %vm1081, %v1462, 0
      %v3015 = vsel %vm1081, %v1467, 0
      %v3018 = vsel %vm1081, %v1472, 0
      %v3021 = vsel %vm1081, %v1477, 0
      %v3024 = vsel %vm1081, %v1482, 0
      %v3027 = vsel %vm1081, %v1487, 0
      %v3030 = vsel %vm1081, %v1492, 0
      %v3033 = vsel %vm1081, %v1497, 0
      %v3036 = vsel %vm1081, %v1502, 0
      %v3039 = vsel %vm1081, %v1507, 0
      %v3042 = vsel %vm1081, %v1512, 0
      %v3045 = vsel %vm1081, %v1517, 0
      %v3048 = vsel %vm1081, %v1522, 0
      %v3051 = vsel %vm1081, %v1527, 0
      %v3054 = vsel %vm1081, %v1532, 0
      %v3057 = vsel %vm1081, %v1537, 0
      %3059 = vmatprep.subr.mxu0 0.0
      %3060 = vmatpush1.msra.mxu0 %v2766
      %3061 = vmatprep.subr.mxu0 0.0
      %3062 = vmatpush1.msra.mxu0 %v2767
      %3063 = vmatprep.subr.mxu0 0.0
      %3064 = vmatpush1.msra.mxu0 %v2768
      %3065 = vmatprep.subr.mxu0 0.0
      %3066 = vmatpush1.msra.mxu0 %v2769
      %3067 = vmatprep.subr.mxu0 0.0
      %3068 = vmatpush1.msra.mxu0 0.0
      %3069 = vmatprep.subr.mxu0 0.0
      %3070 = vmatpush1.msra.mxu0 0.0
      %3071 = vmatprep.subr.mxu0 0.0
      %3072 = vmatpush1.msra.mxu0 0.0
      %3073 = vmatprep.subr.mxu0 0.0
      %3074 = vmatpush1.msra.mxu0 0.0
      %3075 = vmatprep.subr.mxu0 0.0
      %3076 = vmatpush1.msra.mxu0 0.0
      %3077 = vmatprep.subr.mxu0 0.0
      %3078 = vmatpush1.msra.mxu0 0.0
      %3079 = vmatprep.subr.mxu0 0.0
      %3080 = vmatpush1.msra.mxu0 0.0
      %3081 = vmatprep.subr.mxu0 0.0
      %3082 = vmatpush1.msra.mxu0 0.0
      %3083 = vmatprep.subr.mxu0 0.0
      %3084 = vmatpush1.msra.mxu0 0.0
      %3085 = vmatprep.subr.mxu0 0.0
      %3086 = vmatpush1.msra.mxu0 0.0
      %3087 = vmatprep.subr.mxu0 0.0
      %3088 = vmatpush1.msra.mxu0 0.0
      %3089 = vmatprep.subr.mxu0 0.0
      %3090 = vmatpush1.msra.mxu0 0.0
      %3091 = vmatprep.subr.mxu0 0.0
      %3092 = vmatpush1.msra.mxu0 0.0
      %3093 = vmatprep.subr.mxu0 0.0
      %3094 = vmatpush1.msra.mxu0 0.0
      %3095 = vmatprep.subr.mxu0 0.0
      %3096 = vmatpush1.msra.mxu0 0.0
      %3097 = vmatprep.subr.mxu0 0.0
      %3098 = vmatpush1.msra.mxu0 0.0
      %3099 = vmatprep.subr.mxu0 0.0
      %3100 = vmatpush1.msra.mxu0 0.0
      %3101 = vmatprep.subr.mxu0 0.0
      %3102 = vmatpush1.msra.mxu0 0.0
      %3103 = vmatprep.subr.mxu0 0.0
      %3104 = vmatpush1.msra.mxu0 0.0
      %3105 = vmatprep.subr.mxu0 0.0
      %3106 = vmatpush1.msra.mxu0 0.0
      %3107 = vmatprep.subr.mxu0 0.0
      %3108 = vmatpush1.msra.mxu0 0.0
      %3109 = vmatprep.subr.mxu0 0.0
      %3110 = vmatpush1.msra.mxu0 0.0
      %3111 = vmatprep.subr.mxu0 0.0
      %3112 = vmatpush1.msra.mxu0 0.0
      %3113 = vmatprep.subr.mxu0 0.0
      %3114 = vmatpush1.msra.mxu0 0.0
      %3115 = vmatprep.subr.mxu0 0.0
      %3116 = vmatpush1.msra.mxu0 0.0
      %3117 = vmatprep.subr.mxu0 0.0
      %3118 = vmatpush1.msra.mxu0 0.0
      %3119 = vmatprep.subr.mxu0 0.0
      %3120 = vmatpush1.msra.mxu0 0.0
      %3121 = vmatprep.subr.mxu0 0.0
      %3122 = vmatpush1.msra.mxu0 0.0
      %3123 = vmatprep.mubr.f32.mxu0 0.0
      %3124 = vmatmul.mubr.f32.gmra.mrb[0].mxu0 %v3000
      %v3125 = vpop.f32.mrb[0].mxu0
      %v3126 = vadd.f32 %v2901, %v3125
      %v3127 = vpop.f32.mrb[0].mxu0
      %3128 = vmatprep.mubr.f32.mxu0 0.0
      %3129 = vmatmul.mubr.f32.gmra.mrb[0].mxu0 %v3003
      %v3130 = vpop.f32.mrb[0].mxu0
      %v3131 = vadd.f32 %v2906, %v3130
      %v3132 = vpop.f32.mrb[0].mxu0
      %3133 = vmatprep.mubr.f32.mxu0 0.0
      %3134 = vmatmul.mubr.f32.gmra.mrb[0].mxu0 %v3006
      %v3135 = vpop.f32.mrb[0].mxu0
      %v3136 = vadd.f32 %v2911, %v3135
      %v3137 = vpop.f32.mrb[0].mxu0
      %3138 = vmatprep.mubr.f32.mxu0 0.0
      %3139 = vmatmul.mubr.f32.gmra.mrb[0].mxu0 %v3009
      %v3140 = vpop.f32.mrb[0].mxu0
      %v3141 = vadd.f32 %v2916, %v3140
      %v3142 = vpop.f32.mrb[0].mxu0
      %3143 = vmatprep.mubr.f32.mxu0 0.0
      %3144 = vmatmul.mubr.f32.gmra.mrb[0].mxu0 %v3012
      %v3145 = vpop.f32.mrb[0].mxu0
      %v3146 = vadd.f32 %v2921, %v3145
      %v3147 = vpop.f32.mrb[0].mxu0
      %3148 = vmatprep.mubr.f32.mxu0 0.0
      %3149 = vmatmul.mubr.f32.gmra.mrb[0].mxu0 %v3015
      %v3150 = vpop.f32.mrb[0].mxu0
      %v3151 = vadd.f32 %v2926, %v3150
      %v3152 = vpop.f32.mrb[0].mxu0
      %3153 = vmatprep.mubr.f32.mxu0 0.0
      %3154 = vmatmul.mubr.f32.gmra.mrb[0].mxu0 %v3018
      %v3155 = vpop.f32.mrb[0].mxu0
      %v3156 = vadd.f32 %v2931, %v3155
      %v3157 = vpop.f32.mrb[0].mxu0
      %3158 = vmatprep.mubr.f32.mxu0 0.0
      %3159 = vmatmul.mubr.f32.gmra.mrb[0].mxu0 %v3021
      %v3160 = vpop.f32.mrb[0].mxu0
      %v3161 = vadd.f32 %v2936, %v3160
      %v3162 = vpop.f32.mrb[0].mxu0
      %3163 = vmatprep.mubr.f32.mxu0 0.0
      %3164 = vmatmul.mubr.f32.gmra.mrb[0].mxu0 %v3024
      %v3165 = vpop.f32.mrb[0].mxu0
      %v3166 = vadd.f32 %v2941, %v3165
      %v3167 = vpop.f32.mrb[0].mxu0
      %3168 = vmatprep.mubr.f32.mxu0 0.0
      %3169 = vmatmul.mubr.f32.gmra.mrb[0].mxu0 %v3027
      %v3170 = vpop.f32.mrb[0].mxu0
      %v3171 = vadd.f32 %v2946, %v3170
      %v3172 = vpop.f32.mrb[0].mxu0
      %3173 = vmatprep.mubr.f32.mxu0 0.0
      %3174 = vmatmul.mubr.f32.gmra.mrb[0].mxu0 %v3030
      %v3175 = vpop.f32.mrb[0].mxu0
      %v3176 = vadd.f32 %v2951, %v3175
      %v3177 = vpop.f32.mrb[0].mxu0
      %3178 = vmatprep.mubr.f32.mxu0 0.0
      %3179 = vmatmul.mubr.f32.gmra.mrb[0].mxu0 %v3033
      %v3180 = vpop.f32.mrb[0].mxu0
      %v3181 = vadd.f32 %v2956, %v3180
      %v3182 = vpop.f32.mrb[0].mxu0
      %3183 = vmatprep.mubr.f32.mxu0 0.0
      %3184 = vmatmul.mubr.f32.gmra.mrb[0].mxu0 %v3036
      %v3185 = vpop.f32.mrb[0].mxu0
      %v3186 = vadd.f32 %v2961, %v3185
      %v3187 = vpop.f32.mrb[0].mxu0
      %3188 = vmatprep.mubr.f32.mxu0 0.0
      %3189 = vmatmul.mubr.f32.gmra.mrb[0].mxu0 %v3039
      %v3190 = vpop.f32.mrb[0].mxu0
      %v3191 = vadd.f32 %v2966, %v3190
      %v3192 = vpop.f32.mrb[0].mxu0
      %3193 = vmatprep.mubr.f32.mxu0 0.0
      %3194 = vmatmul.mubr.f32.gmra.mrb[0].mxu0 %v3042
      %v3195 = vpop.f32.mrb[0].mxu0
      %v3196 = vadd.f32 %v2971, %v3195
      %v3197 = vpop.f32.mrb[0].mxu0
      %3198 = vmatprep.mubr.f32.mxu0 0.0
      %3199 = vmatmul.mubr.f32.gmra.mrb[0].mxu0 %v3045
      %v3200 = vpop.f32.mrb[0].mxu0
      %v3201 = vadd.f32 %v2976, %v3200
      %v3202 = vpop.f32.mrb[0].mxu0
      %3203 = vmatprep.mubr.f32.mxu0 0.0
      %3204 = vmatmul.mubr.f32.gmra.mrb[0].mxu0 %v3048
      %v3205 = vpop.f32.mrb[0].mxu0
      %v3206 = vadd.f32 %v2981, %v3205
      %v3207 = vpop.f32.mrb[0].mxu0
      %3208 = vmatprep.mubr.f32.mxu0 0.0
      %3209 = vmatmul.mubr.f32.gmra.mrb[0].mxu0 %v3051
      %v3210 = vpop.f32.mrb[0].mxu0
      %v3211 = vadd.f32 %v2986, %v3210
      %v3212 = vpop.f32.mrb[0].mxu0
      %3213 = vmatprep.mubr.f32.mxu0 0.0
      %3214 = vmatmul.mubr.f32.gmra.mrb[0].mxu0 %v3054
      %v3215 = vpop.f32.mrb[0].mxu0
      %v3216 = vadd.f32 %v2991, %v3215
      %v3217 = vpop.f32.mrb[0].mxu0
      %3218 = vmatprep.mubr.f32.mxu0 0.0
      %3219 = vmatmul.mubr.f32.gmra.mrb[0].mxu0 %v3057
      %v3220 = vpop.f32.mrb[0].mxu0
      %v3221 = vadd.f32 %v2996, %v3220
      %v3222 = vpop.f32.mrb[0].mxu0
      %3223 = vdwg.mxu0
      %v3224 = vadd.f32 %v3126, %v2667
      %v3225 = vadd.f32 %v3131, %v2672
      %v3226 = vadd.f32 %v3136, %v2677
      %v3227 = vadd.f32 %v3141, %v2682
      %v3228 = vadd.f32 %v3146, %v2687
      %v3229 = vadd.f32 %v3151, %v2692
      %v3230 = vadd.f32 %v3156, %v2697
      %v3231 = vadd.f32 %v3161, %v2702
      %v3232 = vadd.f32 %v3166, %v2707
      %v3233 = vadd.f32 %v3171, %v2712
      %v3234 = vadd.f32 %v3176, %v2717
      %v3235 = vadd.f32 %v3181, %v2722
      %v3236 = vadd.f32 %v3186, %v2727
      %v3237 = vadd.f32 %v3191, %v2732
      %v3238 = vadd.f32 %v3196, %v2737
      %v3239 = vadd.f32 %v3201, %v2742
      %v3240 = vadd.f32 %v3206, %v2747
      %v3241 = vadd.f32 %v3211, %v2752
      %v3242 = vadd.f32 %v3216, %v2757
      %v3243 = vadd.f32 %v3221, %v2762
      %v3244 = vpack.c.bf16 %v3225, %v3224
      %v3245 = vpack.c.bf16 %v3227, %v3226
      %v3246 = vpack.c.bf16 %v3229, %v3228
      %v3247 = vpack.c.bf16 %v3231, %v3230
      %v3248 = vpack.c.bf16 %v3233, %v3232
      %v3249 = vpack.c.bf16 %v3235, %v3234
      %v3250 = vpack.c.bf16 %v3237, %v3236
      %v3251 = vpack.c.bf16 %v3239, %v3238
      %v3252 = vpack.c.bf16 %v3241, %v3240
      %v3253 = vpack.c.bf16 %v3243, %v3242
      %3254 = vmatprep.subr.bf16.mxu0 0
      %3255 = vmatpush1.bf16.msra.mxu0 %v3244
      %3256 = vmatprep.subr.bf16.mxu0 0
      %3257 = vmatpush1.bf16.msra.mxu0 %v3245
      %3258 = vmatprep.subr.bf16.mxu0 0
      %3259 = vmatpush1.bf16.msra.mxu0 %v3246
      %3260 = vmatprep.subr.bf16.mxu0 0
      %3261 = vmatpush1.bf16.msra.mxu0 %v3247
      %3262 = vmatprep.subr.bf16.mxu0 0
      %3263 = vmatpush1.bf16.msra.mxu0 %v3248
      %3264 = vmatprep.subr.bf16.mxu0 0
      %3265 = vmatpush1.bf16.msra.mxu0 %v3249
      %3266 = vmatprep.subr.bf16.mxu0 0
      %3267 = vmatpush1.bf16.msra.mxu0 %v3250
      %3268 = vmatprep.subr.bf16.mxu0 0
      %3269 = vmatpush1.bf16.msra.mxu0 %v3251
      %3270 = vmatprep.subr.bf16.mxu0 0
      %3271 = vmatpush1.bf16.msra.mxu0 %v3252
      %3272 = vmatprep.subr.bf16.mxu0 0
      %3273 = vmatpush1.bf16.msra.mxu0 %v3253
      %3274 = vmatprep.subr.bf16.mxu0 0
      %3275 = vmatpush1.bf16.msra.mxu0 0
      %3276 = vmatprep.subr.bf16.mxu0 0
      %3277 = vmatpush1.bf16.msra.mxu0 0
      %3278 = vmatprep.subr.bf16.mxu0 0
      %3279 = vmatpush1.bf16.msra.mxu0 0
      %3280 = vmatprep.subr.bf16.mxu0 0
      %3281 = vmatpush1.bf16.msra.mxu0 0
      %3282 = vmatprep.subr.bf16.mxu0 0
      %3283 = vmatpush1.bf16.msra.mxu0 0
      %3284 = vmatprep.subr.bf16.mxu0 0
      %3285 = vmatpush1.bf16.msra.mxu0 0
      %3286 = vmatprep.mubr.bf16.mxu0 %v1643
      %3287 = vmatmul.mubr.bf16.gmra.mrb[0].mxu0 %v1618
      %v3288 = vpop.f32.mrb[0].mxu0
      %v3289 = vadd.f32 0.0, %v3288
      %v3290 = vpop.f32.mrb[0].mxu0
      %v3291 = vpop.f32.mrb[0].mxu0
      %v3292 = vadd.f32 0.0, %v3291
      %v3293 = vpop.f32.mrb[0].mxu0
      %3294 = vmatprep.mubr.bf16.mxu0 %v1646
      %3295 = vmatmul.mubr.bf16.gmra.mrb[0].mxu0 %v1619
      %v3296 = vpop.f32.mrb[0].mxu0
      %v3297 = vadd.f32 0.0, %v3296
      %v3298 = vpop.f32.mrb[0].mxu0
      %v3299 = vpop.f32.mrb[0].mxu0
      %v3300 = vadd.f32 0.0, %v3299
      %v3301 = vpop.f32.mrb[0].mxu0
      %3302 = vmatprep.mubr.bf16.mxu0 %v1649
      %3303 = vmatmul.mubr.bf16.gmra.mrb[0].mxu0 %v1620
      %v3304 = vpop.f32.mrb[0].mxu0
      %v3305 = vadd.f32 0.0, %v3304
      %v3306 = vpop.f32.mrb[0].mxu0
      %v3307 = vpop.f32.mrb[0].mxu0
      %v3308 = vadd.f32 0.0, %v3307
      %v3309 = vpop.f32.mrb[0].mxu0
      %3310 = vmatprep.mubr.bf16.mxu0 %v1652
      %3311 = vmatmul.mubr.bf16.gmra.mrb[0].mxu0 %v1621
      %v3312 = vpop.f32.mrb[0].mxu0
      %v3313 = vadd.f32 0.0, %v3312
      %v3314 = vpop.f32.mrb[0].mxu0
      %v3315 = vpop.f32.mrb[0].mxu0
      %v3316 = vadd.f32 0.0, %v3315
      %v3317 = vpop.f32.mrb[0].mxu0
      %3318 = vmatprep.mubr.bf16.mxu0 %v1655
      %3319 = vmatmul.mubr.bf16.gmra.mrb[0].mxu0 %v1622
      %v3320 = vpop.f32.mrb[0].mxu0
      %v3321 = vadd.f32 0.0, %v3320
      %v3322 = vpop.f32.mrb[0].mxu0
      %v3323 = vpop.f32.mrb[0].mxu0
      %v3324 = vadd.f32 0.0, %v3323
      %v3325 = vpop.f32.mrb[0].mxu0
      %3326 = vmatprep.mubr.bf16.mxu0 %v1658
      %3327 = vmatmul.mubr.bf16.gmra.mrb[0].mxu0 %v1623
      %v3328 = vpop.f32.mrb[0].mxu0
      %v3329 = vadd.f32 0.0, %v3328
      %v3330 = vpop.f32.mrb[0].mxu0
      %v3331 = vpop.f32.mrb[0].mxu0
      %v3332 = vadd.f32 0.0, %v3331
      %v3333 = vpop.f32.mrb[0].mxu0
      %3334 = vmatprep.mubr.bf16.mxu0 %v1661
      %3335 = vmatmul.mubr.bf16.gmra.mrb[0].mxu0 %v1624
      %v3336 = vpop.f32.mrb[0].mxu0
      %v3337 = vadd.f32 0.0, %v3336
      %v3338 = vpop.f32.mrb[0].mxu0
      %v3339 = vpop.f32.mrb[0].mxu0
      %v3340 = vadd.f32 0.0, %v3339
      %v3341 = vpop.f32.mrb[0].mxu0
      %3342 = vmatprep.mubr.bf16.mxu0 %v1664
      %3343 = vmatmul.mubr.bf16.gmra.mrb[0].mxu0 %v1625
      %v3344 = vpop.f32.mrb[0].mxu0
      %v3345 = vadd.f32 0.0, %v3344
      %v3346 = vpop.f32.mrb[0].mxu0
      %v3347 = vpop.f32.mrb[0].mxu0
      %v3348 = vadd.f32 0.0, %v3347
      %v3349 = vpop.f32.mrb[0].mxu0
      %3350 = vdwg.mxu0
      %v3351 = vmul.f32 %v3289, %v1766
      %v3352 = vmul.f32 %v3292, %v1771
      %v3353 = vmul.f32 %v3297, %v1776
      %v3354 = vmul.f32 %v3300, %v1781
      %v3355 = vmul.f32 %v3305, %v1786
      %v3356 = vmul.f32 %v3308, %v1791
      %v3357 = vmul.f32 %v3313, %v1796
      %v3358 = vmul.f32 %v3316, %v1801
      %v3359 = vmul.f32 %v3321, %v1806
      %v3360 = vmul.f32 %v3324, %v1811
      %v3361 = vmul.f32 %v3329, %v1816
      %v3362 = vmul.f32 %v3332, %v1821
      %v3363 = vmul.f32 %v3337, %v1826
      %v3364 = vmul.f32 %v3340, %v1831
      %v3365 = vmul.f32 %v3345, %v1836
      %v3366 = vmul.f32 %v3348, %v1841
      %v3367 = vpack.c.bf16 %v3352, %v3351
      %v3368 = vpack.c.bf16 %v3354, %v3353
      %v3369 = vpack.c.bf16 %v3356, %v3355
      %v3370 = vpack.c.bf16 %v3358, %v3357
      %v3371 = vpack.c.bf16 %v3360, %v3359
      %v3372 = vpack.c.bf16 %v3362, %v3361
      %v3373 = vpack.c.bf16 %v3364, %v3363
      %v3374 = vpack.c.bf16 %v3366, %v3365
      %3375 = vmatprep.subr.bf16.mxu0 0
      %3376 = vmatpush1.bf16.msra.mxu0 %v3367
      %3377 = vmatprep.subr.bf16.mxu0 0
      %3378 = vmatpush1.bf16.msra.mxu0 %v3368
      %3379 = vmatprep.subr.bf16.mxu0 0
      %3380 = vmatpush1.bf16.msra.mxu0 %v3369
      %3381 = vmatprep.subr.bf16.mxu0 0
      %3382 = vmatpush1.bf16.msra.mxu0 %v3370
      %3383 = vmatprep.subr.bf16.mxu0 0
      %3384 = vmatpush1.bf16.msra.mxu0 %v3371
      %3385 = vmatprep.subr.bf16.mxu0 0
      %3386 = vmatpush1.bf16.msra.mxu0 %v3372
      %3387 = vmatprep.subr.bf16.mxu0 0
      %3388 = vmatpush1.bf16.msra.mxu0 %v3373
      %3389 = vmatprep.subr.bf16.mxu0 0
      %3390 = vmatpush1.bf16.msra.mxu0 %v3374
      %3391 = vmatprep.subr.bf16.mxu0 0
      %3392 = vmatpush1.bf16.msra.mxu0 0
      %3393 = vmatprep.subr.bf16.mxu0 0
      %3394 = vmatpush1.bf16.msra.mxu0 0
      %3395 = vmatprep.subr.bf16.mxu0 0
      %3396 = vmatpush1.bf16.msra.mxu0 0
      %3397 = vmatprep.subr.bf16.mxu0 0
      %3398 = vmatpush1.bf16.msra.mxu0 0
      %3399 = vmatprep.subr.bf16.mxu0 0
      %3400 = vmatpush1.bf16.msra.mxu0 0
      %3401 = vmatprep.subr.bf16.mxu0 0
      %3402 = vmatpush1.bf16.msra.mxu0 0
      %3403 = vmatprep.subr.bf16.mxu0 0
      %3404 = vmatpush1.bf16.msra.mxu0 0
      %3405 = vmatprep.subr.bf16.mxu0 0
      %3406 = vmatpush1.bf16.msra.mxu0 0
      %3407 = vmatprep.mubr.bf16.mxu0 0
      %3408 = vmatmul.mubr.bf16.gmra.mrb[0].mxu0 %v1590
      %v3409 = vpop.f32.mrb[0].mxu0
      %v3410 = vadd.f32 0.0, %v3409
      %v3411 = vpop.f32.mrb[0].mxu0
      %v3412 = vpop.f32.mrb[0].mxu0
      %v3413 = vadd.f32 0.0, %v3412
      %v3414 = vpop.f32.mrb[0].mxu0
      %3415 = vmatprep.mubr.bf16.mxu0 0
      %3416 = vmatmul.mubr.bf16.gmra.mrb[0].mxu0 %v1591
      %v3417 = vpop.f32.mrb[0].mxu0
      %v3418 = vadd.f32 0.0, %v3417
      %v3419 = vpop.f32.mrb[0].mxu0
      %v3420 = vpop.f32.mrb[0].mxu0
      %v3421 = vadd.f32 0.0, %v3420
      %v3422 = vpop.f32.mrb[0].mxu0
      %3423 = vmatprep.mubr.bf16.mxu0 0
      %3424 = vmatmul.mubr.bf16.gmra.mrb[0].mxu0 %v1592
      %v3425 = vpop.f32.mrb[0].mxu0
      %v3426 = vadd.f32 0.0, %v3425
      %v3427 = vpop.f32.mrb[0].mxu0
      %v3428 = vpop.f32.mrb[0].mxu0
      %v3429 = vadd.f32 0.0, %v3428
      %v3430 = vpop.f32.mrb[0].mxu0
      %3431 = vmatprep.mubr.bf16.mxu0 0
      %3432 = vmatmul.mubr.bf16.gmra.mrb[0].mxu0 %v1593
      %v3433 = vpop.f32.mrb[0].mxu0
      %v3434 = vadd.f32 0.0, %v3433
      %v3435 = vpop.f32.mrb[0].mxu0
      %v3436 = vpop.f32.mrb[0].mxu0
      %v3437 = vadd.f32 0.0, %v3436
      %v3438 = vpop.f32.mrb[0].mxu0
      %3439 = vmatprep.mubr.bf16.mxu0 0
      %3440 = vmatmul.mubr.bf16.gmra.mrb[0].mxu0 %v1594
      %v3441 = vpop.f32.mrb[0].mxu0
      %v3442 = vadd.f32 0.0, %v3441
      %v3443 = vpop.f32.mrb[0].mxu0
      %v3444 = vpop.f32.mrb[0].mxu0
      %v3445 = vadd.f32 0.0, %v3444
      %v3446 = vpop.f32.mrb[0].mxu0
      %3447 = vmatprep.mubr.bf16.mxu0 0
      %3448 = vmatmul.mubr.bf16.gmra.mrb[0].mxu0 %v1595
      %v3449 = vpop.f32.mrb[0].mxu0
      %v3450 = vadd.f32 0.0, %v3449
      %v3451 = vpop.f32.mrb[0].mxu0
      %v3452 = vpop.f32.mrb[0].mxu0
      %v3453 = vadd.f32 0.0, %v3452
      %v3454 = vpop.f32.mrb[0].mxu0
      %3455 = vmatprep.mubr.bf16.mxu0 0
      %3456 = vmatmul.mubr.bf16.gmra.mrb[0].mxu0 %v1596
      %v3457 = vpop.f32.mrb[0].mxu0
      %v3458 = vadd.f32 0.0, %v3457
      %v3459 = vpop.f32.mrb[0].mxu0
      %v3460 = vpop.f32.mrb[0].mxu0
      %v3461 = vadd.f32 0.0, %v3460
      %v3462 = vpop.f32.mrb[0].mxu0
      %3463 = vmatprep.mubr.bf16.mxu0 0
      %3464 = vmatmul.mubr.bf16.gmra.mrb[0].mxu0 %v1597
      %v3465 = vpop.f32.mrb[0].mxu0
      %v3466 = vadd.f32 0.0, %v3465
      %v3467 = vpop.f32.mrb[0].mxu0
      %v3468 = vpop.f32.mrb[0].mxu0
      %v3469 = vadd.f32 0.0, %v3468
      %v3470 = vpop.f32.mrb[0].mxu0
      %3471 = vmatprep.mubr.bf16.mxu0 0
      %3472 = vmatmul.mubr.bf16.gmra.mrb[0].mxu0 %v1598
      %v3473 = vpop.f32.mrb[0].mxu0
      %v3474 = vadd.f32 0.0, %v3473
      %v3475 = vpop.f32.mrb[0].mxu0
      %v3476 = vpop.f32.mrb[0].mxu0
      %v3477 = vadd.f32 0.0, %v3476
      %v3478 = vpop.f32.mrb[0].mxu0
      %3479 = vmatprep.mubr.bf16.mxu0 0
      %3480 = vmatmul.mubr.bf16.gmra.mrb[0].mxu0 %v1599
      %v3481 = vpop.f32.mrb[0].mxu0
      %v3482 = vadd.f32 0.0, %v3481
      %v3483 = vpop.f32.mrb[0].mxu0
      %v3484 = vpop.f32.mrb[0].mxu0
      %v3485 = vadd.f32 0.0, %v3484
      %v3486 = vpop.f32.mrb[0].mxu0
      %3487 = vdwg.mxu0
      %v3488 = vmax.f32 %v3224, 0.0
      %v3489 = vmax.f32 %v3225, 0.0
      %v3490 = vmax.f32 %v3226, 0.0
      %v3491 = vmax.f32 %v3227, 0.0
      %v3492 = vmax.f32 %v3228, 0.0
      %v3493 = vmax.f32 %v3229, 0.0
      %v3494 = vmax.f32 %v3230, 0.0
      %v3495 = vmax.f32 %v3231, 0.0
      %v3496 = vmax.f32 %v3232, 0.0
      %v3497 = vmax.f32 %v3233, 0.0
      %v3498 = vmax.f32 %v3234, 0.0
      %v3499 = vmax.f32 %v3235, 0.0
      %v3500 = vmax.f32 %v3236, 0.0
      %v3501 = vmax.f32 %v3237, 0.0
      %v3502 = vmax.f32 %v3238, 0.0
      %v3503 = vmax.f32 %v3239, 0.0
      %v3504 = vmax.f32 %v3240, 0.0
      %v3505 = vmax.f32 %v3241, 0.0
      %v3506 = vmax.f32 %v3242, 0.0
      %v3507 = vmax.f32 %v3243, 0.0
      %v3508 = vmax.f32 %v3410, 0.0
      %v3509 = vmax.f32 %v3413, 0.0
      %v3510 = vmax.f32 %v3418, 0.0
      %v3511 = vmax.f32 %v3421, 0.0
      %v3512 = vmax.f32 %v3426, 0.0
      %v3513 = vmax.f32 %v3429, 0.0
      %v3514 = vmax.f32 %v3434, 0.0
      %v3515 = vmax.f32 %v3437, 0.0
      %v3516 = vmax.f32 %v3442, 0.0
      %v3517 = vmax.f32 %v3445, 0.0
      %v3518 = vmax.f32 %v3450, 0.0
      %v3519 = vmax.f32 %v3453, 0.0
      %v3520 = vmax.f32 %v3458, 0.0
      %v3521 = vmax.f32 %v3461, 0.0
      %v3522 = vmax.f32 %v3466, 0.0
      %v3523 = vmax.f32 %v3469, 0.0
      %v3524 = vmax.f32 %v3474, 0.0
      %v3525 = vmax.f32 %v3477, 0.0
      %v3526 = vmax.f32 %v3482, 0.0
      %v3527 = vmax.f32 %v3485, 0.0
      %s3528 = scalar_lea.vmem %s5, 128
      %v3529 = vld [vmem:[%s3528] sm:$0xff]
      %v3530 = vld [vmem:[%s3528 + $0x8] sm:$0xff]
      %v3531 = vld [vmem:[%s3528 + $0x10] sm:$0xff]
      %v3532 = vld [vmem:[%s3528 + $0x18] sm:$0xff]
      %v3533 = vld [vmem:[%s3528 + $0x20] sm:$0xff]
      %v3534 = vld [vmem:[%s3528 + $0x28] sm:$0xff]
      %v3535 = vld [vmem:[%s3528 + $0x30] sm:$0xff]
      %v3536 = vld [vmem:[%s3528 + $0x38] sm:$0xff]
      %v3538 = vsel %vm1081, %v3508, 0
      %v3541 = vsel %vm1081, %v3509, 0
      %v3544 = vsel %vm1081, %v3510, 0
      %v3547 = vsel %vm1081, %v3511, 0
      %v3550 = vsel %vm1081, %v3512, 0
      %v3553 = vsel %vm1081, %v3513, 0
      %v3556 = vsel %vm1081, %v3514, 0
      %v3559 = vsel %vm1081, %v3515, 0
      %v3562 = vsel %vm1081, %v3516, 0
      %v3565 = vsel %vm1081, %v3517, 0
      %v3568 = vsel %vm1081, %v3518, 0
      %v3571 = vsel %vm1081, %v3519, 0
      %v3574 = vsel %vm1081, %v3520, 0
      %v3577 = vsel %vm1081, %v3521, 0
      %v3580 = vsel %vm1081, %v3522, 0
      %v3583 = vsel %vm1081, %v3523, 0
      %v3586 = vsel %vm1081, %v3524, 0
      %v3589 = vsel %vm1081, %v3525, 0
      %v3592 = vsel %vm1081, %v3526, 0
      %v3595 = vsel %vm1081, %v3527, 0
      %3597 = vmatprep.subr.mxu0 0.0
      %3598 = vmatpush1.msra.mxu0 %v3533
      %3599 = vmatprep.subr.mxu0 0.0
      %3600 = vmatpush1.msra.mxu0 %v3534
      %3601 = vmatprep.subr.mxu0 0.0
      %3602 = vmatpush1.msra.mxu0 %v3535
      %3603 = vmatprep.subr.mxu0 0.0
      %3604 = vmatpush1.msra.mxu0 %v3536
      %3605 = vmatprep.subr.mxu0 0.0
      %3606 = vmatpush1.msra.mxu0 0.0
      %3607 = vmatprep.subr.mxu0 0.0
      %3608 = vmatpush1.msra.mxu0 0.0
      %3609 = vmatprep.subr.mxu0 0.0
      %3610 = vmatpush1.msra.mxu0 0.0
      %3611 = vmatprep.subr.mxu0 0.0
      %3612 = vmatpush1.msra.mxu0 0.0
      %3613 = vmatprep.subr.mxu0 0.0
      %3614 = vmatpush1.msra.mxu0 0.0
      %3615 = vmatprep.subr.mxu0 0.0
      %3616 = vmatpush1.msra.mxu0 0.0
      %3617 = vmatprep.subr.mxu0 0.0
      %3618 = vmatpush1.msra.mxu0 0.0
      %3619 = vmatprep.subr.mxu0 0.0
      %3620 = vmatpush1.msra.mxu0 0.0
      %3621 = vmatprep.subr.mxu0 0.0
      %3622 = vmatpush1.msra.mxu0 0.0
      %3623 = vmatprep.subr.mxu0 0.0
      %3624 = vmatpush1.msra.mxu0 0.0
      %3625 = vmatprep.subr.mxu0 0.0
      %3626 = vmatpush1.msra.mxu0 0.0
      %3627 = vmatprep.subr.mxu0 0.0
      %3628 = vmatpush1.msra.mxu0 0.0
      %3629 = vmatprep.subr.mxu0 0.0
      %3630 = vmatpush1.msra.mxu0 0.0
      %3631 = vmatprep.subr.mxu0 0.0
      %3632 = vmatpush1.msra.mxu0 0.0
      %3633 = vmatprep.subr.mxu0 0.0
      %3634 = vmatpush1.msra.mxu0 0.0
      %3635 = vmatprep.subr.mxu0 0.0
      %3636 = vmatpush1.msra.mxu0 0.0
      %3637 = vmatprep.subr.mxu0 0.0
      %3638 = vmatpush1.msra.mxu0 0.0
      %3639 = vmatprep.subr.mxu0 0.0
      %3640 = vmatpush1.msra.mxu0 0.0
      %3641 = vmatprep.subr.mxu0 0.0
      %3642 = vmatpush1.msra.mxu0 0.0
      %3643 = vmatprep.subr.mxu0 0.0
      %3644 = vmatpush1.msra.mxu0 0.0
      %3645 = vmatprep.subr.mxu0 0.0
      %3646 = vmatpush1.msra.mxu0 0.0
      %3647 = vmatprep.subr.mxu0 0.0
      %3648 = vmatpush1.msra.mxu0 0.0
      %3649 = vmatprep.subr.mxu0 0.0
      %3650 = vmatpush1.msra.mxu0 0.0
      %3651 = vmatprep.subr.mxu0 0.0
      %3652 = vmatpush1.msra.mxu0 0.0
      %3653 = vmatprep.subr.mxu0 0.0
      %3654 = vmatpush1.msra.mxu0 0.0
      %3655 = vmatprep.subr.mxu0 0.0
      %3656 = vmatpush1.msra.mxu0 0.0
      %3657 = vmatprep.subr.mxu0 0.0
      %3658 = vmatpush1.msra.mxu0 0.0
      %3659 = vmatprep.subr.mxu0 0.0
      %3660 = vmatpush1.msra.mxu0 0.0
      %3661 = vmatprep.mubr.f32.mxu0 0.0
      %3662 = vmatmul.mubr.f32.gmra.mrb[0].mxu0 %v3538
      %v3663 = vpop.f32.mrb[0].mxu0
      %v3664 = vadd.f32 0.0, %v3663
      %v3665 = vpop.f32.mrb[0].mxu0
      %3666 = vmatprep.mubr.f32.mxu0 0.0
      %3667 = vmatmul.mubr.f32.gmra.mrb[0].mxu0 %v3541
      %v3668 = vpop.f32.mrb[0].mxu0
      %v3669 = vadd.f32 0.0, %v3668
      %v3670 = vpop.f32.mrb[0].mxu0
      %3671 = vmatprep.mubr.f32.mxu0 0.0
      %3672 = vmatmul.mubr.f32.gmra.mrb[0].mxu0 %v3544
      %v3673 = vpop.f32.mrb[0].mxu0
      %v3674 = vadd.f32 0.0, %v3673
      %v3675 = vpop.f32.mrb[0].mxu0
      %3676 = vmatprep.mubr.f32.mxu0 0.0
      %3677 = vmatmul.mubr.f32.gmra.mrb[0].mxu0 %v3547
      %v3678 = vpop.f32.mrb[0].mxu0
      %v3679 = vadd.f32 0.0, %v3678
      %v3680 = vpop.f32.mrb[0].mxu0
      %3681 = vmatprep.mubr.f32.mxu0 0.0
      %3682 = vmatmul.mubr.f32.gmra.mrb[0].mxu0 %v3550
      %v3683 = vpop.f32.mrb[0].mxu0
      %v3684 = vadd.f32 0.0, %v3683
      %v3685 = vpop.f32.mrb[0].mxu0
      %3686 = vmatprep.mubr.f32.mxu0 0.0
      %3687 = vmatmul.mubr.f32.gmra.mrb[0].mxu0 %v3553
      %v3688 = vpop.f32.mrb[0].mxu0
      %v3689 = vadd.f32 0.0, %v3688
      %v3690 = vpop.f32.mrb[0].mxu0
      %3691 = vmatprep.mubr.f32.mxu0 0.0
      %3692 = vmatmul.mubr.f32.gmra.mrb[0].mxu0 %v3556
      %v3693 = vpop.f32.mrb[0].mxu0
      %v3694 = vadd.f32 0.0, %v3693
      %v3695 = vpop.f32.mrb[0].mxu0
      %3696 = vmatprep.mubr.f32.mxu0 0.0
      %3697 = vmatmul.mubr.f32.gmra.mrb[0].mxu0 %v3559
      %v3698 = vpop.f32.mrb[0].mxu0
      %v3699 = vadd.f32 0.0, %v3698
      %v3700 = vpop.f32.mrb[0].mxu0
      %3701 = vmatprep.mubr.f32.mxu0 0.0
      %3702 = vmatmul.mubr.f32.gmra.mrb[0].mxu0 %v3562
      %v3703 = vpop.f32.mrb[0].mxu0
      %v3704 = vadd.f32 0.0, %v3703
      %v3705 = vpop.f32.mrb[0].mxu0
      %3706 = vmatprep.mubr.f32.mxu0 0.0
      %3707 = vmatmul.mubr.f32.gmra.mrb[0].mxu0 %v3565
      %v3708 = vpop.f32.mrb[0].mxu0
      %v3709 = vadd.f32 0.0, %v3708
      %v3710 = vpop.f32.mrb[0].mxu0
      %3711 = vmatprep.mubr.f32.mxu0 0.0
      %3712 = vmatmul.mubr.f32.gmra.mrb[0].mxu0 %v3568
      %v3713 = vpop.f32.mrb[0].mxu0
      %v3714 = vadd.f32 0.0, %v3713
      %v3715 = vpop.f32.mrb[0].mxu0
      %3716 = vmatprep.mubr.f32.mxu0 0.0
      %3717 = vmatmul.mubr.f32.gmra.mrb[0].mxu0 %v3571
      %v3718 = vpop.f32.mrb[0].mxu0
      %v3719 = vadd.f32 0.0, %v3718
      %v3720 = vpop.f32.mrb[0].mxu0
      %3721 = vmatprep.mubr.f32.mxu0 0.0
      %3722 = vmatmul.mubr.f32.gmra.mrb[0].mxu0 %v3574
      %v3723 = vpop.f32.mrb[0].mxu0
      %v3724 = vadd.f32 0.0, %v3723
      %v3725 = vpop.f32.mrb[0].mxu0
      %3726 = vmatprep.mubr.f32.mxu0 0.0
      %3727 = vmatmul.mubr.f32.gmra.mrb[0].mxu0 %v3577
      %v3728 = vpop.f32.mrb[0].mxu0
      %v3729 = vadd.f32 0.0, %v3728
      %v3730 = vpop.f32.mrb[0].mxu0
      %3731 = vmatprep.mubr.f32.mxu0 0.0
      %3732 = vmatmul.mubr.f32.gmra.mrb[0].mxu0 %v3580
      %v3733 = vpop.f32.mrb[0].mxu0
      %v3734 = vadd.f32 0.0, %v3733
      %v3735 = vpop.f32.mrb[0].mxu0
      %3736 = vmatprep.mubr.f32.mxu0 0.0
      %3737 = vmatmul.mubr.f32.gmra.mrb[0].mxu0 %v3583
      %v3738 = vpop.f32.mrb[0].mxu0
      %v3739 = vadd.f32 0.0, %v3738
      %v3740 = vpop.f32.mrb[0].mxu0
      %3741 = vmatprep.mubr.f32.mxu0 0.0
      %3742 = vmatmul.mubr.f32.gmra.mrb[0].mxu0 %v3586
      %v3743 = vpop.f32.mrb[0].mxu0
      %v3744 = vadd.f32 0.0, %v3743
      %v3745 = vpop.f32.mrb[0].mxu0
      %3746 = vmatprep.mubr.f32.mxu0 0.0
      %3747 = vmatmul.mubr.f32.gmra.mrb[0].mxu0 %v3589
      %v3748 = vpop.f32.mrb[0].mxu0
      %v3749 = vadd.f32 0.0, %v3748
      %v3750 = vpop.f32.mrb[0].mxu0
      %3751 = vmatprep.mubr.f32.mxu0 0.0
      %3752 = vmatmul.mubr.f32.gmra.mrb[0].mxu0 %v3592
      %v3753 = vpop.f32.mrb[0].mxu0
      %v3754 = vadd.f32 0.0, %v3753
      %v3755 = vpop.f32.mrb[0].mxu0
      %3756 = vmatprep.mubr.f32.mxu0 0.0
      %3757 = vmatmul.mubr.f32.gmra.mrb[0].mxu0 %v3595
      %v3758 = vpop.f32.mrb[0].mxu0
      %v3759 = vadd.f32 0.0, %v3758
      %v3760 = vpop.f32.mrb[0].mxu0
      %3761 = vdwg.mxu0
      %v3763 = vsel %vm1081, %v3488, 0
      %v3766 = vsel %vm1081, %v3489, 0
      %v3769 = vsel %vm1081, %v3490, 0
      %v3772 = vsel %vm1081, %v3491, 0
      %v3775 = vsel %vm1081, %v3492, 0
      %v3778 = vsel %vm1081, %v3493, 0
      %v3781 = vsel %vm1081, %v3494, 0
      %v3784 = vsel %vm1081, %v3495, 0
      %v3787 = vsel %vm1081, %v3496, 0
      %v3790 = vsel %vm1081, %v3497, 0
      %v3793 = vsel %vm1081, %v3498, 0
      %v3796 = vsel %vm1081, %v3499, 0
      %v3799 = vsel %vm1081, %v3500, 0
      %v3802 = vsel %vm1081, %v3501, 0
      %v3805 = vsel %vm1081, %v3502, 0
      %v3808 = vsel %vm1081, %v3503, 0
      %v3811 = vsel %vm1081, %v3504, 0
      %v3814 = vsel %vm1081, %v3505, 0
      %v3817 = vsel %vm1081, %v3506, 0
      %v3820 = vsel %vm1081, %v3507, 0
      %3822 = vmatprep.subr.mxu0 0.0
      %3823 = vmatpush1.msra.mxu0 %v3529
      %3824 = vmatprep.subr.mxu0 0.0
      %3825 = vmatpush1.msra.mxu0 %v3530
      %3826 = vmatprep.subr.mxu0 0.0
      %3827 = vmatpush1.msra.mxu0 %v3531
      %3828 = vmatprep.subr.mxu0 0.0
      %3829 = vmatpush1.msra.mxu0 %v3532
      %3830 = vmatprep.subr.mxu0 0.0
      %3831 = vmatpush1.msra.mxu0 0.0
      %3832 = vmatprep.subr.mxu0 0.0
      %3833 = vmatpush1.msra.mxu0 0.0
      %3834 = vmatprep.subr.mxu0 0.0
      %3835 = vmatpush1.msra.mxu0 0.0
      %3836 = vmatprep.subr.mxu0 0.0
      %3837 = vmatpush1.msra.mxu0 0.0
      %3838 = vmatprep.subr.mxu0 0.0
      %3839 = vmatpush1.msra.mxu0 0.0
      %3840 = vmatprep.subr.mxu0 0.0
      %3841 = vmatpush1.msra.mxu0 0.0
      %3842 = vmatprep.subr.mxu0 0.0
      %3843 = vmatpush1.msra.mxu0 0.0
      %3844 = vmatprep.subr.mxu0 0.0
      %3845 = vmatpush1.msra.mxu0 0.0
      %3846 = vmatprep.subr.mxu0 0.0
      %3847 = vmatpush1.msra.mxu0 0.0
      %3848 = vmatprep.subr.mxu0 0.0
      %3849 = vmatpush1.msra.mxu0 0.0
      %3850 = vmatprep.subr.mxu0 0.0
      %3851 = vmatpush1.msra.mxu0 0.0
      %3852 = vmatprep.subr.mxu0 0.0
      %3853 = vmatpush1.msra.mxu0 0.0
      %3854 = vmatprep.subr.mxu0 0.0
      %3855 = vmatpush1.msra.mxu0 0.0
      %3856 = vmatprep.subr.mxu0 0.0
      %3857 = vmatpush1.msra.mxu0 0.0
      %3858 = vmatprep.subr.mxu0 0.0
      %3859 = vmatpush1.msra.mxu0 0.0
      %3860 = vmatprep.subr.mxu0 0.0
      %3861 = vmatpush1.msra.mxu0 0.0
      %3862 = vmatprep.subr.mxu0 0.0
      %3863 = vmatpush1.msra.mxu0 0.0
      %3864 = vmatprep.subr.mxu0 0.0
      %3865 = vmatpush1.msra.mxu0 0.0
      %3866 = vmatprep.subr.mxu0 0.0
      %3867 = vmatpush1.msra.mxu0 0.0
      %3868 = vmatprep.subr.mxu0 0.0
      %3869 = vmatpush1.msra.mxu0 0.0
      %3870 = vmatprep.subr.mxu0 0.0
      %3871 = vmatpush1.msra.mxu0 0.0
      %3872 = vmatprep.subr.mxu0 0.0
      %3873 = vmatpush1.msra.mxu0 0.0
      %3874 = vmatprep.subr.mxu0 0.0
      %3875 = vmatpush1.msra.mxu0 0.0
      %3876 = vmatprep.subr.mxu0 0.0
      %3877 = vmatpush1.msra.mxu0 0.0
      %3878 = vmatprep.subr.mxu0 0.0
      %3879 = vmatpush1.msra.mxu0 0.0
      %3880 = vmatprep.subr.mxu0 0.0
      %3881 = vmatpush1.msra.mxu0 0.0
      %3882 = vmatprep.subr.mxu0 0.0
      %3883 = vmatpush1.msra.mxu0 0.0
      %3884 = vmatprep.subr.mxu0 0.0
      %3885 = vmatpush1.msra.mxu0 0.0
      %3886 = vmatprep.mubr.f32.mxu0 0.0
      %3887 = vmatmul.mubr.f32.gmra.mrb[0].mxu0 %v3763
      %v3888 = vpop.f32.mrb[0].mxu0
      %v3889 = vadd.f32 %v3664, %v3888
      %v3890 = vpop.f32.mrb[0].mxu0
      %3891 = vmatprep.mubr.f32.mxu0 0.0
      %3892 = vmatmul.mubr.f32.gmra.mrb[0].mxu0 %v3766
      %v3893 = vpop.f32.mrb[0].mxu0
      %v3894 = vadd.f32 %v3669, %v3893
      %v3895 = vpop.f32.mrb[0].mxu0
      %3896 = vmatprep.mubr.f32.mxu0 0.0
      %3897 = vmatmul.mubr.f32.gmra.mrb[0].mxu0 %v3769
      %v3898 = vpop.f32.mrb[0].mxu0
      %v3899 = vadd.f32 %v3674, %v3898
      %v3900 = vpop.f32.mrb[0].mxu0
      %3901 = vmatprep.mubr.f32.mxu0 0.0
      %3902 = vmatmul.mubr.f32.gmra.mrb[0].mxu0 %v3772
      %v3903 = vpop.f32.mrb[0].mxu0
      %v3904 = vadd.f32 %v3679, %v3903
      %v3905 = vpop.f32.mrb[0].mxu0
      %3906 = vmatprep.mubr.f32.mxu0 0.0
      %3907 = vmatmul.mubr.f32.gmra.mrb[0].mxu0 %v3775
      %v3908 = vpop.f32.mrb[0].mxu0
      %v3909 = vadd.f32 %v3684, %v3908
      %v3910 = vpop.f32.mrb[0].mxu0
      %3911 = vmatprep.mubr.f32.mxu0 0.0
      %3912 = vmatmul.mubr.f32.gmra.mrb[0].mxu0 %v3778
      %v3913 = vpop.f32.mrb[0].mxu0
      %v3914 = vadd.f32 %v3689, %v3913
      %v3915 = vpop.f32.mrb[0].mxu0
      %3916 = vmatprep.mubr.f32.mxu0 0.0
      %3917 = vmatmul.mubr.f32.gmra.mrb[0].mxu0 %v3781
      %v3918 = vpop.f32.mrb[0].mxu0
      %v3919 = vadd.f32 %v3694, %v3918
      %v3920 = vpop.f32.mrb[0].mxu0
      %3921 = vmatprep.mubr.f32.mxu0 0.0
      %3922 = vmatmul.mubr.f32.gmra.mrb[0].mxu0 %v3784
      %v3923 = vpop.f32.mrb[0].mxu0
      %v3924 = vadd.f32 %v3699, %v3923
      %v3925 = vpop.f32.mrb[0].mxu0
      %3926 = vmatprep.mubr.f32.mxu0 0.0
      %3927 = vmatmul.mubr.f32.gmra.mrb[0].mxu0 %v3787
      %v3928 = vpop.f32.mrb[0].mxu0
      %v3929 = vadd.f32 %v3704, %v3928
      %v3930 = vpop.f32.mrb[0].mxu0
      %3931 = vmatprep.mubr.f32.mxu0 0.0
      %3932 = vmatmul.mubr.f32.gmra.mrb[0].mxu0 %v3790
      %v3933 = vpop.f32.mrb[0].mxu0
      %v3934 = vadd.f32 %v3709, %v3933
      %v3935 = vpop.f32.mrb[0].mxu0
      %3936 = vmatprep.mubr.f32.mxu0 0.0
      %3937 = vmatmul.mubr.f32.gmra.mrb[0].mxu0 %v3793
      %v3938 = vpop.f32.mrb[0].mxu0
      %v3939 = vadd.f32 %v3714, %v3938
      %v3940 = vpop.f32.mrb[0].mxu0
      %3941 = vmatprep.mubr.f32.mxu0 0.0
      %3942 = vmatmul.mubr.f32.gmra.mrb[0].mxu0 %v3796
      %v3943 = vpop.f32.mrb[0].mxu0
      %v3944 = vadd.f32 %v3719, %v3943
      %v3945 = vpop.f32.mrb[0].mxu0
      %3946 = vmatprep.mubr.f32.mxu0 0.0
      %3947 = vmatmul.mubr.f32.gmra.mrb[0].mxu0 %v3799
      %v3948 = vpop.f32.mrb[0].mxu0
      %v3949 = vadd.f32 %v3724, %v3948
      %v3950 = vpop.f32.mrb[0].mxu0
      %3951 = vmatprep.mubr.f32.mxu0 0.0
      %3952 = vmatmul.mubr.f32.gmra.mrb[0].mxu0 %v3802
      %v3953 = vpop.f32.mrb[0].mxu0
      %v3954 = vadd.f32 %v3729, %v3953
      %v3955 = vpop.f32.mrb[0].mxu0
      %3956 = vmatprep.mubr.f32.mxu0 0.0
      %3957 = vmatmul.mubr.f32.gmra.mrb[0].mxu0 %v3805
      %v3958 = vpop.f32.mrb[0].mxu0
      %v3959 = vadd.f32 %v3734, %v3958
      %v3960 = vpop.f32.mrb[0].mxu0
      %3961 = vmatprep.mubr.f32.mxu0 0.0
      %3962 = vmatmul.mubr.f32.gmra.mrb[0].mxu0 %v3808
      %v3963 = vpop.f32.mrb[0].mxu0
      %v3964 = vadd.f32 %v3739, %v3963
      %v3965 = vpop.f32.mrb[0].mxu0
      %3966 = vmatprep.mubr.f32.mxu0 0.0
      %3967 = vmatmul.mubr.f32.gmra.mrb[0].mxu0 %v3811
      %v3968 = vpop.f32.mrb[0].mxu0
      %v3969 = vadd.f32 %v3744, %v3968
      %v3970 = vpop.f32.mrb[0].mxu0
      %3971 = vmatprep.mubr.f32.mxu0 0.0
      %3972 = vmatmul.mubr.f32.gmra.mrb[0].mxu0 %v3814
      %v3973 = vpop.f32.mrb[0].mxu0
      %v3974 = vadd.f32 %v3749, %v3973
      %v3975 = vpop.f32.mrb[0].mxu0
      %3976 = vmatprep.mubr.f32.mxu0 0.0
      %3977 = vmatmul.mubr.f32.gmra.mrb[0].mxu0 %v3817
      %v3978 = vpop.f32.mrb[0].mxu0
      %v3979 = vadd.f32 %v3754, %v3978
      %v3980 = vpop.f32.mrb[0].mxu0
      %3981 = vmatprep.mubr.f32.mxu0 0.0
      %3982 = vmatmul.mubr.f32.gmra.mrb[0].mxu0 %v3820
      %v3983 = vpop.f32.mrb[0].mxu0
      %v3984 = vadd.f32 %v3759, %v3983
      %v3985 = vpop.f32.mrb[0].mxu0
      %3986 = vdwg.mxu0
      %s3987 = scalar_lea.vmem %s6, 2
      %v3988 = vld [vmem:[%s3987] sm:$0x1]
      %v3990 = vlaneseq
      %v3991 = vshrl.u32 %v3990, 7
      %v3992 = vsub.s32 0, %v3991
      %v3993 = vrot.slane %v3988, %v3992
      %v3995 = vadd.f32 %v3889, %v3993
      %v3996 = vadd.f32 %v3894, %v3993
      %v3997 = vadd.f32 %v3899, %v3993
      %v3998 = vadd.f32 %v3904, %v3993
      %v3999 = vadd.f32 %v3909, %v3993
      %v4000 = vadd.f32 %v3914, %v3993
      %v4001 = vadd.f32 %v3919, %v3993
      %v4002 = vadd.f32 %v3924, %v3993
      %v4003 = vadd.f32 %v3929, %v3993
      %v4004 = vadd.f32 %v3934, %v3993
      %v4005 = vadd.f32 %v3939, %v3993
      %v4006 = vadd.f32 %v3944, %v3993
      %v4007 = vadd.f32 %v3949, %v3993
      %v4008 = vadd.f32 %v3954, %v3993
      %v4009 = vadd.f32 %v3959, %v3993
      %v4010 = vadd.f32 %v3964, %v3993
      %v4011 = vadd.f32 %v3969, %v3993
      %v4012 = vadd.f32 %v3974, %v3993
      %v4013 = vadd.f32 %v3979, %v3993
      %v4014 = vadd.f32 %v3984, %v3993
      %v4015 = vmax.f32 %v3995, 0.0
      %v4016 = vmax.f32 %v3996, 0.0
      %v4017 = vmax.f32 %v3997, 0.0
      %v4018 = vmax.f32 %v3998, 0.0
      %v4019 = vmax.f32 %v3999, 0.0
      %v4020 = vmax.f32 %v4000, 0.0
      %v4021 = vmax.f32 %v4001, 0.0
      %v4022 = vmax.f32 %v4002, 0.0
      %v4023 = vmax.f32 %v4003, 0.0
      %v4024 = vmax.f32 %v4004, 0.0
      %v4025 = vmax.f32 %v4005, 0.0
      %v4026 = vmax.f32 %v4006, 0.0
      %v4027 = vmax.f32 %v4007, 0.0
      %v4028 = vmax.f32 %v4008, 0.0
      %v4029 = vmax.f32 %v4009, 0.0
      %v4030 = vmax.f32 %v4010, 0.0
      %v4031 = vmax.f32 %v4011, 0.0
      %v4032 = vmax.f32 %v4012, 0.0
      %v4033 = vmax.f32 %v4013, 0.0
      %v4034 = vmax.f32 %v4014, 0.0
      %s4035 = scalar_lea.vmem %s7, 64
      %v4036 = vld [vmem:[%s4035] sm:$0xff]
      %v4037 = vld [vmem:[%s4035 + $0x8] sm:$0xff]
      %v4038 = vld [vmem:[%s4035 + $0x10] sm:$0xff]
      %v4039 = vld [vmem:[%s4035 + $0x18] sm:$0xff]
      %s4040 = scalar_lea.vmem %s8, 2
      %v4041 = vld [vmem:[%s4040] sm:$0x1]
      %v4043 = vlaneseq
      %v4044 = vshrl.u32 %v4043, 7
      %v4045 = vsub.s32 0, %v4044
      %v4046 = vrot.slane %v4041, %v4045
      %v4049 = vsel %vm1081, %v4015, 0
      %v4052 = vsel %vm1081, %v4016, 0
      %v4055 = vsel %vm1081, %v4017, 0
      %v4058 = vsel %vm1081, %v4018, 0
      %v4061 = vsel %vm1081, %v4019, 0
      %v4064 = vsel %vm1081, %v4020, 0
      %v4067 = vsel %vm1081, %v4021, 0
      %v4070 = vsel %vm1081, %v4022, 0
      %v4073 = vsel %vm1081, %v4023, 0
      %v4076 = vsel %vm1081, %v4024, 0
      %v4079 = vsel %vm1081, %v4025, 0
      %v4082 = vsel %vm1081, %v4026, 0
      %v4085 = vsel %vm1081, %v4027, 0
      %v4088 = vsel %vm1081, %v4028, 0
      %v4091 = vsel %vm1081, %v4029, 0
      %v4094 = vsel %vm1081, %v4030, 0
      %v4097 = vsel %vm1081, %v4031, 0
      %v4100 = vsel %vm1081, %v4032, 0
      %v4103 = vsel %vm1081, %v4033, 0
      %v4106 = vsel %vm1081, %v4034, 0
      %4108 = vmatprep.subr.mxu0 0.0
      %4109 = vmatpush1.msra.mxu0 %v4036
      %4110 = vmatprep.subr.mxu0 0.0
      %4111 = vmatpush1.msra.mxu0 %v4037
      %4112 = vmatprep.subr.mxu0 0.0
      %4113 = vmatpush1.msra.mxu0 %v4038
      %4114 = vmatprep.subr.mxu0 0.0
      %4115 = vmatpush1.msra.mxu0 %v4039
      %4116 = vmatprep.subr.mxu0 0.0
      %4117 = vmatpush1.msra.mxu0 0.0
      %4118 = vmatprep.subr.mxu0 0.0
      %4119 = vmatpush1.msra.mxu0 0.0
      %4120 = vmatprep.subr.mxu0 0.0
      %4121 = vmatpush1.msra.mxu0 0.0
      %4122 = vmatprep.subr.mxu0 0.0
      %4123 = vmatpush1.msra.mxu0 0.0
      %4124 = vmatprep.subr.mxu0 0.0
      %4125 = vmatpush1.msra.mxu0 0.0
      %4126 = vmatprep.subr.mxu0 0.0
      %4127 = vmatpush1.msra.mxu0 0.0
      %4128 = vmatprep.subr.mxu0 0.0
      %4129 = vmatpush1.msra.mxu0 0.0
      %4130 = vmatprep.subr.mxu0 0.0
      %4131 = vmatpush1.msra.mxu0 0.0
      %4132 = vmatprep.subr.mxu0 0.0
      %4133 = vmatpush1.msra.mxu0 0.0
      %4134 = vmatprep.subr.mxu0 0.0
      %4135 = vmatpush1.msra.mxu0 0.0
      %4136 = vmatprep.subr.mxu0 0.0
      %4137 = vmatpush1.msra.mxu0 0.0
      %4138 = vmatprep.subr.mxu0 0.0
      %4139 = vmatpush1.msra.mxu0 0.0
      %4140 = vmatprep.subr.mxu0 0.0
      %4141 = vmatpush1.msra.mxu0 0.0
      %4142 = vmatprep.subr.mxu0 0.0
      %4143 = vmatpush1.msra.mxu0 0.0
      %4144 = vmatprep.subr.mxu0 0.0
      %4145 = vmatpush1.msra.mxu0 0.0
      %4146 = vmatprep.subr.mxu0 0.0
      %4147 = vmatpush1.msra.mxu0 0.0
      %4148 = vmatprep.subr.mxu0 0.0
      %4149 = vmatpush1.msra.mxu0 0.0
      %4150 = vmatprep.subr.mxu0 0.0
      %4151 = vmatpush1.msra.mxu0 0.0
      %4152 = vmatprep.subr.mxu0 0.0
      %4153 = vmatpush1.msra.mxu0 0.0
      %4154 = vmatprep.subr.mxu0 0.0
      %4155 = vmatpush1.msra.mxu0 0.0
      %4156 = vmatprep.subr.mxu0 0.0
      %4157 = vmatpush1.msra.mxu0 0.0
      %4158 = vmatprep.subr.mxu0 0.0
      %4159 = vmatpush1.msra.mxu0 0.0
      %4160 = vmatprep.subr.mxu0 0.0
      %4161 = vmatpush1.msra.mxu0 0.0
      %4162 = vmatprep.subr.mxu0 0.0
      %4163 = vmatpush1.msra.mxu0 0.0
      %4164 = vmatprep.subr.mxu0 0.0
      %4165 = vmatpush1.msra.mxu0 0.0
      %4166 = vmatprep.subr.mxu0 0.0
      %4167 = vmatpush1.msra.mxu0 0.0
      %4168 = vmatprep.subr.mxu0 0.0
      %4169 = vmatpush1.msra.mxu0 0.0
      %4170 = vmatprep.subr.mxu0 0.0
      %4171 = vmatpush1.msra.mxu0 0.0
      %4172 = vmatprep.mubr.f32.mxu0 0.0
      %4173 = vmatmul.mubr.f32.gmra.mrb[0].mxu0 %v4049
      %v4174 = vpop.f32.mrb[0].mxu0
      %v4175 = vadd.f32 %v4046, %v4174
      %v4176 = vpop.f32.mrb[0].mxu0
      %4177 = vmatprep.mubr.f32.mxu0 0.0
      %4178 = vmatmul.mubr.f32.gmra.mrb[0].mxu0 %v4052
      %v4179 = vpop.f32.mrb[0].mxu0
      %v4180 = vadd.f32 %v4046, %v4179
      %v4181 = vpop.f32.mrb[0].mxu0
      %4182 = vmatprep.mubr.f32.mxu0 0.0
      %4183 = vmatmul.mubr.f32.gmra.mrb[0].mxu0 %v4055
      %v4184 = vpop.f32.mrb[0].mxu0
      %v4185 = vadd.f32 %v4046, %v4184
      %v4186 = vpop.f32.mrb[0].mxu0
      %4187 = vmatprep.mubr.f32.mxu0 0.0
      %4188 = vmatmul.mubr.f32.gmra.mrb[0].mxu0 %v4058
      %v4189 = vpop.f32.mrb[0].mxu0
      %v4190 = vadd.f32 %v4046, %v4189
      %v4191 = vpop.f32.mrb[0].mxu0
      %4192 = vmatprep.mubr.f32.mxu0 0.0
      %4193 = vmatmul.mubr.f32.gmra.mrb[0].mxu0 %v4061
      %v4194 = vpop.f32.mrb[0].mxu0
      %v4195 = vadd.f32 %v4046, %v4194
      %v4196 = vpop.f32.mrb[0].mxu0
      %4197 = vmatprep.mubr.f32.mxu0 0.0
      %4198 = vmatmul.mubr.f32.gmra.mrb[0].mxu0 %v4064
      %v4199 = vpop.f32.mrb[0].mxu0
      %v4200 = vadd.f32 %v4046, %v4199
      %v4201 = vpop.f32.mrb[0].mxu0
      %4202 = vmatprep.mubr.f32.mxu0 0.0
      %4203 = vmatmul.mubr.f32.gmra.mrb[0].mxu0 %v4067
      %v4204 = vpop.f32.mrb[0].mxu0
      %v4205 = vadd.f32 %v4046, %v4204
      %v4206 = vpop.f32.mrb[0].mxu0
      %4207 = vmatprep.mubr.f32.mxu0 0.0
      %4208 = vmatmul.mubr.f32.gmra.mrb[0].mxu0 %v4070
      %v4209 = vpop.f32.mrb[0].mxu0
      %v4210 = vadd.f32 %v4046, %v4209
      %v4211 = vpop.f32.mrb[0].mxu0
      %4212 = vmatprep.mubr.f32.mxu0 0.0
      %4213 = vmatmul.mubr.f32.gmra.mrb[0].mxu0 %v4073
      %v4214 = vpop.f32.mrb[0].mxu0
      %v4215 = vadd.f32 %v4046, %v4214
      %v4216 = vpop.f32.mrb[0].mxu0
      %4217 = vmatprep.mubr.f32.mxu0 0.0
      %4218 = vmatmul.mubr.f32.gmra.mrb[0].mxu0 %v4076
      %v4219 = vpop.f32.mrb[0].mxu0
      %v4220 = vadd.f32 %v4046, %v4219
      %v4221 = vpop.f32.mrb[0].mxu0
      %4222 = vmatprep.mubr.f32.mxu0 0.0
      %4223 = vmatmul.mubr.f32.gmra.mrb[0].mxu0 %v4079
      %v4224 = vpop.f32.mrb[0].mxu0
      %v4225 = vadd.f32 %v4046, %v4224
      %v4226 = vpop.f32.mrb[0].mxu0
      %4227 = vmatprep.mubr.f32.mxu0 0.0
      %4228 = vmatmul.mubr.f32.gmra.mrb[0].mxu0 %v4082
      %v4229 = vpop.f32.mrb[0].mxu0
      %v4230 = vadd.f32 %v4046, %v4229
      %v4231 = vpop.f32.mrb[0].mxu0
      %4232 = vmatprep.mubr.f32.mxu0 0.0
      %4233 = vmatmul.mubr.f32.gmra.mrb[0].mxu0 %v4085
      %v4234 = vpop.f32.mrb[0].mxu0
      %v4235 = vadd.f32 %v4046, %v4234
      %v4236 = vpop.f32.mrb[0].mxu0
      %4237 = vmatprep.mubr.f32.mxu0 0.0
      %4238 = vmatmul.mubr.f32.gmra.mrb[0].mxu0 %v4088
      %v4239 = vpop.f32.mrb[0].mxu0
      %v4240 = vadd.f32 %v4046, %v4239
      %v4241 = vpop.f32.mrb[0].mxu0
      %4242 = vmatprep.mubr.f32.mxu0 0.0
      %4243 = vmatmul.mubr.f32.gmra.mrb[0].mxu0 %v4091
      %v4244 = vpop.f32.mrb[0].mxu0
      %v4245 = vadd.f32 %v4046, %v4244
      %v4246 = vpop.f32.mrb[0].mxu0
      %4247 = vmatprep.mubr.f32.mxu0 0.0
      %4248 = vmatmul.mubr.f32.gmra.mrb[0].mxu0 %v4094
      %v4249 = vpop.f32.mrb[0].mxu0
      %v4250 = vadd.f32 %v4046, %v4249
      %v4251 = vpop.f32.mrb[0].mxu0
      %4252 = vmatprep.mubr.f32.mxu0 0.0
      %4253 = vmatmul.mubr.f32.gmra.mrb[0].mxu0 %v4097
      %v4254 = vpop.f32.mrb[0].mxu0
      %v4255 = vadd.f32 %v4046, %v4254
      %v4256 = vpop.f32.mrb[0].mxu0
      %4257 = vmatprep.mubr.f32.mxu0 0.0
      %4258 = vmatmul.mubr.f32.gmra.mrb[0].mxu0 %v4100
      %v4259 = vpop.f32.mrb[0].mxu0
      %v4260 = vadd.f32 %v4046, %v4259
      %v4261 = vpop.f32.mrb[0].mxu0
      %4262 = vmatprep.mubr.f32.mxu0 0.0
      %4263 = vmatmul.mubr.f32.gmra.mrb[0].mxu0 %v4103
      %v4264 = vpop.f32.mrb[0].mxu0
      %v4265 = vadd.f32 %v4046, %v4264
      %v4266 = vpop.f32.mrb[0].mxu0
      %4267 = vmatprep.mubr.f32.mxu0 0.0
      %4268 = vmatmul.mubr.f32.gmra.mrb[0].mxu0 %v4106
      %v4269 = vpop.f32.mrb[0].mxu0
      %v4270 = vadd.f32 %v4046, %v4269
      %v4271 = vpop.f32.mrb[0].mxu0
      %4272 = vdwg.mxu0
      %s4273 = scalar_lea.vmem %s9, 128
      %v4274 = vld [vmem:[%s4273] sm:$0xff]
      %v4275 = vld [vmem:[%s4273 + $0x8] sm:$0xff]
      %v4276 = vld [vmem:[%s4273 + $0x10] sm:$0xff]
      %v4277 = vld [vmem:[%s4273 + $0x18] sm:$0xff]
      %v4278 = vld [vmem:[%s4273 + $0x20] sm:$0xff]
      %v4279 = vld [vmem:[%s4273 + $0x28] sm:$0xff]
      %v4280 = vld [vmem:[%s4273 + $0x30] sm:$0xff]
      %v4281 = vld [vmem:[%s4273 + $0x38] sm:$0xff]
      %v4283 = vsel %vm1081, %v3410, 0
      %v4286 = vsel %vm1081, %v3413, 0
      %v4289 = vsel %vm1081, %v3418, 0
      %v4292 = vsel %vm1081, %v3421, 0
      %v4295 = vsel %vm1081, %v3426, 0
      %v4298 = vsel %vm1081, %v3429, 0
      %v4301 = vsel %vm1081, %v3434, 0
      %v4304 = vsel %vm1081, %v3437, 0
      %v4307 = vsel %vm1081, %v3442, 0
      %v4310 = vsel %vm1081, %v3445, 0
      %v4313 = vsel %vm1081, %v3450, 0
      %v4316 = vsel %vm1081, %v3453, 0
      %v4319 = vsel %vm1081, %v3458, 0
      %v4322 = vsel %vm1081, %v3461, 0
      %v4325 = vsel %vm1081, %v3466, 0
      %v4328 = vsel %vm1081, %v3469, 0
      %v4331 = vsel %vm1081, %v3474, 0
      %v4334 = vsel %vm1081, %v3477, 0
      %v4337 = vsel %vm1081, %v3482, 0
      %v4340 = vsel %vm1081, %v3485, 0
      %4342 = vmatprep.subr.mxu0 0.0
      %4343 = vmatpush1.msra.mxu0 %v4278
      %4344 = vmatprep.subr.mxu0 0.0
      %4345 = vmatpush1.msra.mxu0 %v4279
      %4346 = vmatprep.subr.mxu0 0.0
      %4347 = vmatpush1.msra.mxu0 %v4280
      %4348 = vmatprep.subr.mxu0 0.0
      %4349 = vmatpush1.msra.mxu0 %v4281
      %4350 = vmatprep.subr.mxu0 0.0
      %4351 = vmatpush1.msra.mxu0 0.0
      %4352 = vmatprep.subr.mxu0 0.0
      %4353 = vmatpush1.msra.mxu0 0.0
      %4354 = vmatprep.subr.mxu0 0.0
      %4355 = vmatpush1.msra.mxu0 0.0
      %4356 = vmatprep.subr.mxu0 0.0
      %4357 = vmatpush1.msra.mxu0 0.0
      %4358 = vmatprep.subr.mxu0 0.0
      %4359 = vmatpush1.msra.mxu0 0.0
      %4360 = vmatprep.subr.mxu0 0.0
      %4361 = vmatpush1.msra.mxu0 0.0
      %4362 = vmatprep.subr.mxu0 0.0
      %4363 = vmatpush1.msra.mxu0 0.0
      %4364 = vmatprep.subr.mxu0 0.0
      %4365 = vmatpush1.msra.mxu0 0.0
      %4366 = vmatprep.subr.mxu0 0.0
      %4367 = vmatpush1.msra.mxu0 0.0
      %4368 = vmatprep.subr.mxu0 0.0
      %4369 = vmatpush1.msra.mxu0 0.0
      %4370 = vmatprep.subr.mxu0 0.0
      %4371 = vmatpush1.msra.mxu0 0.0
      %4372 = vmatprep.subr.mxu0 0.0
      %4373 = vmatpush1.msra.mxu0 0.0
      %4374 = vmatprep.subr.mxu0 0.0
      %4375 = vmatpush1.msra.mxu0 0.0
      %4376 = vmatprep.subr.mxu0 0.0
      %4377 = vmatpush1.msra.mxu0 0.0
      %4378 = vmatprep.subr.mxu0 0.0
      %4379 = vmatpush1.msra.mxu0 0.0
      %4380 = vmatprep.subr.mxu0 0.0
      %4381 = vmatpush1.msra.mxu0 0.0
      %4382 = vmatprep.subr.mxu0 0.0
      %4383 = vmatpush1.msra.mxu0 0.0
      %4384 = vmatprep.subr.mxu0 0.0
      %4385 = vmatpush1.msra.mxu0 0.0
      %4386 = vmatprep.subr.mxu0 0.0
      %4387 = vmatpush1.msra.mxu0 0.0
      %4388 = vmatprep.subr.mxu0 0.0
      %4389 = vmatpush1.msra.mxu0 0.0
      %4390 = vmatprep.subr.mxu0 0.0
      %4391 = vmatpush1.msra.mxu0 0.0
      %4392 = vmatprep.subr.mxu0 0.0
      %4393 = vmatpush1.msra.mxu0 0.0
      %4394 = vmatprep.subr.mxu0 0.0
      %4395 = vmatpush1.msra.mxu0 0.0
      %4396 = vmatprep.subr.mxu0 0.0
      %4397 = vmatpush1.msra.mxu0 0.0
      %4398 = vmatprep.subr.mxu0 0.0
      %4399 = vmatpush1.msra.mxu0 0.0
      %4400 = vmatprep.subr.mxu0 0.0
      %4401 = vmatpush1.msra.mxu0 0.0
      %4402 = vmatprep.subr.mxu0 0.0
      %4403 = vmatpush1.msra.mxu0 0.0
      %4404 = vmatprep.subr.mxu0 0.0
      %4405 = vmatpush1.msra.mxu0 0.0
      %4406 = vmatprep.mubr.f32.mxu0 0.0
      %4407 = vmatmul.mubr.f32.gmra.mrb[0].mxu0 %v4283
      %v4408 = vpop.f32.mrb[0].mxu0
      %v4409 = vadd.f32 0.0, %v4408
      %v4410 = vpop.f32.mrb[0].mxu0
      %4411 = vmatprep.mubr.f32.mxu0 0.0
      %4412 = vmatmul.mubr.f32.gmra.mrb[0].mxu0 %v4286
      %v4413 = vpop.f32.mrb[0].mxu0
      %v4414 = vadd.f32 0.0, %v4413
      %v4415 = vpop.f32.mrb[0].mxu0
      %4416 = vmatprep.mubr.f32.mxu0 0.0
      %4417 = vmatmul.mubr.f32.gmra.mrb[0].mxu0 %v4289
      %v4418 = vpop.f32.mrb[0].mxu0
      %v4419 = vadd.f32 0.0, %v4418
      %v4420 = vpop.f32.mrb[0].mxu0
      %4421 = vmatprep.mubr.f32.mxu0 0.0
      %4422 = vmatmul.mubr.f32.gmra.mrb[0].mxu0 %v4292
      %v4423 = vpop.f32.mrb[0].mxu0
      %v4424 = vadd.f32 0.0, %v4423
      %v4425 = vpop.f32.mrb[0].mxu0
      %4426 = vmatprep.mubr.f32.mxu0 0.0
      %4427 = vmatmul.mubr.f32.gmra.mrb[0].mxu0 %v4295
      %v4428 = vpop.f32.mrb[0].mxu0
      %v4429 = vadd.f32 0.0, %v4428
      %v4430 = vpop.f32.mrb[0].mxu0
      %4431 = vmatprep.mubr.f32.mxu0 0.0
      %4432 = vmatmul.mubr.f32.gmra.mrb[0].mxu0 %v4298
      %v4433 = vpop.f32.mrb[0].mxu0
      %v4434 = vadd.f32 0.0, %v4433
      %v4435 = vpop.f32.mrb[0].mxu0
      %4436 = vmatprep.mubr.f32.mxu0 0.0
      %4437 = vmatmul.mubr.f32.gmra.mrb[0].mxu0 %v4301
      %v4438 = vpop.f32.mrb[0].mxu0
      %v4439 = vadd.f32 0.0, %v4438
      %v4440 = vpop.f32.mrb[0].mxu0
      %4441 = vmatprep.mubr.f32.mxu0 0.0
      %4442 = vmatmul.mubr.f32.gmra.mrb[0].mxu0 %v4304
      %v4443 = vpop.f32.mrb[0].mxu0
      %v4444 = vadd.f32 0.0, %v4443
      %v4445 = vpop.f32.mrb[0].mxu0
      %4446 = vmatprep.mubr.f32.mxu0 0.0
      %4447 = vmatmul.mubr.f32.gmra.mrb[0].mxu0 %v4307
      %v4448 = vpop.f32.mrb[0].mxu0
      %v4449 = vadd.f32 0.0, %v4448
      %v4450 = vpop.f32.mrb[0].mxu0
      %4451 = vmatprep.mubr.f32.mxu0 0.0
      %4452 = vmatmul.mubr.f32.gmra.mrb[0].mxu0 %v4310
      %v4453 = vpop.f32.mrb[0].mxu0
      %v4454 = vadd.f32 0.0, %v4453
      %v4455 = vpop.f32.mrb[0].mxu0
      %4456 = vmatprep.mubr.f32.mxu0 0.0
      %4457 = vmatmul.mubr.f32.gmra.mrb[0].mxu0 %v4313
      %v4458 = vpop.f32.mrb[0].mxu0
      %v4459 = vadd.f32 0.0, %v4458
      %v4460 = vpop.f32.mrb[0].mxu0
      %4461 = vmatprep.mubr.f32.mxu0 0.0
      %4462 = vmatmul.mubr.f32.gmra.mrb[0].mxu0 %v4316
      %v4463 = vpop.f32.mrb[0].mxu0
      %v4464 = vadd.f32 0.0, %v4463
      %v4465 = vpop.f32.mrb[0].mxu0
      %4466 = vmatprep.mubr.f32.mxu0 0.0
      %4467 = vmatmul.mubr.f32.gmra.mrb[0].mxu0 %v4319
      %v4468 = vpop.f32.mrb[0].mxu0
      %v4469 = vadd.f32 0.0, %v4468
      %v4470 = vpop.f32.mrb[0].mxu0
      %4471 = vmatprep.mubr.f32.mxu0 0.0
      %4472 = vmatmul.mubr.f32.gmra.mrb[0].mxu0 %v4322
      %v4473 = vpop.f32.mrb[0].mxu0
      %v4474 = vadd.f32 0.0, %v4473
      %v4475 = vpop.f32.mrb[0].mxu0
      %4476 = vmatprep.mubr.f32.mxu0 0.0
      %4477 = vmatmul.mubr.f32.gmra.mrb[0].mxu0 %v4325
      %v4478 = vpop.f32.mrb[0].mxu0
      %v4479 = vadd.f32 0.0, %v4478
      %v4480 = vpop.f32.mrb[0].mxu0
      %4481 = vmatprep.mubr.f32.mxu0 0.0
      %4482 = vmatmul.mubr.f32.gmra.mrb[0].mxu0 %v4328
      %v4483 = vpop.f32.mrb[0].mxu0
      %v4484 = vadd.f32 0.0, %v4483
      %v4485 = vpop.f32.mrb[0].mxu0
      %4486 = vmatprep.mubr.f32.mxu0 0.0
      %4487 = vmatmul.mubr.f32.gmra.mrb[0].mxu0 %v4331
      %v4488 = vpop.f32.mrb[0].mxu0
      %v4489 = vadd.f32 0.0, %v4488
      %v4490 = vpop.f32.mrb[0].mxu0
      %4491 = vmatprep.mubr.f32.mxu0 0.0
      %4492 = vmatmul.mubr.f32.gmra.mrb[0].mxu0 %v4334
      %v4493 = vpop.f32.mrb[0].mxu0
      %v4494 = vadd.f32 0.0, %v4493
      %v4495 = vpop.f32.mrb[0].mxu0
      %4496 = vmatprep.mubr.f32.mxu0 0.0
      %4497 = vmatmul.mubr.f32.gmra.mrb[0].mxu0 %v4337
      %v4498 = vpop.f32.mrb[0].mxu0
      %v4499 = vadd.f32 0.0, %v4498
      %v4500 = vpop.f32.mrb[0].mxu0
      %4501 = vmatprep.mubr.f32.mxu0 0.0
      %4502 = vmatmul.mubr.f32.gmra.mrb[0].mxu0 %v4340
      %v4503 = vpop.f32.mrb[0].mxu0
      %v4504 = vadd.f32 0.0, %v4503
      %v4505 = vpop.f32.mrb[0].mxu0
      %4506 = vdwg.mxu0
      %v4508 = vsel %vm1081, %v3224, 0
      %v4511 = vsel %vm1081, %v3225, 0
      %v4514 = vsel %vm1081, %v3226, 0
      %v4517 = vsel %vm1081, %v3227, 0
      %v4520 = vsel %vm1081, %v3228, 0
      %v4523 = vsel %vm1081, %v3229, 0
      %v4526 = vsel %vm1081, %v3230, 0
      %v4529 = vsel %vm1081, %v3231, 0
      %v4532 = vsel %vm1081, %v3232, 0
      %v4535 = vsel %vm1081, %v3233, 0
      %v4538 = vsel %vm1081, %v3234, 0
      %v4541 = vsel %vm1081, %v3235, 0
      %v4544 = vsel %vm1081, %v3236, 0
      %v4547 = vsel %vm1081, %v3237, 0
      %v4550 = vsel %vm1081, %v3238, 0
      %v4553 = vsel %vm1081, %v3239, 0
      %v4556 = vsel %vm1081, %v3240, 0
      %v4559 = vsel %vm1081, %v3241, 0
      %v4562 = vsel %vm1081, %v3242, 0
      %v4565 = vsel %vm1081, %v3243, 0
      %4567 = vmatprep.subr.mxu0 0.0
      %4568 = vmatpush1.msra.mxu0 %v4274
      %4569 = vmatprep.subr.mxu0 0.0
      %4570 = vmatpush1.msra.mxu0 %v4275
      %4571 = vmatprep.subr.mxu0 0.0
      %4572 = vmatpush1.msra.mxu0 %v4276
      %4573 = vmatprep.subr.mxu0 0.0
      %4574 = vmatpush1.msra.mxu0 %v4277
      %4575 = vmatprep.subr.mxu0 0.0
      %4576 = vmatpush1.msra.mxu0 0.0
      %4577 = vmatprep.subr.mxu0 0.0
      %4578 = vmatpush1.msra.mxu0 0.0
      %4579 = vmatprep.subr.mxu0 0.0
      %4580 = vmatpush1.msra.mxu0 0.0
      %4581 = vmatprep.subr.mxu0 0.0
      %4582 = vmatpush1.msra.mxu0 0.0
      %4583 = vmatprep.subr.mxu0 0.0
      %4584 = vmatpush1.msra.mxu0 0.0
      %4585 = vmatprep.subr.mxu0 0.0
      %4586 = vmatpush1.msra.mxu0 0.0
      %4587 = vmatprep.subr.mxu0 0.0
      %4588 = vmatpush1.msra.mxu0 0.0
      %4589 = vmatprep.subr.mxu0 0.0
      %4590 = vmatpush1.msra.mxu0 0.0
      %4591 = vmatprep.subr.mxu0 0.0
      %4592 = vmatpush1.msra.mxu0 0.0
      %4593 = vmatprep.subr.mxu0 0.0
      %4594 = vmatpush1.msra.mxu0 0.0
      %4595 = vmatprep.subr.mxu0 0.0
      %4596 = vmatpush1.msra.mxu0 0.0
      %4597 = vmatprep.subr.mxu0 0.0
      %4598 = vmatpush1.msra.mxu0 0.0
      %4599 = vmatprep.subr.mxu0 0.0
      %4600 = vmatpush1.msra.mxu0 0.0
      %4601 = vmatprep.subr.mxu0 0.0
      %4602 = vmatpush1.msra.mxu0 0.0
      %4603 = vmatprep.subr.mxu0 0.0
      %4604 = vmatpush1.msra.mxu0 0.0
      %4605 = vmatprep.subr.mxu0 0.0
      %4606 = vmatpush1.msra.mxu0 0.0
      %4607 = vmatprep.subr.mxu0 0.0
      %4608 = vmatpush1.msra.mxu0 0.0
      %4609 = vmatprep.subr.mxu0 0.0
      %4610 = vmatpush1.msra.mxu0 0.0
      %4611 = vmatprep.subr.mxu0 0.0
      %4612 = vmatpush1.msra.mxu0 0.0
      %4613 = vmatprep.subr.mxu0 0.0
      %4614 = vmatpush1.msra.mxu0 0.0
      %4615 = vmatprep.subr.mxu0 0.0
      %4616 = vmatpush1.msra.mxu0 0.0
      %4617 = vmatprep.subr.mxu0 0.0
      %4618 = vmatpush1.msra.mxu0 0.0
      %4619 = vmatprep.subr.mxu0 0.0
      %4620 = vmatpush1.msra.mxu0 0.0
      %4621 = vmatprep.subr.mxu0 0.0
      %4622 = vmatpush1.msra.mxu0 0.0
      %4623 = vmatprep.subr.mxu0 0.0
      %4624 = vmatpush1.msra.mxu0 0.0
      %4625 = vmatprep.subr.mxu0 0.0
      %4626 = vmatpush1.msra.mxu0 0.0
      %4627 = vmatprep.subr.mxu0 0.0
      %4628 = vmatpush1.msra.mxu0 0.0
      %4629 = vmatprep.subr.mxu0 0.0
      %4630 = vmatpush1.msra.mxu0 0.0
      %4631 = vmatprep.mubr.f32.mxu0 0.0
      %4632 = vmatmul.mubr.f32.gmra.mrb[0].mxu0 %v4508
      %v4633 = vpop.f32.mrb[0].mxu0
      %v4634 = vadd.f32 %v4409, %v4633
      %v4635 = vpop.f32.mrb[0].mxu0
      %4636 = vmatprep.mubr.f32.mxu0 0.0
      %4637 = vmatmul.mubr.f32.gmra.mrb[0].mxu0 %v4511
      %v4638 = vpop.f32.mrb[0].mxu0
      %v4639 = vadd.f32 %v4414, %v4638
      %v4640 = vpop.f32.mrb[0].mxu0
      %4641 = vmatprep.mubr.f32.mxu0 0.0
      %4642 = vmatmul.mubr.f32.gmra.mrb[0].mxu0 %v4514
      %v4643 = vpop.f32.mrb[0].mxu0
      %v4644 = vadd.f32 %v4419, %v4643
      %v4645 = vpop.f32.mrb[0].mxu0
      %4646 = vmatprep.mubr.f32.mxu0 0.0
      %4647 = vmatmul.mubr.f32.gmra.mrb[0].mxu0 %v4517
      %v4648 = vpop.f32.mrb[0].mxu0
      %v4649 = vadd.f32 %v4424, %v4648
      %v4650 = vpop.f32.mrb[0].mxu0
      %4651 = vmatprep.mubr.f32.mxu0 0.0
      %4652 = vmatmul.mubr.f32.gmra.mrb[0].mxu0 %v4520
      %v4653 = vpop.f32.mrb[0].mxu0
      %v4654 = vadd.f32 %v4429, %v4653
      %v4655 = vpop.f32.mrb[0].mxu0
      %4656 = vmatprep.mubr.f32.mxu0 0.0
      %4657 = vmatmul.mubr.f32.gmra.mrb[0].mxu0 %v4523
      %v4658 = vpop.f32.mrb[0].mxu0
      %v4659 = vadd.f32 %v4434, %v4658
      %v4660 = vpop.f32.mrb[0].mxu0
      %4661 = vmatprep.mubr.f32.mxu0 0.0
      %4662 = vmatmul.mubr.f32.gmra.mrb[0].mxu0 %v4526
      %v4663 = vpop.f32.mrb[0].mxu0
      %v4664 = vadd.f32 %v4439, %v4663
      %v4665 = vpop.f32.mrb[0].mxu0
      %4666 = vmatprep.mubr.f32.mxu0 0.0
      %4667 = vmatmul.mubr.f32.gmra.mrb[0].mxu0 %v4529
      %v4668 = vpop.f32.mrb[0].mxu0
      %v4669 = vadd.f32 %v4444, %v4668
      %v4670 = vpop.f32.mrb[0].mxu0
      %4671 = vmatprep.mubr.f32.mxu0 0.0
      %4672 = vmatmul.mubr.f32.gmra.mrb[0].mxu0 %v4532
      %v4673 = vpop.f32.mrb[0].mxu0
      %v4674 = vadd.f32 %v4449, %v4673
      %v4675 = vpop.f32.mrb[0].mxu0
      %4676 = vmatprep.mubr.f32.mxu0 0.0
      %4677 = vmatmul.mubr.f32.gmra.mrb[0].mxu0 %v4535
      %v4678 = vpop.f32.mrb[0].mxu0
      %v4679 = vadd.f32 %v4454, %v4678
      %v4680 = vpop.f32.mrb[0].mxu0
      %4681 = vmatprep.mubr.f32.mxu0 0.0
      %4682 = vmatmul.mubr.f32.gmra.mrb[0].mxu0 %v4538
      %v4683 = vpop.f32.mrb[0].mxu0
      %v4684 = vadd.f32 %v4459, %v4683
      %v4685 = vpop.f32.mrb[0].mxu0
      %4686 = vmatprep.mubr.f32.mxu0 0.0
      %4687 = vmatmul.mubr.f32.gmra.mrb[0].mxu0 %v4541
      %v4688 = vpop.f32.mrb[0].mxu0
      %v4689 = vadd.f32 %v4464, %v4688
      %v4690 = vpop.f32.mrb[0].mxu0
      %4691 = vmatprep.mubr.f32.mxu0 0.0
      %4692 = vmatmul.mubr.f32.gmra.mrb[0].mxu0 %v4544
      %v4693 = vpop.f32.mrb[0].mxu0
      %v4694 = vadd.f32 %v4469, %v4693
      %v4695 = vpop.f32.mrb[0].mxu0
      %4696 = vmatprep.mubr.f32.mxu0 0.0
      %4697 = vmatmul.mubr.f32.gmra.mrb[0].mxu0 %v4547
      %v4698 = vpop.f32.mrb[0].mxu0
      %v4699 = vadd.f32 %v4474, %v4698
      %v4700 = vpop.f32.mrb[0].mxu0
      %4701 = vmatprep.mubr.f32.mxu0 0.0
      %4702 = vmatmul.mubr.f32.gmra.mrb[0].mxu0 %v4550
      %v4703 = vpop.f32.mrb[0].mxu0
      %v4704 = vadd.f32 %v4479, %v4703
      %v4705 = vpop.f32.mrb[0].mxu0
      %4706 = vmatprep.mubr.f32.mxu0 0.0
      %4707 = vmatmul.mubr.f32.gmra.mrb[0].mxu0 %v4553
      %v4708 = vpop.f32.mrb[0].mxu0
      %v4709 = vadd.f32 %v4484, %v4708
      %v4710 = vpop.f32.mrb[0].mxu0
      %4711 = vmatprep.mubr.f32.mxu0 0.0
      %4712 = vmatmul.mubr.f32.gmra.mrb[0].mxu0 %v4556
      %v4713 = vpop.f32.mrb[0].mxu0
      %v4714 = vadd.f32 %v4489, %v4713
      %v4715 = vpop.f32.mrb[0].mxu0
      %4716 = vmatprep.mubr.f32.mxu0 0.0
      %4717 = vmatmul.mubr.f32.gmra.mrb[0].mxu0 %v4559
      %v4718 = vpop.f32.mrb[0].mxu0
      %v4719 = vadd.f32 %v4494, %v4718
      %v4720 = vpop.f32.mrb[0].mxu0
      %4721 = vmatprep.mubr.f32.mxu0 0.0
      %4722 = vmatmul.mubr.f32.gmra.mrb[0].mxu0 %v4562
      %v4723 = vpop.f32.mrb[0].mxu0
      %v4724 = vadd.f32 %v4499, %v4723
      %v4725 = vpop.f32.mrb[0].mxu0
      %4726 = vmatprep.mubr.f32.mxu0 0.0
      %4727 = vmatmul.mubr.f32.gmra.mrb[0].mxu0 %v4565
      %v4728 = vpop.f32.mrb[0].mxu0
      %v4729 = vadd.f32 %v4504, %v4728
      %v4730 = vpop.f32.mrb[0].mxu0
      %4731 = vdwg.mxu0
      %v4732 = vadd.f32 %v4634, %v4175
      %v4733 = vadd.f32 %v4639, %v4180
      %v4734 = vadd.f32 %v4644, %v4185
      %v4735 = vadd.f32 %v4649, %v4190
      %v4736 = vadd.f32 %v4654, %v4195
      %v4737 = vadd.f32 %v4659, %v4200
      %v4738 = vadd.f32 %v4664, %v4205
      %v4739 = vadd.f32 %v4669, %v4210
      %v4740 = vadd.f32 %v4674, %v4215
      %v4741 = vadd.f32 %v4679, %v4220
      %v4742 = vadd.f32 %v4684, %v4225
      %v4743 = vadd.f32 %v4689, %v4230
      %v4744 = vadd.f32 %v4694, %v4235
      %v4745 = vadd.f32 %v4699, %v4240
      %v4746 = vadd.f32 %v4704, %v4245
      %v4747 = vadd.f32 %v4709, %v4250
      %v4748 = vadd.f32 %v4714, %v4255
      %v4749 = vadd.f32 %v4719, %v4260
      %v4750 = vadd.f32 %v4724, %v4265
      %v4751 = vadd.f32 %v4729, %v4270
      %v4752 = vld [vmem:[%s10] sm:$0xff]
      %v4753 = vld [vmem:[%s10 + $0x8] sm:$0xff]
      %v4754 = vld [vmem:[%s10 + $0x10] sm:$0xff]
      %v4755 = vld [vmem:[%s10 + $0x18] sm:$0xff]
      %v4756 = vld [vmem:[%s11] sm:$0x1]
      %v4758 = vlaneseq
      %v4759 = vshrl.u32 %v4758, 7
      %v4760 = vsub.s32 0, %v4759
      %v4761 = vrot.slane %v4756, %v4760
      %v4764 = vsel %vm1081, %v4732, 0
      %v4767 = vsel %vm1081, %v4733, 0
      %v4770 = vsel %vm1081, %v4734, 0
      %v4773 = vsel %vm1081, %v4735, 0
      %v4776 = vsel %vm1081, %v4736, 0
      %v4779 = vsel %vm1081, %v4737, 0
      %v4782 = vsel %vm1081, %v4738, 0
      %v4785 = vsel %vm1081, %v4739, 0
      %v4788 = vsel %vm1081, %v4740, 0
      %v4791 = vsel %vm1081, %v4741, 0
      %v4794 = vsel %vm1081, %v4742, 0
      %v4797 = vsel %vm1081, %v4743, 0
      %v4800 = vsel %vm1081, %v4744, 0
      %v4803 = vsel %vm1081, %v4745, 0
      %v4806 = vsel %vm1081, %v4746, 0
      %v4809 = vsel %vm1081, %v4747, 0
      %v4812 = vsel %vm1081, %v4748, 0
      %v4815 = vsel %vm1081, %v4749, 0
      %v4818 = vsel %vm1081, %v4750, 0
      %v4821 = vsel %vm1081, %v4751, 0
      %4823 = vmatprep.subr.mxu0 0.0
      %4824 = vmatpush1.msra.mxu0 %v4752
      %4825 = vmatprep.subr.mxu0 0.0
      %4826 = vmatpush1.msra.mxu0 %v4753
      %4827 = vmatprep.subr.mxu0 0.0
      %4828 = vmatpush1.msra.mxu0 %v4754
      %4829 = vmatprep.subr.mxu0 0.0
      %4830 = vmatpush1.msra.mxu0 %v4755
      %4831 = vmatprep.subr.mxu0 0.0
      %4832 = vmatpush1.msra.mxu0 0.0
      %4833 = vmatprep.subr.mxu0 0.0
      %4834 = vmatpush1.msra.mxu0 0.0
      %4835 = vmatprep.subr.mxu0 0.0
      %4836 = vmatpush1.msra.mxu0 0.0
      %4837 = vmatprep.subr.mxu0 0.0
      %4838 = vmatpush1.msra.mxu0 0.0
      %4839 = vmatprep.subr.mxu0 0.0
      %4840 = vmatpush1.msra.mxu0 0.0
      %4841 = vmatprep.subr.mxu0 0.0
      %4842 = vmatpush1.msra.mxu0 0.0
      %4843 = vmatprep.subr.mxu0 0.0
      %4844 = vmatpush1.msra.mxu0 0.0
      %4845 = vmatprep.subr.mxu0 0.0
      %4846 = vmatpush1.msra.mxu0 0.0
      %4847 = vmatprep.subr.mxu0 0.0
      %4848 = vmatpush1.msra.mxu0 0.0
      %4849 = vmatprep.subr.mxu0 0.0
      %4850 = vmatpush1.msra.mxu0 0.0
      %4851 = vmatprep.subr.mxu0 0.0
      %4852 = vmatpush1.msra.mxu0 0.0
      %4853 = vmatprep.subr.mxu0 0.0
      %4854 = vmatpush1.msra.mxu0 0.0
      %4855 = vmatprep.subr.mxu0 0.0
      %4856 = vmatpush1.msra.mxu0 0.0
      %4857 = vmatprep.subr.mxu0 0.0
      %4858 = vmatpush1.msra.mxu0 0.0
      %4859 = vmatprep.subr.mxu0 0.0
      %4860 = vmatpush1.msra.mxu0 0.0
      %4861 = vmatprep.subr.mxu0 0.0
      %4862 = vmatpush1.msra.mxu0 0.0
      %4863 = vmatprep.subr.mxu0 0.0
      %4864 = vmatpush1.msra.mxu0 0.0
      %4865 = vmatprep.subr.mxu0 0.0
      %4866 = vmatpush1.msra.mxu0 0.0
      %4867 = vmatprep.subr.mxu0 0.0
      %4868 = vmatpush1.msra.mxu0 0.0
      %4869 = vmatprep.subr.mxu0 0.0
      %4870 = vmatpush1.msra.mxu0 0.0
      %4871 = vmatprep.subr.mxu0 0.0
      %4872 = vmatpush1.msra.mxu0 0.0
      %4873 = vmatprep.subr.mxu0 0.0
      %4874 = vmatpush1.msra.mxu0 0.0
      %4875 = vmatprep.subr.mxu0 0.0
      %4876 = vmatpush1.msra.mxu0 0.0
      %4877 = vmatprep.subr.mxu0 0.0
      %4878 = vmatpush1.msra.mxu0 0.0
      %4879 = vmatprep.subr.mxu0 0.0
      %4880 = vmatpush1.msra.mxu0 0.0
      %4881 = vmatprep.subr.mxu0 0.0
      %4882 = vmatpush1.msra.mxu0 0.0
      %4883 = vmatprep.subr.mxu0 0.0
      %4884 = vmatpush1.msra.mxu0 0.0
      %4885 = vmatprep.subr.mxu0 0.0
      %4886 = vmatpush1.msra.mxu0 0.0
      %4887 = vmatprep.mubr.f32.mxu0 0.0
      %4888 = vmatmul.mubr.f32.gmra.mrb[0].mxu0 %v4764
      %v4889 = vpop.f32.mrb[0].mxu0
      %v4890 = vadd.f32 %v4761, %v4889
      %v4891 = vpop.f32.mrb[0].mxu0
      %4892 = vmatprep.mubr.f32.mxu0 0.0
      %4893 = vmatmul.mubr.f32.gmra.mrb[0].mxu0 %v4767
      %v4894 = vpop.f32.mrb[0].mxu0
      %v4895 = vadd.f32 %v4761, %v4894
      %v4896 = vpop.f32.mrb[0].mxu0
      %4897 = vmatprep.mubr.f32.mxu0 0.0
      %4898 = vmatmul.mubr.f32.gmra.mrb[0].mxu0 %v4770
      %v4899 = vpop.f32.mrb[0].mxu0
      %v4900 = vadd.f32 %v4761, %v4899
      %v4901 = vpop.f32.mrb[0].mxu0
      %4902 = vmatprep.mubr.f32.mxu0 0.0
      %4903 = vmatmul.mubr.f32.gmra.mrb[0].mxu0 %v4773
      %v4904 = vpop.f32.mrb[0].mxu0
      %v4905 = vadd.f32 %v4761, %v4904
      %v4906 = vpop.f32.mrb[0].mxu0
      %4907 = vmatprep.mubr.f32.mxu0 0.0
      %4908 = vmatmul.mubr.f32.gmra.mrb[0].mxu0 %v4776
      %v4909 = vpop.f32.mrb[0].mxu0
      %v4910 = vadd.f32 %v4761, %v4909
      %v4911 = vpop.f32.mrb[0].mxu0
      %4912 = vmatprep.mubr.f32.mxu0 0.0
      %4913 = vmatmul.mubr.f32.gmra.mrb[0].mxu0 %v4779
      %v4914 = vpop.f32.mrb[0].mxu0
      %v4915 = vadd.f32 %v4761, %v4914
      %v4916 = vpop.f32.mrb[0].mxu0
      %4917 = vmatprep.mubr.f32.mxu0 0.0
      %4918 = vmatmul.mubr.f32.gmra.mrb[0].mxu0 %v4782
      %v4919 = vpop.f32.mrb[0].mxu0
      %v4920 = vadd.f32 %v4761, %v4919
      %v4921 = vpop.f32.mrb[0].mxu0
      %4922 = vmatprep.mubr.f32.mxu0 0.0
      %4923 = vmatmul.mubr.f32.gmra.mrb[0].mxu0 %v4785
      %v4924 = vpop.f32.mrb[0].mxu0
      %v4925 = vadd.f32 %v4761, %v4924
      %v4926 = vpop.f32.mrb[0].mxu0
      %4927 = vmatprep.mubr.f32.mxu0 0.0
      %4928 = vmatmul.mubr.f32.gmra.mrb[0].mxu0 %v4788
      %v4929 = vpop.f32.mrb[0].mxu0
      %v4930 = vadd.f32 %v4761, %v4929
      %v4931 = vpop.f32.mrb[0].mxu0
      %4932 = vmatprep.mubr.f32.mxu0 0.0
      %4933 = vmatmul.mubr.f32.gmra.mrb[0].mxu0 %v4791
      %v4934 = vpop.f32.mrb[0].mxu0
      %v4935 = vadd.f32 %v4761, %v4934
      %v4936 = vpop.f32.mrb[0].mxu0
      %4937 = vmatprep.mubr.f32.mxu0 0.0
      %4938 = vmatmul.mubr.f32.gmra.mrb[0].mxu0 %v4794
      %v4939 = vpop.f32.mrb[0].mxu0
      %v4940 = vadd.f32 %v4761, %v4939
      %v4941 = vpop.f32.mrb[0].mxu0
      %4942 = vmatprep.mubr.f32.mxu0 0.0
      %4943 = vmatmul.mubr.f32.gmra.mrb[0].mxu0 %v4797
      %v4944 = vpop.f32.mrb[0].mxu0
      %v4945 = vadd.f32 %v4761, %v4944
      %v4946 = vpop.f32.mrb[0].mxu0
      %4947 = vmatprep.mubr.f32.mxu0 0.0
      %4948 = vmatmul.mubr.f32.gmra.mrb[0].mxu0 %v4800
      %v4949 = vpop.f32.mrb[0].mxu0
      %v4950 = vadd.f32 %v4761, %v4949
      %v4951 = vpop.f32.mrb[0].mxu0
      %4952 = vmatprep.mubr.f32.mxu0 0.0
      %4953 = vmatmul.mubr.f32.gmra.mrb[0].mxu0 %v4803
      %v4954 = vpop.f32.mrb[0].mxu0
      %v4955 = vadd.f32 %v4761, %v4954
      %v4956 = vpop.f32.mrb[0].mxu0
      %4957 = vmatprep.mubr.f32.mxu0 0.0
      %4958 = vmatmul.mubr.f32.gmra.mrb[0].mxu0 %v4806
      %v4959 = vpop.f32.mrb[0].mxu0
      %v4960 = vadd.f32 %v4761, %v4959
      %v4961 = vpop.f32.mrb[0].mxu0
      %4962 = vmatprep.mubr.f32.mxu0 0.0
      %4963 = vmatmul.mubr.f32.gmra.mrb[0].mxu0 %v4809
      %v4964 = vpop.f32.mrb[0].mxu0
      %v4965 = vadd.f32 %v4761, %v4964
      %v4966 = vpop.f32.mrb[0].mxu0
      %4967 = vmatprep.mubr.f32.mxu0 0.0
      %4968 = vmatmul.mubr.f32.gmra.mrb[0].mxu0 %v4812
      %v4969 = vpop.f32.mrb[0].mxu0
      %v4970 = vadd.f32 %v4761, %v4969
      %v4971 = vpop.f32.mrb[0].mxu0
      %4972 = vmatprep.mubr.f32.mxu0 0.0
      %4973 = vmatmul.mubr.f32.gmra.mrb[0].mxu0 %v4815
      %v4974 = vpop.f32.mrb[0].mxu0
      %v4975 = vadd.f32 %v4761, %v4974
      %v4976 = vpop.f32.mrb[0].mxu0
      %4977 = vmatprep.mubr.f32.mxu0 0.0
      %4978 = vmatmul.mubr.f32.gmra.mrb[0].mxu0 %v4818
      %v4979 = vpop.f32.mrb[0].mxu0
      %v4980 = vadd.f32 %v4761, %v4979
      %v4981 = vpop.f32.mrb[0].mxu0
      %4982 = vmatprep.mubr.f32.mxu0 0.0
      %4983 = vmatmul.mubr.f32.gmra.mrb[0].mxu0 %v4821
      %v4984 = vpop.f32.mrb[0].mxu0
      %v4985 = vadd.f32 %v4761, %v4984
      %v4986 = vpop.f32.mrb[0].mxu0
      %4987 = vdwg.mxu0
      %4988 = vst [vmem:[%s488] sm:$0xff] %v4890
      %4989 = vst [vmem:[%s488 + $0x8] sm:$0xff] %v4895
      %4990 = vst [vmem:[%s488 + $0x10] sm:$0xff] %v4900
      %4991 = vst [vmem:[%s488 + $0x18] sm:$0xff] %v4905
      %4992 = vst [vmem:[%s488 + $0x20] sm:$0xff] %v4910
      %4993 = vst [vmem:[%s488 + $0x28] sm:$0xff] %v4915
      %4994 = vst [vmem:[%s488 + $0x30] sm:$0xff] %v4920
      %4995 = vst [vmem:[%s488 + $0x38] sm:$0xff] %v4925
      %4996 = vst [vmem:[%s488 + $0x40] sm:$0xff] %v4930
      %4997 = vst [vmem:[%s488 + $0x48] sm:$0xff] %v4935
      %4998 = vst [vmem:[%s488 + $0x50] sm:$0xff] %v4940
      %4999 = vst [vmem:[%s488 + $0x58] sm:$0xff] %v4945
      %5000 = vst [vmem:[%s488 + $0x60] sm:$0xff] %v4950
      %5001 = vst [vmem:[%s488 + $0x68] sm:$0xff] %v4955
      %5002 = vst [vmem:[%s488 + $0x70] sm:$0xff] %v4960
      %5003 = vst [vmem:[%s488 + $0x78] sm:$0xff] %v4965
      %5004 = vst [vmem:[%s488 + $0x80] sm:$0xff] %v4970
      %5005 = vst [vmem:[%s488 + $0x88] sm:$0xff] %v4975
      %5006 = vst [vmem:[%s488 + $0x90] sm:$0xff] %v4980
      %5007 = vst [vmem:[%s488 + $0x98] sm:$0xff] %v4985
      %v5008 = vpack.c.bf16 %v4895, %v4890
      %v5009 = vpack.c.bf16 %v4905, %v4900
      %v5010 = vpack.c.bf16 %v4915, %v4910
      %v5011 = vpack.c.bf16 %v4925, %v4920
      %v5012 = vpack.c.bf16 %v4935, %v4930
      %v5013 = vpack.c.bf16 %v4945, %v4940
      %v5014 = vpack.c.bf16 %v4955, %v4950
      %v5015 = vpack.c.bf16 %v4965, %v4960
      %v5016 = vpack.c.bf16 %v4975, %v4970
      %v5017 = vpack.c.bf16 %v4985, %v4980
      %5018 = vmatprep.subr.bf16.mxu0 0
      %5019 = vmatpush1.bf16.msra.mxu0 %v5008
      %5020 = vmatprep.subr.bf16.mxu0 0
      %5021 = vmatpush1.bf16.msra.mxu0 %v5009
      %5022 = vmatprep.subr.bf16.mxu0 0
      %5023 = vmatpush1.bf16.msra.mxu0 %v5010
      %5024 = vmatprep.subr.bf16.mxu0 0
      %5025 = vmatpush1.bf16.msra.mxu0 %v5011
      %5026 = vmatprep.subr.bf16.mxu0 0
      %5027 = vmatpush1.bf16.msra.mxu0 %v5012
      %5028 = vmatprep.subr.bf16.mxu0 0
      %5029 = vmatpush1.bf16.msra.mxu0 %v5013
      %5030 = vmatprep.subr.bf16.mxu0 0
      %5031 = vmatpush1.bf16.msra.mxu0 %v5014
      %5032 = vmatprep.subr.bf16.mxu0 0
      %5033 = vmatpush1.bf16.msra.mxu0 %v5015
      %5034 = vmatprep.subr.bf16.mxu0 0
      %5035 = vmatpush1.bf16.msra.mxu0 %v5016
      %5036 = vmatprep.subr.bf16.mxu0 0
      %5037 = vmatpush1.bf16.msra.mxu0 %v5017
      %5038 = vmatprep.subr.bf16.mxu0 0
      %5039 = vmatpush1.bf16.msra.mxu0 0
      %5040 = vmatprep.subr.bf16.mxu0 0
      %5041 = vmatpush1.bf16.msra.mxu0 0
      %5042 = vmatprep.subr.bf16.mxu0 0
      %5043 = vmatpush1.bf16.msra.mxu0 0
      %5044 = vmatprep.subr.bf16.mxu0 0
      %5045 = vmatpush1.bf16.msra.mxu0 0
      %5046 = vmatprep.subr.bf16.mxu0 0
      %5047 = vmatpush1.bf16.msra.mxu0 0
      %5048 = vmatprep.subr.bf16.mxu0 0
      %5049 = vmatpush1.bf16.msra.mxu0 0
      %5050 = vmatprep.mubr.bf16.mxu0 %v1643
      %5051 = vmatmul.mubr.bf16.gmra.mrb[0].mxu0 %v1618
      %v5052 = vpop.f32.mrb[0].mxu0
      %v5053 = vadd.f32 0.0, %v5052
      %v5054 = vpop.f32.mrb[0].mxu0
      %v5055 = vpop.f32.mrb[0].mxu0
      %v5056 = vadd.f32 0.0, %v5055
      %v5057 = vpop.f32.mrb[0].mxu0
      %5058 = vmatprep.mubr.bf16.mxu0 %v1646
      %5059 = vmatmul.mubr.bf16.gmra.mrb[0].mxu0 %v1619
      %v5060 = vpop.f32.mrb[0].mxu0
      %v5061 = vadd.f32 0.0, %v5060
      %v5062 = vpop.f32.mrb[0].mxu0
      %v5063 = vpop.f32.mrb[0].mxu0
      %v5064 = vadd.f32 0.0, %v5063
      %v5065 = vpop.f32.mrb[0].mxu0
      %5066 = vmatprep.mubr.bf16.mxu0 %v1649
      %5067 = vmatmul.mubr.bf16.gmra.mrb[0].mxu0 %v1620
      %v5068 = vpop.f32.mrb[0].mxu0
      %v5069 = vadd.f32 0.0, %v5068
      %v5070 = vpop.f32.mrb[0].mxu0
      %v5071 = vpop.f32.mrb[0].mxu0
      %v5072 = vadd.f32 0.0, %v5071
      %v5073 = vpop.f32.mrb[0].mxu0
      %5074 = vmatprep.mubr.bf16.mxu0 %v1652
      %5075 = vmatmul.mubr.bf16.gmra.mrb[0].mxu0 %v1621
      %v5076 = vpop.f32.mrb[0].mxu0
      %v5077 = vadd.f32 0.0, %v5076
      %v5078 = vpop.f32.mrb[0].mxu0
      %v5079 = vpop.f32.mrb[0].mxu0
      %v5080 = vadd.f32 0.0, %v5079
      %v5081 = vpop.f32.mrb[0].mxu0
      %5082 = vmatprep.mubr.bf16.mxu0 %v1655
      %5083 = vmatmul.mubr.bf16.gmra.mrb[0].mxu0 %v1622
      %v5084 = vpop.f32.mrb[0].mxu0
      %v5085 = vadd.f32 0.0, %v5084
      %v5086 = vpop.f32.mrb[0].mxu0
      %v5087 = vpop.f32.mrb[0].mxu0
      %v5088 = vadd.f32 0.0, %v5087
      %v5089 = vpop.f32.mrb[0].mxu0
      %5090 = vmatprep.mubr.bf16.mxu0 %v1658
      %5091 = vmatmul.mubr.bf16.gmra.mrb[0].mxu0 %v1623
      %v5092 = vpop.f32.mrb[0].mxu0
      %v5093 = vadd.f32 0.0, %v5092
      %v5094 = vpop.f32.mrb[0].mxu0
      %v5095 = vpop.f32.mrb[0].mxu0
      %v5096 = vadd.f32 0.0, %v5095
      %v5097 = vpop.f32.mrb[0].mxu0
      %5098 = vmatprep.mubr.bf16.mxu0 %v1661
      %5099 = vmatmul.mubr.bf16.gmra.mrb[0].mxu0 %v1624
      %v5100 = vpop.f32.mrb[0].mxu0
      %v5101 = vadd.f32 0.0, %v5100
      %v5102 = vpop.f32.mrb[0].mxu0
      %v5103 = vpop.f32.mrb[0].mxu0
      %v5104 = vadd.f32 0.0, %v5103
      %v5105 = vpop.f32.mrb[0].mxu0
      %5106 = vmatprep.mubr.bf16.mxu0 %v1664
      %5107 = vmatmul.mubr.bf16.gmra.mrb[0].mxu0 %v1625
      %v5108 = vpop.f32.mrb[0].mxu0
      %v5109 = vadd.f32 0.0, %v5108
      %v5110 = vpop.f32.mrb[0].mxu0
      %v5111 = vpop.f32.mrb[0].mxu0
      %v5112 = vadd.f32 0.0, %v5111
      %v5113 = vpop.f32.mrb[0].mxu0
      %5114 = vdwg.mxu0
      %v5115 = vmul.f32 %v5053, %v1766
      %v5116 = vmul.f32 %v5056, %v1771
      %v5117 = vmul.f32 %v5061, %v1776
      %v5118 = vmul.f32 %v5064, %v1781
      %v5119 = vmul.f32 %v5069, %v1786
      %v5120 = vmul.f32 %v5072, %v1791
      %v5121 = vmul.f32 %v5077, %v1796
      %v5122 = vmul.f32 %v5080, %v1801
      %v5123 = vmul.f32 %v5085, %v1806
      %v5124 = vmul.f32 %v5088, %v1811
      %v5125 = vmul.f32 %v5093, %v1816
      %v5126 = vmul.f32 %v5096, %v1821
      %v5127 = vmul.f32 %v5101, %v1826
      %v5128 = vmul.f32 %v5104, %v1831
      %v5129 = vmul.f32 %v5109, %v1836
      %v5130 = vmul.f32 %v5112, %v1841
      %5131 = vst [vmem:[%s493] sm:$0xff] %v5115
      %5132 = vst [vmem:[%s493 + $0x8] sm:$0xff] %v5116
      %5133 = vst [vmem:[%s493 + $0x10] sm:$0xff] %v5117
      %5134 = vst [vmem:[%s493 + $0x18] sm:$0xff] %v5118
      %5135 = vst [vmem:[%s493 + $0x20] sm:$0xff] %v5119
      %5136 = vst [vmem:[%s493 + $0x28] sm:$0xff] %v5120
      %5137 = vst [vmem:[%s493 + $0x30] sm:$0xff] %v5121
      %5138 = vst [vmem:[%s493 + $0x38] sm:$0xff] %v5122
      %5139 = vst [vmem:[%s493 + $0x40] sm:$0xff] %v5123
      %5140 = vst [vmem:[%s493 + $0x48] sm:$0xff] %v5124
      %5141 = vst [vmem:[%s493 + $0x50] sm:$0xff] %v5125
      %5142 = vst [vmem:[%s493 + $0x58] sm:$0xff] %v5126
      %5143 = vst [vmem:[%s493 + $0x60] sm:$0xff] %v5127
      %5144 = vst [vmem:[%s493 + $0x68] sm:$0xff] %v5128
      %5145 = vst [vmem:[%s493 + $0x70] sm:$0xff] %v5129
      %5146 = vst [vmem:[%s493 + $0x78] sm:$0xff] %v5130
      %p5147 = scmp.lt.s32.totalorder %s25, 1
      %s5148 = scalar_select %p5147, %s25, 1
      %s5149 = smul.addr %s5148, 20
      %s5150 = smul.addr %s5149, 8
      %s5151 = scalar_lea.vmem %s12, %s5150
      %p5152 = scmp.lt.s32.totalorder %s25, 1
      %s5153 = scalar_select %p5152, %s25, 1
      %s5154 = smul.addr %s5153, 16
      %s5155 = smul.addr %s5154, 8
      %s5156 = scalar_lea.vmem %s13, %s5155
      // Predicated region
      $region69: #{patch_encoder_pallas.1} parent=67 // pred_check
        %p5157 = pneg %p310
      $region70: #{patch_encoder_pallas.1} parent=67 // pred_check_branch
        %5159 = sbr.rel (%p5157) target = $region72
      $region71: #{patch_encoder_pallas.1} parent=67 // pred_region
        _
      $region72: #{patch_encoder_pallas.1} parent=67 // pred_fallthru
        _
      // Predicated region
      $region73: #{patch_encoder_pallas.1} parent=67 // pred_check
        %p5160 = pneg %p336
      $region74: #{patch_encoder_pallas.1} parent=67 // pred_check_branch
        %5162 = sbr.rel (%p5160) target = $region76
      $region75: #{patch_encoder_pallas.1} parent=67 // pred_region
        _
      $region76: #{patch_encoder_pallas.1} parent=67 // pred_fallthru
        _
    $region68: #{patch_encoder_pallas.1} parent=5 // pred_fallthru
      _
    %p5163 = scmp.le.s32.totalorder 2, %s20
    // Predicated region
    $region77: #{patch_encoder_pallas.1} parent=5 // pred_check
      %p5164 = pneg %p5163
    $region78: #{patch_encoder_pallas.1} parent=5 // pred_check_branch
      %5166 = sbr.rel (%p5164) target = $region80
    $region79: #{patch_encoder_pallas.1} parent=5 // pred_region
      %s5167 = ssub.s32 %s20, 2
      // Predicated region
      $region81: #{patch_encoder_pallas.1} parent=79 // pred_check
        %p5168 = pneg %p316
      $region82: #{patch_encoder_pallas.1} parent=79 // pred_check_branch
        %5170 = sbr.rel (%p5168) target = $region84
      $region83: #{patch_encoder_pallas.1} parent=79 // pred_region
        %p5171 = scmp.lt.s32.totalorder %s26, 1
        %s5172 = scalar_select %p5171, %s26, 1
        %s5173 = smul.addr %s5172, 20
        %s5174 = smul.addr %s5173, 8
        %s5175 = scalar_lea.vmem %s12, %s5174
      $region84: #{patch_encoder_pallas.1} parent=79 // pred_fallthru
        _
      // Predicated region
      $region85: #{patch_encoder_pallas.1} parent=79 // pred_check
        %p5176 = pneg %p342
      $region86: #{patch_encoder_pallas.1} parent=79 // pred_check_branch
        %5178 = sbr.rel (%p5176) target = $region88
      $region87: #{patch_encoder_pallas.1} parent=79 // pred_region
        %p5179 = scmp.lt.s32.totalorder %s26, 1
        %s5180 = scalar_select %p5179, %s26, 1
        %s5181 = smul.addr %s5180, 16
        %s5182 = smul.addr %s5181, 8
        %s5183 = scalar_lea.vmem %s13, %s5182
      $region88: #{patch_encoder_pallas.1} parent=79 // pred_fallthru
        _
    $region80: #{patch_encoder_pallas.1} parent=5 // pred_fallthru
      _
  $region6: #{patch_encoder_pallas.1} parent=0 // loop_footer
    %s24 = sadd.s32 1, %s20
  $region7: #{patch_encoder_pallas.1} parent=0 // loop_footer_branch
    %19 = sbr.rel target = $region3
  $region8: #{patch_encoder_pallas.1} parent=0 // loop_exit
    _

</llo_original>
